<compile_context>
chip_gen: v7x
topology: tpu7x:2x2x1
jax: 0.10.0
libtpu: 0.0.40
codegen_flags: <defaults>
</compile_context>

<pallas_src>
import functools

import jax
import jax.numpy as jnp
from jax.experimental import pallas as pl

INPUT_DIM = 784
HIDDEN = 500
OUTPUT_DIM = 300
FEATURE_DIM = 128
CLASS_NUM = 10

LANE = 128
SUBLANE = 8

# Lane-padded layer widths.
D_IN_P = 896          # 784 -> 896
HID_P = 512           # 500 -> 512
OUT_P = 384           # 300 -> 384
PROJ_P = 2 * OUT_P    # fused instance/cluster first layers: 768
FEAT_P = 128          # feature_dim already lane-sized
CLS_P = 128           # 10 -> 128
BIAS_ROWS = 8         # consolidated bias slab (sublane-aligned)
BIAS_COLS = PROJ_P    # widest bias region = 768


def _round_up(n, m):
    return ((n + m - 1) // m) * m


# ----------------------------- fused kernel --------------------------------

def _fused_mlp_kernel(x_ref,
                      w1_ref, w2_ref, w3_ref, wp_ref, wi_ref, wc_ref,
                      b_ref,
                      z_ref, c_ref, *, class_num):
    """Both views' full forward: x -> (normalize(z), softmax(c)) in one pass."""

    def dense(a_bf16, w_ref, bias_row, out_w, relu):
        # bf16 x bf16 MXU matmul, f32 accumulation, fused bias (+ ReLU).
        y = jnp.dot(a_bf16, w_ref[...], preferred_element_type=jnp.float32)
        y = y + b_ref[bias_row:bias_row + 1, 0:out_w]
        if relu:
            y = jnp.maximum(y, 0.0)
        return y

    x = x_ref[...]                                                # (M, 896) bf16

    # backbone: 896 -> 512 -> 512 -> 384  (padded 784 -> 500 -> 500 -> 300)
    h = dense(x, w1_ref, 0, HID_P, True).astype(jnp.bfloat16)
    h = dense(h, w2_ref, 1, HID_P, True).astype(jnp.bfloat16)
    h = dense(h, w3_ref, 2, OUT_P, True).astype(jnp.bfloat16)

    # fused first layers of both projector heads: one (M,384)@(384,768) matmul
    p = dense(h, wp_ref, 3, PROJ_P, True).astype(jnp.bfloat16)    # (M, 768)
    zh = p[:, :OUT_P]                                             # instance head
    ch = p[:, OUT_P:]                                             # cluster head

    # instance projector output + exact L2-normalize (dim=1)
    z = dense(zh, wi_ref, 4, FEAT_P, False)                       # (M, 128) f32
    norm = jnp.sqrt(jnp.sum(z * z, axis=1, keepdims=True))
    z_ref[...] = (z / jnp.maximum(norm, 1e-12)).astype(z_ref.dtype)

    # cluster projector output + exact softmax over the first `class_num` cols
    logits = dense(ch, wc_ref, 5, CLS_P, False)                   # (M, 128) f32
    col = jax.lax.broadcasted_iota(jnp.int32, logits.shape, 1)
    logits = jnp.where(col < class_num, logits, -1e30)
    m = jnp.max(logits, axis=1, keepdims=True)
    e = jnp.exp(logits - m)          # masked columns underflow to exactly 0
    denom = jnp.sum(e, axis=1, keepdims=True)
    c_ref[...] = (e / denom).astype(c_ref.dtype)


# ----------------------------- parameters ----------------------------------

def init_params(key):
    """PyTorch-style uniform(-1/sqrt(fan_in), 1/sqrt(fan_in)) init."""
    dims = {
        "net0": (INPUT_DIM, HIDDEN),
        "net1": (HIDDEN, HIDDEN),
        "net2": (HIDDEN, OUTPUT_DIM),
        "inst0": (OUTPUT_DIM, OUTPUT_DIM),
        "inst1": (OUTPUT_DIM, FEATURE_DIM),
        "clus0": (OUTPUT_DIM, OUTPUT_DIM),
        "clus1": (OUTPUT_DIM, CLASS_NUM),
    }
    params = {}
    keys = jax.random.split(key, 2 * len(dims))
    for i, (name, (fan_in, fan_out)) in enumerate(dims.items()):
        bound = 1.0 / jnp.sqrt(jnp.float32(fan_in))
        w = jax.random.uniform(keys[2 * i], (fan_in, fan_out), jnp.float32,
                               minval=-bound, maxval=bound)
        b = jax.random.uniform(keys[2 * i + 1], (fan_out,), jnp.float32,
                               minval=-bound, maxval=bound)
        params[name] = (w, b)
    return params


def prepare_params(params):
    """Zero-pad weights to lane multiples, fuse the two projector first layers,
    cast to bf16, and consolidate all biases into one (8, 768) f32 slab."""

    def pad_w(w, kp, np_):
        k, n = w.shape
        return jnp.zeros((kp, np_), jnp.bfloat16).at[:k, :n].set(
            w.astype(jnp.bfloat16))

    w1 = pad_w(params["net0"][0], D_IN_P, HID_P)
    w2 = pad_w(params["net1"][0], HID_P, HID_P)
    w3 = pad_w(params["net2"][0], HID_P, OUT_P)

    # fused projector first layers: columns [0,300) = instance, [384,684) = cluster
    wp = jnp.zeros((OUT_P, PROJ_P), jnp.bfloat16)
    wp = wp.at[:OUTPUT_DIM, :OUTPUT_DIM].set(
        params["inst0"][0].astype(jnp.bfloat16))
    wp = wp.at[:OUTPUT_DIM, OUT_P:OUT_P + OUTPUT_DIM].set(
        params["clus0"][0].astype(jnp.bfloat16))

    wi = pad_w(params["inst1"][0], OUT_P, FEAT_P)
    wc = pad_w(params["clus1"][0], OUT_P, CLS_P)

    b = jnp.zeros((BIAS_ROWS, BIAS_COLS), jnp.float32)
    b = b.at[0, :HIDDEN].set(params["net0"][1])
    b = b.at[1, :HIDDEN].set(params["net1"][1])
    b = b.at[2, :OUTPUT_DIM].set(params["net2"][1])
    b = b.at[3, :OUTPUT_DIM].set(params["inst0"][1])
    b = b.at[3, OUT_P:OUT_P + OUTPUT_DIM].set(params["clus0"][1])
    b = b.at[4, :FEATURE_DIM].set(params["inst1"][1])
    b = b.at[5, :CLASS_NUM].set(params["clus1"][1])

    return {"w1": w1, "w2": w2, "w3": w3, "wp": wp, "wi": wi, "wc": wc, "b": b}


# ----------------------------- forward -------------------------------------

def mlp_forward(prepared, x_i, x_j):
    B = x_i.shape[0]
    b_pad = max(SUBLANE, _round_up(B, SUBLANE))
    M = 2 * b_pad

    def flatten_pad(x):
        x = x.reshape(B, INPUT_DIM).astype(jnp.bfloat16)
        return jnp.pad(x, ((0, b_pad - B), (0, D_IN_P - INPUT_DIM)))

    # Rows [0, b_pad) = view i, rows [b_pad, 2*b_pad) = view j: one slab.
    x = jnp.concatenate([flatten_pad(x_i), flatten_pad(x_j)], axis=0)

    kernel = functools.partial(_fused_mlp_kernel, class_num=CLASS_NUM)

    # Single invocation (no grid): every operand is a full-array VMEM block,
    # so constant weights are loaded exactly once and never double-buffered.
    z_all, c_all = pl.pallas_call(
        kernel,
        out_shape=(
            jax.ShapeDtypeStruct((M, FEAT_P), jnp.float32),
            jax.ShapeDtypeStruct((M, CLS_P), jnp.float32),
        ),
    )(x, prepared["w1"], prepared["w2"], prepared["w3"],
      prepared["wp"], prepared["wi"], prepared["wc"], prepared["b"])

    z_i = z_all[:B, :FEATURE_DIM]
    z_j = z_all[b_pad:b_pad + B, :FEATURE_DIM]
    c_i = c_all[:B, :CLASS_NUM]
    c_j = c_all[b_pad:b_pad + B, :CLASS_NUM]
    return z_i, z_j, c_i, c_j


# ----------------------------- reference (pure JAX) -------------------------

def _reference_forward(params, x_i, x_j):
    """Plain-JAX mirror using the ORIGINAL (unpadded, unfused) parameters with
    the same bf16-matmul / f32-accumulate precision as the kernel.  Validates
    padding, head fusion and the in-kernel normalize/softmax."""

    def dense(a, name, relu):
        w, b = params[name]
        y = jnp.dot(a.astype(jnp.bfloat16), w.astype(jnp.bfloat16),
                    preferred_element_type=jnp.float32) + b
        return jnp.maximum(y, 0.0) if relu else y

    def one_view(x):
        x = x.reshape(-1, INPUT_DIM)
        h = dense(dense(dense(x, "net0", True), "net1", True), "net2", True)
        z = dense(dense(h, "inst0", True), "inst1", False)
        z = z / jnp.maximum(jnp.linalg.norm(z, axis=1, keepdims=True), 1e-12)
        logits = dense(dense(h, "clus0", True), "clus1", False)
        return z, jax.nn.softmax(logits, axis=1)

    z_i, c_i = one_view(x_i)
    z_j, c_j = one_view(x_j)
    return z_i, z_j, c_i, c_j


# ----------------------------- main -----------------------------------------

if __name__ == "__main__":
    key = jax.random.PRNGKey(0)
    k_params, k_xi, k_xj = jax.random.split(key, 3)

    params = init_params(k_params)
    prepared = prepare_params(params)       # pad + fuse + bf16 cast, once

    B = 8
    x_i = jax.random.normal(k_xi, (B, 1, 28, 28), jnp.float32)   # NCHW, 1*28*28=784
    x_j = jax.random.normal(k_xj, (B, 1, 28, 28), jnp.float32)

    fwd = jax.jit(mlp_forward)
    z_i, z_j, c_i, c_j = fwd(prepared, x_i, x_j)
    jax.block_until_ready((z_i, z_j, c_i, c_j))

    assert z_i.shape == (B, FEATURE_DIM) and z_j.shape == (B, FEATURE_DIM)
    assert c_i.shape == (B, CLASS_NUM) and c_j.shape == (B, CLASS_NUM)

    # exact division / sqrt in the kernel -> tight intrinsic checks
    assert jnp.allclose(jnp.sum(c_i, axis=1), 1.0, atol=1e-3)
    assert jnp.allclose(jnp.sum(c_j, axis=1), 1.0, atol=1e-3)
    assert jnp.allclose(jnp.linalg.norm(z_i, axis=1), 1.0, atol=1e-3)
    assert jnp.allclose(jnp.linalg.norm(z_j, axis=1), 1.0, atol=1e-3)

    # compare against a pure-JAX mirror of the same (bf16-matmul) math
    rz_i, rz_j, rc_i, rc_j = jax.jit(_reference_forward)(params, x_i, x_j)
    for got, ref in ((z_i, rz_i), (z_j, rz_j), (c_i, rc_i), (c_j, rc_j)):
        err = float(jnp.max(jnp.abs(got - ref)))
        assert err < 3e-2, err

    print("KERNEL_OK")
</pallas_src>

<mosaic_0001>
module attributes {stable_mosaic.version = 11 : i64} {
  func.func @_fused_mlp_kernel(%arg0: memref<16x896xbf16, #tpu.memory_space<vmem>>, %arg1: memref<896x512xbf16, #tpu.memory_space<vmem>>, %arg2: memref<512x512xbf16, #tpu.memory_space<vmem>>, %arg3: memref<512x384xbf16, #tpu.memory_space<vmem>>, %arg4: memref<384x768xbf16, #tpu.memory_space<vmem>>, %arg5: memref<384x128xbf16, #tpu.memory_space<vmem>>, %arg6: memref<384x128xbf16, #tpu.memory_space<vmem>>, %arg7: memref<8x768xf32, #tpu.memory_space<vmem>>, %arg8: memref<16x128xf32, #tpu.memory_space<vmem>>, %arg9: memref<16x128xf32, #tpu.memory_space<vmem>>) attributes {dimension_semantics = [], scalar_prefetch = 0 : i64, scratch_operands = 0 : i64, tpu.core_type = #tpu.core_type<tc>} {
    %c0 = arith.constant 0 : index
    %c0_0 = arith.constant 0 : index
    %0 = vector.load %arg0[%c0, %c0_0] : memref<16x896xbf16, #tpu.memory_space<vmem>>, vector<16x896xbf16>
    %c0_1 = arith.constant 0 : index
    %c0_2 = arith.constant 0 : index
    %1 = vector.load %arg1[%c0_1, %c0_2] : memref<896x512xbf16, #tpu.memory_space<vmem>>, vector<896x512xbf16>
    %cst = arith.constant dense<0.000000e+00> : vector<16x512xf32>
    %2 = tpu.matmul %0, %1, %cst {dimension_numbers = #tpu.dot_dimension_numbers<[1], [0], [0], [1], [0, 0, 1, 1], [], []>} : vector<16x896xbf16>, vector<896x512xbf16>, vector<16x512xf32> -> vector<16x512xf32>
    %c0_3 = arith.constant 0 : index
    %c0_4 = arith.constant 0 : index
    %3 = vector.load %arg7[%c0_3, %c0_4] : memref<8x768xf32, #tpu.memory_space<vmem>>, vector<1x512xf32>
    %4 = vector.broadcast %3 : vector<1x512xf32> to vector<16x512xf32>
    %5 = arith.addf %2, %4 : vector<16x512xf32>
    %cst_5 = arith.constant 0.000000e+00 : f32
    %6 = vector.broadcast %cst_5 : f32 to vector<16x512xf32>
    %7 = arith.maximumf %5, %6 : vector<16x512xf32>
    %8 = arith.truncf %7 : vector<16x512xf32> to vector<16x512xbf16>
    %c0_6 = arith.constant 0 : index
    %c0_7 = arith.constant 0 : index
    %9 = vector.load %arg2[%c0_6, %c0_7] : memref<512x512xbf16, #tpu.memory_space<vmem>>, vector<512x512xbf16>
    %cst_8 = arith.constant dense<0.000000e+00> : vector<16x512xf32>
    %10 = tpu.matmul %8, %9, %cst_8 {dimension_numbers = #tpu.dot_dimension_numbers<[1], [0], [0], [1], [0, 0, 1, 1], [], []>} : vector<16x512xbf16>, vector<512x512xbf16>, vector<16x512xf32> -> vector<16x512xf32>
    %c1 = arith.constant 1 : index
    %c0_9 = arith.constant 0 : index
    %11 = vector.load %arg7[%c1, %c0_9] : memref<8x768xf32, #tpu.memory_space<vmem>>, vector<1x512xf32>
    %12 = vector.broadcast %11 : vector<1x512xf32> to vector<16x512xf32>
    %13 = arith.addf %10, %12 : vector<16x512xf32>
    %cst_10 = arith.constant 0.000000e+00 : f32
    %14 = vector.broadcast %cst_10 : f32 to vector<16x512xf32>
    %15 = arith.maximumf %13, %14 : vector<16x512xf32>
    %16 = arith.truncf %15 : vector<16x512xf32> to vector<16x512xbf16>
    %c0_11 = arith.constant 0 : index
    %c0_12 = arith.constant 0 : index
    %17 = vector.load %arg3[%c0_11, %c0_12] : memref<512x384xbf16, #tpu.memory_space<vmem>>, vector<512x384xbf16>
    %cst_13 = arith.constant dense<0.000000e+00> : vector<16x384xf32>
    %18 = tpu.matmul %16, %17, %cst_13 {dimension_numbers = #tpu.dot_dimension_numbers<[1], [0], [0], [1], [0, 0, 1, 1], [], []>} : vector<16x512xbf16>, vector<512x384xbf16>, vector<16x384xf32> -> vector<16x384xf32>
    %c2 = arith.constant 2 : index
    %c0_14 = arith.constant 0 : index
    %19 = vector.load %arg7[%c2, %c0_14] : memref<8x768xf32, #tpu.memory_space<vmem>>, vector<1x384xf32>
    %20 = vector.broadcast %19 : vector<1x384xf32> to vector<16x384xf32>
    %21 = arith.addf %18, %20 : vector<16x384xf32>
    %cst_15 = arith.constant 0.000000e+00 : f32
    %22 = vector.broadcast %cst_15 : f32 to vector<16x384xf32>
    %23 = arith.maximumf %21, %22 : vector<16x384xf32>
    %24 = arith.truncf %23 : vector<16x384xf32> to vector<16x384xbf16>
    %c0_16 = arith.constant 0 : index
    %c0_17 = arith.constant 0 : index
    %25 = vector.load %arg4[%c0_16, %c0_17] : memref<384x768xbf16, #tpu.memory_space<vmem>>, vector<384x768xbf16>
    %cst_18 = arith.constant dense<0.000000e+00> : vector<16x768xf32>
    %26 = tpu.matmul %24, %25, %cst_18 {dimension_numbers = #tpu.dot_dimension_numbers<[1], [0], [0], [1], [0, 0, 1, 1], [], []>} : vector<16x384xbf16>, vector<384x768xbf16>, vector<16x768xf32> -> vector<16x768xf32>
    %c3 = arith.constant 3 : index
    %c0_19 = arith.constant 0 : index
    %27 = vector.load %arg7[%c3, %c0_19] : memref<8x768xf32, #tpu.memory_space<vmem>>, vector<1x768xf32>
    %28 = vector.broadcast %27 : vector<1x768xf32> to vector<16x768xf32>
    %29 = arith.addf %26, %28 : vector<16x768xf32>
    %cst_20 = arith.constant 0.000000e+00 : f32
    %30 = vector.broadcast %cst_20 : f32 to vector<16x768xf32>
    %31 = arith.maximumf %29, %30 : vector<16x768xf32>
    %32 = arith.truncf %31 : vector<16x768xf32> to vector<16x768xbf16>
    %33 = vector.extract_strided_slice %32 {offsets = [0, 0], sizes = [16, 384], strides = [1, 1]} : vector<16x768xbf16> to vector<16x384xbf16>
    %34 = vector.extract_strided_slice %32 {offsets = [0, 384], sizes = [16, 384], strides = [1, 1]} : vector<16x768xbf16> to vector<16x384xbf16>
    %c0_21 = arith.constant 0 : index
    %c0_22 = arith.constant 0 : index
    %35 = vector.load %arg5[%c0_21, %c0_22] : memref<384x128xbf16, #tpu.memory_space<vmem>>, vector<384x128xbf16>
    %cst_23 = arith.constant dense<0.000000e+00> : vector<16x128xf32>
    %36 = tpu.matmul %33, %35, %cst_23 {dimension_numbers = #tpu.dot_dimension_numbers<[1], [0], [0], [1], [0, 0, 1, 1], [], []>} : vector<16x384xbf16>, vector<384x128xbf16>, vector<16x128xf32> -> vector<16x128xf32>
    %c4 = arith.constant 4 : index
    %c0_24 = arith.constant 0 : index
    %37 = vector.load %arg7[%c4, %c0_24] : memref<8x768xf32, #tpu.memory_space<vmem>>, vector<1x128xf32>
    %38 = vector.broadcast %37 : vector<1x128xf32> to vector<16x128xf32>
    %39 = arith.addf %36, %38 : vector<16x128xf32>
    %40 = arith.mulf %39, %39 : vector<16x128xf32>
    %cst_25 = arith.constant dense<0.000000e+00> : vector<16xf32>
    %41 = vector.multi_reduction <add>, %40, %cst_25 [1] : vector<16x128xf32> to vector<16xf32>
    %42 = vector.shape_cast %41 : vector<16xf32> to vector<16x1xf32>
    %43 = math.sqrt %42 : vector<16x1xf32>
    %cst_26 = arith.constant 9.99999996E-13 : f32
    %44 = vector.broadcast %cst_26 : f32 to vector<16x1xf32>
    %45 = arith.maximumf %43, %44 : vector<16x1xf32>
    %46 = vector.broadcast %45 : vector<16x1xf32> to vector<16x128xf32>
    %47 = arith.divf %39, %46 : vector<16x128xf32>
    %c0_27 = arith.constant 0 : index
    %c0_28 = arith.constant 0 : index
    %48 = vector.load %arg8[%c0_27, %c0_28] : memref<16x128xf32, #tpu.memory_space<vmem>>, vector<16x128xf32>
    tpu.vector_store %arg8[%c0_27, %c0_28], %47 {strides = array<i32>} : memref<16x128xf32, #tpu.memory_space<vmem>>, vector<16x128xf32>,
    %c0_29 = arith.constant 0 : index
    %c0_30 = arith.constant 0 : index
    %49 = vector.load %arg6[%c0_29, %c0_30] : memref<384x128xbf16, #tpu.memory_space<vmem>>, vector<384x128xbf16>
    %cst_31 = arith.constant dense<0.000000e+00> : vector<16x128xf32>
    %50 = tpu.matmul %34, %49, %cst_31 {dimension_numbers = #tpu.dot_dimension_numbers<[1], [0], [0], [1], [0, 0, 1, 1], [], []>} : vector<16x384xbf16>, vector<384x128xbf16>, vector<16x128xf32> -> vector<16x128xf32>
    %c5 = arith.constant 5 : index
    %c0_32 = arith.constant 0 : index
    %51 = vector.load %arg7[%c5, %c0_32] : memref<8x768xf32, #tpu.memory_space<vmem>>, vector<1x128xf32>
    %52 = vector.broadcast %51 : vector<1x128xf32> to vector<16x128xf32>
    %53 = arith.addf %50, %52 : vector<16x128xf32>
    %54 = tpu.iota {dimensions = array<i32: 1>} : vector<16x128xi32>
    %c10_i32 = arith.constant 10 : i32
    %55 = vector.broadcast %c10_i32 : i32 to vector<16x128xi32>
    %56 = arith.cmpi slt, %54, %55 : vector<16x128xi32>
    %cst_33 = arith.constant -1.000000e+30 : f32
    %57 = vector.broadcast %cst_33 : f32 to vector<16x128xf32>
    %58 = arith.select %56, %53, %57 : vector<16x128xi1>, vector<16x128xf32>
    %cst_34 = arith.constant dense<0xFF800000> : vector<16xf32>
    %59 = vector.multi_reduction <maximumf>, %58, %cst_34 [1] : vector<16x128xf32> to vector<16xf32>
    %60 = vector.shape_cast %59 : vector<16xf32> to vector<16x1xf32>
    %61 = vector.broadcast %60 : vector<16x1xf32> to vector<16x128xf32>
    %62 = arith.subf %58, %61 : vector<16x128xf32>
    %63 = math.exp %62 : vector<16x128xf32>
    %cst_35 = arith.constant dense<0.000000e+00> : vector<16xf32>
    %64 = vector.multi_reduction <add>, %63, %cst_35 [1] : vector<16x128xf32> to vector<16xf32>
    %65 = vector.shape_cast %64 : vector<16xf32> to vector<16x1xf32>
    %66 = vector.broadcast %65 : vector<16x1xf32> to vector<16x128xf32>
    %67 = arith.divf %63, %66 : vector<16x128xf32>
    %c0_36 = arith.constant 0 : index
    %c0_37 = arith.constant 0 : index
    %68 = vector.load %arg9[%c0_36, %c0_37] : memref<16x128xf32, #tpu.memory_space<vmem>>, vector<16x128xf32>
    tpu.vector_store %arg9[%c0_36, %c0_37], %67 {strides = array<i32>} : memref<16x128xf32, #tpu.memory_space<vmem>>, vector<16x128xf32>,
    return
  }
}

</mosaic_0001>

<llo_original>
// kernel: mlp_forward.1
$region0: #{mlp_forward.1}
  #allocation0 [shape = 'u32[]', space=smem, size = 0x4, offset = 0x4, fixed_abs, tag = 'smem constant byte address 0x4 - core index']
  #allocation1 [shape = 'u32[144,128]{1,0:T(1,128)}', space=vmem, size = 0x12000, scoped, tag = 'internal scratch']
  %s0 = inlined_call_operand.vmem [shape: bf16[16,896], index: 0, kind: input, shape index: {}]
  %s1 = inlined_call_operand.hbm [shape: bf16[896,512], index: 1, kind: input, shape index: {}]
  %s2 = inlined_call_operand.vmem [shape: bf16[512,512], index: 2, kind: input, shape index: {}]
  %s3 = inlined_call_operand.hbm [shape: bf16[512,384], index: 3, kind: input, shape index: {}]
  %s4 = inlined_call_operand.hbm [shape: bf16[384,768], index: 4, kind: input, shape index: {}]
  %s5 = inlined_call_operand.hbm [shape: bf16[384,128], index: 5, kind: input, shape index: {}]
  %s6 = inlined_call_operand.hbm [shape: bf16[384,128], index: 6, kind: input, shape index: {}]
  %s7 = inlined_call_operand.vmem [shape: f32[8,768], index: 7, kind: input, shape index: {}]
  %s8 = inlined_call_operand.vmem [shape: f32[16,128], index: 8, kind: output, shape index: {0}]
  %s9 = inlined_call_operand.vmem [shape: f32[16,128], index: 9, kind: output, shape index: {1}]
  %10 = xla_tuple %s8, %s9
  %s11 = sld [smem:[#allocation0]]
  $region70: #{mlp_forward.1} parent=0
    _
  %s13 = ssub.s32 1, %s11
  %s14 = scalar_select 0, %s13, %s11
  $region1: #{mlp_forward.1} parent=0
    #allocation2 [shape = 'u8[917504]{0}', space=vmem, size = 0xe0000, scoped, tag = 'input window, operand 1, single buffered']
    #allocation3 [shape = 's32[1]{0}', space=sflag, size = 0x4, scoped, tag = 'scoped memory for mlp_forward.1']
    #allocation4 [shape = 'u8[393216]{0}', space=vmem, size = 0x60000, scoped, tag = 'input window, operand 3, single buffered']
    #allocation5 [shape = 's32[1]{0}', space=sflag, size = 0x4, scoped, tag = 'scoped memory for mlp_forward.1']
    #allocation6 [shape = 'u8[589824]{0}', space=vmem, size = 0x90000, scoped, tag = 'input window, operand 4, single buffered']
    #allocation7 [shape = 'u8[98304]{0}', space=vmem, size = 0x18000, scoped, tag = 'input window, operand 5, single buffered']
    #allocation8 [shape = 's32[1]{0}', space=sflag, size = 0x4, scoped, tag = 'scoped memory for mlp_forward.1']
    #allocation9 [shape = 'u8[98304]{0}', space=vmem, size = 0x18000, scoped, tag = 'input window, operand 6, single buffered']
    %15 = vsyncpa [#allocation3], 0
    %16 = vsyncpa [#allocation5], 0
    %17 = vsyncpa [#allocation8], 0
    // Predicated region
    $region2: #{mlp_forward.1} parent=1 // pred_check
      _
    $region3: #{mlp_forward.1} parent=1 // pred_check_branch
      %19 = sbr.rel (0) target = $region5
    $region4: #{mlp_forward.1} parent=1 // pred_region
      _
    $region5: #{mlp_forward.1} parent=1 // pred_fallthru
      _
    // Predicated region
    $region6: #{mlp_forward.1} parent=1 // pred_check
      _
    $region7: #{mlp_forward.1} parent=1 // pred_check_branch
      %21 = sbr.rel (0) target = $region9
    $region8: #{mlp_forward.1} parent=1 // pred_region
      %s23 = ssub.s32 28672, 28672
      %24 = vsyncadd [#allocation3], %s23
      %s25 = sshll.u32 [#allocation2], 4
      %s26 = int_to_ptr.vmem [resolvable:$true] %s25
      %31 = dma.hbm_to_vmem [thread:$0]  %s1, 28672, %s26, [#allocation3], 256, 256, 16
    $region9: #{mlp_forward.1} parent=1 // pred_fallthru
      _
    // Predicated region
    $region10: #{mlp_forward.1} parent=1 // pred_check
      _
    $region11: #{mlp_forward.1} parent=1 // pred_check_branch
      %33 = sbr.rel (0) target = $region13
    $region12: #{mlp_forward.1} parent=1 // pred_region
      _
    $region13: #{mlp_forward.1} parent=1 // pred_fallthru
      _
    // Predicated region
    $region14: #{mlp_forward.1} parent=1 // pred_check
      _
    $region15: #{mlp_forward.1} parent=1 // pred_check_branch
      %35 = sbr.rel (0) target = $region17
    $region16: #{mlp_forward.1} parent=1 // pred_region
      %s37 = ssub.s32 12288, 12288
      %38 = vsyncadd [#allocation5], %s37
      %s39 = sshll.u32 [#allocation4], 4
      %s40 = int_to_ptr.vmem [resolvable:$true] %s39
      %45 = dma.hbm_to_vmem [thread:$0]  %s3, 12288, %s40, [#allocation5], 192, 192, 12
    $region17: #{mlp_forward.1} parent=1 // pred_fallthru
      _
    // Predicated region
    $region18: #{mlp_forward.1} parent=1 // pred_check
      _
    $region19: #{mlp_forward.1} parent=1 // pred_check_branch
      %47 = sbr.rel (0) target = $region21
    $region20: #{mlp_forward.1} parent=1 // pred_region
      %s49 = ssub.s32 18432, 18432
      %50 = vsyncadd [#allocation5], %s49
      %s51 = sshll.u32 [#allocation6], 4
      %s52 = int_to_ptr.vmem [resolvable:$true] %s51
      %57 = dma.hbm_to_vmem [thread:$0]  %s4, 18432, %s52, [#allocation5], 384, 384, 24
    $region21: #{mlp_forward.1} parent=1 // pred_fallthru
      _
    // Predicated region
    $region22: #{mlp_forward.1} parent=1 // pred_check
      _
    $region23: #{mlp_forward.1} parent=1 // pred_check_branch
      %59 = sbr.rel (0) target = $region25
    $region24: #{mlp_forward.1} parent=1 // pred_region
      %s61 = ssub.s32 3072, 3072
      %62 = vsyncadd [#allocation8], %s61
      %s63 = sshll.u32 [#allocation7], 4
      %s64 = int_to_ptr.vmem [resolvable:$true] %s63
      %69 = dma.hbm_to_vmem [thread:$0]  %s5, 3072, %s64, [#allocation8], 64, 64, 4
    $region25: #{mlp_forward.1} parent=1 // pred_fallthru
      _
    // Predicated region
    $region26: #{mlp_forward.1} parent=1 // pred_check
      _
    $region27: #{mlp_forward.1} parent=1 // pred_check_branch
      %71 = sbr.rel (0) target = $region29
    $region28: #{mlp_forward.1} parent=1 // pred_region
      %s73 = ssub.s32 3072, 3072
      %74 = vsyncadd [#allocation8], %s73
      %s75 = sshll.u32 [#allocation9], 4
      %s76 = int_to_ptr.vmem [resolvable:$true] %s75
      %81 = dma.hbm_to_vmem [thread:$0]  %s6, 3072, %s76, [#allocation8], 64, 64, 4
    $region29: #{mlp_forward.1} parent=1 // pred_fallthru
      _
    // Predicated region
    $region30: #{mlp_forward.1} parent=1 // pred_check
      _
    $region31: #{mlp_forward.1} parent=1 // pred_check_branch
      %83 = sbr.rel (0) target = $region33
    $region32: #{mlp_forward.1} parent=1 // pred_region
      _
    $region33: #{mlp_forward.1} parent=1 // pred_fallthru
      _
    // Predicated region
    $region34: #{mlp_forward.1} parent=1 // pred_check
      _
    $region35: #{mlp_forward.1} parent=1 // pred_check_branch
      %85 = sbr.rel (0) target = $region37
    $region36: #{mlp_forward.1} parent=1 // pred_region
      %86 = dma.done [#allocation3], 28672
    $region37: #{mlp_forward.1} parent=1 // pred_fallthru
      _
    // Predicated region
    $region38: #{mlp_forward.1} parent=1 // pred_check
      _
    $region39: #{mlp_forward.1} parent=1 // pred_check_branch
      %88 = sbr.rel (0) target = $region41
    $region40: #{mlp_forward.1} parent=1 // pred_region
      %89 = dma.done [#allocation5], 12288
    $region41: #{mlp_forward.1} parent=1 // pred_fallthru
      _
    // Predicated region
    $region42: #{mlp_forward.1} parent=1 // pred_check
      _
    $region43: #{mlp_forward.1} parent=1 // pred_check_branch
      %91 = sbr.rel (0) target = $region45
    $region44: #{mlp_forward.1} parent=1 // pred_region
      %92 = dma.done [#allocation5], 18432
    $region45: #{mlp_forward.1} parent=1 // pred_fallthru
      _
    // Predicated region
    $region46: #{mlp_forward.1} parent=1 // pred_check
      _
    $region47: #{mlp_forward.1} parent=1 // pred_check_branch
      %94 = sbr.rel (0) target = $region49
    $region48: #{mlp_forward.1} parent=1 // pred_region
      %95 = dma.done [#allocation8], 3072
    $region49: #{mlp_forward.1} parent=1 // pred_fallthru
      _
    // Predicated region
    $region50: #{mlp_forward.1} parent=1 // pred_check
      _
    $region51: #{mlp_forward.1} parent=1 // pred_check_branch
      %97 = sbr.rel (0) target = $region53
    $region52: #{mlp_forward.1} parent=1 // pred_region
      %98 = dma.done [#allocation8], 3072
    $region53: #{mlp_forward.1} parent=1 // pred_fallthru
      _
    %v100 = vld [vmem:[%s0] sm:$0xff]
    %v101 = vld [vmem:[%s0 + $0x8] sm:$0xff]
    %v102 = vld [vmem:[%s0 + $0x10] sm:$0xff]
    %v103 = vld [vmem:[%s0 + $0x18] sm:$0xf]
    %v104 = vld [vmem:[%s0 + $0x1c] sm:$0xff]
    %v105 = vld [vmem:[%s0 + $0x24] sm:$0xff]
    %v106 = vld [vmem:[%s0 + $0x2c] sm:$0xff]
    %v107 = vld [vmem:[%s0 + $0x34] sm:$0xf]
    %v108 = vld [vmem:[#allocation2] sm:$0xff]
    %v109 = vld [vmem:[#allocation2 + $0x8] sm:$0xff]
    %v110 = vld [vmem:[#allocation2 + $0x10] sm:$0xff]
    %v111 = vld [vmem:[#allocation2 + $0x18] sm:$0xff]
    %v112 = vld [vmem:[#allocation2 + $0x20] sm:$0xff]
    %v113 = vld [vmem:[#allocation2 + $0x28] sm:$0xff]
    %v114 = vld [vmem:[#allocation2 + $0x30] sm:$0xff]
    %v115 = vld [vmem:[#allocation2 + $0x38] sm:$0xff]
    %v116 = vld [vmem:[#allocation2 + $0x40] sm:$0xff]
    %v117 = vld [vmem:[#allocation2 + $0x48] sm:$0xff]
    %v118 = vld [vmem:[#allocation2 + $0x50] sm:$0xff]
    %v119 = vld [vmem:[#allocation2 + $0x58] sm:$0xff]
    %v120 = vld [vmem:[#allocation2 + $0x60] sm:$0xff]
    %v121 = vld [vmem:[#allocation2 + $0x68] sm:$0xff]
    %v122 = vld [vmem:[#allocation2 + $0x70] sm:$0xff]
    %v123 = vld [vmem:[#allocation2 + $0x78] sm:$0xff]
    %v124 = vld [vmem:[#allocation2 + $0x80] sm:$0xff]
    %v125 = vld [vmem:[#allocation2 + $0x88] sm:$0xff]
    %v126 = vld [vmem:[#allocation2 + $0x90] sm:$0xff]
    %v127 = vld [vmem:[#allocation2 + $0x98] sm:$0xff]
    %v128 = vld [vmem:[#allocation2 + $0xa0] sm:$0xff]
    %v129 = vld [vmem:[#allocation2 + $0xa8] sm:$0xff]
    %v130 = vld [vmem:[#allocation2 + $0xb0] sm:$0xff]
    %v131 = vld [vmem:[#allocation2 + $0xb8] sm:$0xff]
    %v132 = vld [vmem:[#allocation2 + $0xc0] sm:$0xff]
    %v133 = vld [vmem:[#allocation2 + $0xc8] sm:$0xff]
    %v134 = vld [vmem:[#allocation2 + $0xd0] sm:$0xff]
    %v135 = vld [vmem:[#allocation2 + $0xd8] sm:$0xff]
    %v136 = vld [vmem:[#allocation2 + $0xe0] sm:$0xff]
    %v137 = vld [vmem:[#allocation2 + $0xe8] sm:$0xff]
    %v138 = vld [vmem:[#allocation2 + $0xf0] sm:$0xff]
    %v139 = vld [vmem:[#allocation2 + $0xf8] sm:$0xff]
    %v140 = vld [vmem:[#allocation2 + $0x100] sm:$0xff]
    %v141 = vld [vmem:[#allocation2 + $0x108] sm:$0xff]
    %v142 = vld [vmem:[#allocation2 + $0x110] sm:$0xff]
    %v143 = vld [vmem:[#allocation2 + $0x118] sm:$0xff]
    %v144 = vld [vmem:[#allocation2 + $0x120] sm:$0xff]
    %v145 = vld [vmem:[#allocation2 + $0x128] sm:$0xff]
    %v146 = vld [vmem:[#allocation2 + $0x130] sm:$0xff]
    %v147 = vld [vmem:[#allocation2 + $0x138] sm:$0xff]
    %v148 = vld [vmem:[#allocation2 + $0x140] sm:$0xff]
    %v149 = vld [vmem:[#allocation2 + $0x148] sm:$0xff]
    %v150 = vld [vmem:[#allocation2 + $0x150] sm:$0xff]
    %v151 = vld [vmem:[#allocation2 + $0x158] sm:$0xff]
    %v152 = vld [vmem:[#allocation2 + $0x160] sm:$0xff]
    %v153 = vld [vmem:[#allocation2 + $0x168] sm:$0xff]
    %v154 = vld [vmem:[#allocation2 + $0x170] sm:$0xff]
    %v155 = vld [vmem:[#allocation2 + $0x178] sm:$0xff]
    %v156 = vld [vmem:[#allocation2 + $0x180] sm:$0xff]
    %v157 = vld [vmem:[#allocation2 + $0x188] sm:$0xff]
    %v158 = vld [vmem:[#allocation2 + $0x190] sm:$0xff]
    %v159 = vld [vmem:[#allocation2 + $0x198] sm:$0xff]
    %v160 = vld [vmem:[#allocation2 + $0x1a0] sm:$0xff]
    %v161 = vld [vmem:[#allocation2 + $0x1a8] sm:$0xff]
    %v162 = vld [vmem:[#allocation2 + $0x1b0] sm:$0xff]
    %v163 = vld [vmem:[#allocation2 + $0x1b8] sm:$0xff]
    %v164 = vld [vmem:[#allocation2 + $0x1c0] sm:$0xff]
    %v165 = vld [vmem:[#allocation2 + $0x1c8] sm:$0xff]
    %v166 = vld [vmem:[#allocation2 + $0x1d0] sm:$0xff]
    %v167 = vld [vmem:[#allocation2 + $0x1d8] sm:$0xff]
    %v168 = vld [vmem:[#allocation2 + $0x1e0] sm:$0xff]
    %v169 = vld [vmem:[#allocation2 + $0x1e8] sm:$0xff]
    %v170 = vld [vmem:[#allocation2 + $0x1f0] sm:$0xff]
    %v171 = vld [vmem:[#allocation2 + $0x1f8] sm:$0xff]
    %v172 = vld [vmem:[#allocation2 + $0x200] sm:$0xff]
    %v173 = vld [vmem:[#allocation2 + $0x208] sm:$0xff]
    %v174 = vld [vmem:[#allocation2 + $0x210] sm:$0xff]
    %v175 = vld [vmem:[#allocation2 + $0x218] sm:$0xff]
    %v176 = vld [vmem:[#allocation2 + $0x220] sm:$0xff]
    %v177 = vld [vmem:[#allocation2 + $0x228] sm:$0xff]
    %v178 = vld [vmem:[#allocation2 + $0x230] sm:$0xff]
    %v179 = vld [vmem:[#allocation2 + $0x238] sm:$0xff]
    %v180 = vld [vmem:[#allocation2 + $0x240] sm:$0xff]
    %v181 = vld [vmem:[#allocation2 + $0x248] sm:$0xff]
    %v182 = vld [vmem:[#allocation2 + $0x250] sm:$0xff]
    %v183 = vld [vmem:[#allocation2 + $0x258] sm:$0xff]
    %v184 = vld [vmem:[#allocation2 + $0x260] sm:$0xff]
    %v185 = vld [vmem:[#allocation2 + $0x268] sm:$0xff]
    %v186 = vld [vmem:[#allocation2 + $0x270] sm:$0xff]
    %v187 = vld [vmem:[#allocation2 + $0x278] sm:$0xff]
    %v188 = vld [vmem:[#allocation2 + $0x280] sm:$0xff]
    %v189 = vld [vmem:[#allocation2 + $0x288] sm:$0xff]
    %v190 = vld [vmem:[#allocation2 + $0x290] sm:$0xff]
    %v191 = vld [vmem:[#allocation2 + $0x298] sm:$0xff]
    %v192 = vld [vmem:[#allocation2 + $0x2a0] sm:$0xff]
    %v193 = vld [vmem:[#allocation2 + $0x2a8] sm:$0xff]
    %v194 = vld [vmem:[#allocation2 + $0x2b0] sm:$0xff]
    %v195 = vld [vmem:[#allocation2 + $0x2b8] sm:$0xff]
    %v196 = vld [vmem:[#allocation2 + $0x2c0] sm:$0xff]
    %v197 = vld [vmem:[#allocation2 + $0x2c8] sm:$0xff]
    %v198 = vld [vmem:[#allocation2 + $0x2d0] sm:$0xff]
    %v199 = vld [vmem:[#allocation2 + $0x2d8] sm:$0xff]
    %v200 = vld [vmem:[#allocation2 + $0x2e0] sm:$0xff]
    %v201 = vld [vmem:[#allocation2 + $0x2e8] sm:$0xff]
    %v202 = vld [vmem:[#allocation2 + $0x2f0] sm:$0xff]
    %v203 = vld [vmem:[#allocation2 + $0x2f8] sm:$0xff]
    %v204 = vld [vmem:[#allocation2 + $0x300] sm:$0xff]
    %v205 = vld [vmem:[#allocation2 + $0x308] sm:$0xff]
    %v206 = vld [vmem:[#allocation2 + $0x310] sm:$0xff]
    %v207 = vld [vmem:[#allocation2 + $0x318] sm:$0xff]
    %v208 = vld [vmem:[#allocation2 + $0x320] sm:$0xff]
    %v209 = vld [vmem:[#allocation2 + $0x328] sm:$0xff]
    %v210 = vld [vmem:[#allocation2 + $0x330] sm:$0xff]
    %v211 = vld [vmem:[#allocation2 + $0x338] sm:$0xff]
    %v212 = vld [vmem:[#allocation2 + $0x340] sm:$0xff]
    %v213 = vld [vmem:[#allocation2 + $0x348] sm:$0xff]
    %v214 = vld [vmem:[#allocation2 + $0x350] sm:$0xff]
    %v215 = vld [vmem:[#allocation2 + $0x358] sm:$0xff]
    %v216 = vld [vmem:[#allocation2 + $0x360] sm:$0xff]
    %v217 = vld [vmem:[#allocation2 + $0x368] sm:$0xff]
    %v218 = vld [vmem:[#allocation2 + $0x370] sm:$0xff]
    %v219 = vld [vmem:[#allocation2 + $0x378] sm:$0xff]
    %v220 = vld [vmem:[#allocation2 + $0x380] sm:$0xff]
    %v221 = vld [vmem:[#allocation2 + $0x388] sm:$0xff]
    %v222 = vld [vmem:[#allocation2 + $0x390] sm:$0xff]
    %v223 = vld [vmem:[#allocation2 + $0x398] sm:$0xff]
    %v224 = vld [vmem:[#allocation2 + $0x3a0] sm:$0xff]
    %v225 = vld [vmem:[#allocation2 + $0x3a8] sm:$0xff]
    %v226 = vld [vmem:[#allocation2 + $0x3b0] sm:$0xff]
    %v227 = vld [vmem:[#allocation2 + $0x3b8] sm:$0xff]
    %v228 = vld [vmem:[#allocation2 + $0x3c0] sm:$0xff]
    %v229 = vld [vmem:[#allocation2 + $0x3c8] sm:$0xff]
    %v230 = vld [vmem:[#allocation2 + $0x3d0] sm:$0xff]
    %v231 = vld [vmem:[#allocation2 + $0x3d8] sm:$0xff]
    %v232 = vld [vmem:[#allocation2 + $0x3e0] sm:$0xff]
    %v233 = vld [vmem:[#allocation2 + $0x3e8] sm:$0xff]
    %v234 = vld [vmem:[#allocation2 + $0x3f0] sm:$0xff]
    %v235 = vld [vmem:[#allocation2 + $0x3f8] sm:$0xff]
    %v236 = vld [vmem:[#allocation2 + $0x400] sm:$0xff]
    %v237 = vld [vmem:[#allocation2 + $0x408] sm:$0xff]
    %v238 = vld [vmem:[#allocation2 + $0x410] sm:$0xff]
    %v239 = vld [vmem:[#allocation2 + $0x418] sm:$0xff]
    %v240 = vld [vmem:[#allocation2 + $0x420] sm:$0xff]
    %v241 = vld [vmem:[#allocation2 + $0x428] sm:$0xff]
    %v242 = vld [vmem:[#allocation2 + $0x430] sm:$0xff]
    %v243 = vld [vmem:[#allocation2 + $0x438] sm:$0xff]
    %v244 = vld [vmem:[#allocation2 + $0x440] sm:$0xff]
    %v245 = vld [vmem:[#allocation2 + $0x448] sm:$0xff]
    %v246 = vld [vmem:[#allocation2 + $0x450] sm:$0xff]
    %v247 = vld [vmem:[#allocation2 + $0x458] sm:$0xff]
    %v248 = vld [vmem:[#allocation2 + $0x460] sm:$0xff]
    %v249 = vld [vmem:[#allocation2 + $0x468] sm:$0xff]
    %v250 = vld [vmem:[#allocation2 + $0x470] sm:$0xff]
    %v251 = vld [vmem:[#allocation2 + $0x478] sm:$0xff]
    %v252 = vld [vmem:[#allocation2 + $0x480] sm:$0xff]
    %v253 = vld [vmem:[#allocation2 + $0x488] sm:$0xff]
    %v254 = vld [vmem:[#allocation2 + $0x490] sm:$0xff]
    %v255 = vld [vmem:[#allocation2 + $0x498] sm:$0xff]
    %v256 = vld [vmem:[#allocation2 + $0x4a0] sm:$0xff]
    %v257 = vld [vmem:[#allocation2 + $0x4a8] sm:$0xff]
    %v258 = vld [vmem:[#allocation2 + $0x4b0] sm:$0xff]
    %v259 = vld [vmem:[#allocation2 + $0x4b8] sm:$0xff]
    %v260 = vld [vmem:[#allocation2 + $0x4c0] sm:$0xff]
    %v261 = vld [vmem:[#allocation2 + $0x4c8] sm:$0xff]
    %v262 = vld [vmem:[#allocation2 + $0x4d0] sm:$0xff]
    %v263 = vld [vmem:[#allocation2 + $0x4d8] sm:$0xff]
    %v264 = vld [vmem:[#allocation2 + $0x4e0] sm:$0xff]
    %v265 = vld [vmem:[#allocation2 + $0x4e8] sm:$0xff]
    %v266 = vld [vmem:[#allocation2 + $0x4f0] sm:$0xff]
    %v267 = vld [vmem:[#allocation2 + $0x4f8] sm:$0xff]
    %v268 = vld [vmem:[#allocation2 + $0x500] sm:$0xff]
    %v269 = vld [vmem:[#allocation2 + $0x508] sm:$0xff]
    %v270 = vld [vmem:[#allocation2 + $0x510] sm:$0xff]
    %v271 = vld [vmem:[#allocation2 + $0x518] sm:$0xff]
    %v272 = vld [vmem:[#allocation2 + $0x520] sm:$0xff]
    %v273 = vld [vmem:[#allocation2 + $0x528] sm:$0xff]
    %v274 = vld [vmem:[#allocation2 + $0x530] sm:$0xff]
    %v275 = vld [vmem:[#allocation2 + $0x538] sm:$0xff]
    %v276 = vld [vmem:[#allocation2 + $0x540] sm:$0xff]
    %v277 = vld [vmem:[#allocation2 + $0x548] sm:$0xff]
    %v278 = vld [vmem:[#allocation2 + $0x550] sm:$0xff]
    %v279 = vld [vmem:[#allocation2 + $0x558] sm:$0xff]
    %v280 = vld [vmem:[#allocation2 + $0x560] sm:$0xff]
    %v281 = vld [vmem:[#allocation2 + $0x568] sm:$0xff]
    %v282 = vld [vmem:[#allocation2 + $0x570] sm:$0xff]
    %v283 = vld [vmem:[#allocation2 + $0x578] sm:$0xff]
    %v284 = vld [vmem:[#allocation2 + $0x580] sm:$0xff]
    %v285 = vld [vmem:[#allocation2 + $0x588] sm:$0xff]
    %v286 = vld [vmem:[#allocation2 + $0x590] sm:$0xff]
    %v287 = vld [vmem:[#allocation2 + $0x598] sm:$0xff]
    %v288 = vld [vmem:[#allocation2 + $0x5a0] sm:$0xff]
    %v289 = vld [vmem:[#allocation2 + $0x5a8] sm:$0xff]
    %v290 = vld [vmem:[#allocation2 + $0x5b0] sm:$0xff]
    %v291 = vld [vmem:[#allocation2 + $0x5b8] sm:$0xff]
    %v292 = vld [vmem:[#allocation2 + $0x5c0] sm:$0xff]
    %v293 = vld [vmem:[#allocation2 + $0x5c8] sm:$0xff]
    %v294 = vld [vmem:[#allocation2 + $0x5d0] sm:$0xff]
    %v295 = vld [vmem:[#allocation2 + $0x5d8] sm:$0xff]
    %v296 = vld [vmem:[#allocation2 + $0x5e0] sm:$0xff]
    %v297 = vld [vmem:[#allocation2 + $0x5e8] sm:$0xff]
    %v298 = vld [vmem:[#allocation2 + $0x5f0] sm:$0xff]
    %v299 = vld [vmem:[#allocation2 + $0x5f8] sm:$0xff]
    %v300 = vld [vmem:[#allocation2 + $0x600] sm:$0xff]
    %v301 = vld [vmem:[#allocation2 + $0x608] sm:$0xff]
    %v302 = vld [vmem:[#allocation2 + $0x610] sm:$0xff]
    %v303 = vld [vmem:[#allocation2 + $0x618] sm:$0xff]
    %v304 = vld [vmem:[#allocation2 + $0x620] sm:$0xff]
    %v305 = vld [vmem:[#allocation2 + $0x628] sm:$0xff]
    %v306 = vld [vmem:[#allocation2 + $0x630] sm:$0xff]
    %v307 = vld [vmem:[#allocation2 + $0x638] sm:$0xff]
    %v308 = vld [vmem:[#allocation2 + $0x640] sm:$0xff]
    %v309 = vld [vmem:[#allocation2 + $0x648] sm:$0xff]
    %v310 = vld [vmem:[#allocation2 + $0x650] sm:$0xff]
    %v311 = vld [vmem:[#allocation2 + $0x658] sm:$0xff]
    %v312 = vld [vmem:[#allocation2 + $0x660] sm:$0xff]
    %v313 = vld [vmem:[#allocation2 + $0x668] sm:$0xff]
    %v314 = vld [vmem:[#allocation2 + $0x670] sm:$0xff]
    %v315 = vld [vmem:[#allocation2 + $0x678] sm:$0xff]
    %v316 = vld [vmem:[#allocation2 + $0x680] sm:$0xff]
    %v317 = vld [vmem:[#allocation2 + $0x688] sm:$0xff]
    %v318 = vld [vmem:[#allocation2 + $0x690] sm:$0xff]
    %v319 = vld [vmem:[#allocation2 + $0x698] sm:$0xff]
    %v320 = vld [vmem:[#allocation2 + $0x6a0] sm:$0xff]
    %v321 = vld [vmem:[#allocation2 + $0x6a8] sm:$0xff]
    %v322 = vld [vmem:[#allocation2 + $0x6b0] sm:$0xff]
    %v323 = vld [vmem:[#allocation2 + $0x6b8] sm:$0xff]
    %v324 = vld [vmem:[#allocation2 + $0x6c0] sm:$0xff]
    %v325 = vld [vmem:[#allocation2 + $0x6c8] sm:$0xff]
    %v326 = vld [vmem:[#allocation2 + $0x6d0] sm:$0xff]
    %v327 = vld [vmem:[#allocation2 + $0x6d8] sm:$0xff]
    %v328 = vld [vmem:[#allocation2 + $0x6e0] sm:$0xff]
    %v329 = vld [vmem:[#allocation2 + $0x6e8] sm:$0xff]
    %v330 = vld [vmem:[#allocation2 + $0x6f0] sm:$0xff]
    %v331 = vld [vmem:[#allocation2 + $0x6f8] sm:$0xff]
    %v332 = vld [vmem:[%s7] ss:$8 sm:$0xf]
    %v334 = vlaneseq
    %v335 = vshrl.u32 %v334, 7
    %v336 = vsub.s32 0, %v335
    %v337 = vrot.slane %v332, %v336
    %v338 = vlaneseq
    %v339 = vshrl.u32 %v338, 7
    %v340 = vsub.s32 1, %v339
    %v341 = vrot.slane %v332, %v340
    %v342 = vlaneseq
    %v343 = vshrl.u32 %v342, 7
    %v344 = vsub.s32 2, %v343
    %v345 = vrot.slane %v332, %v344
    %v346 = vlaneseq
    %v347 = vshrl.u32 %v346, 7
    %v348 = vsub.s32 3, %v347
    %v349 = vrot.slane %v332, %v348
    %v362 = vunpack.c.l.b16 %v100
    %v363 = vunpack.c.h.b16 %v100
    %v364 = vunpack.c.l.b16 %v101
    %v365 = vunpack.c.h.b16 %v101
    %v366 = vunpack.c.l.b16 %v102
    %v367 = vunpack.c.h.b16 %v102
    %v368 = vunpack.c.l.b16 %v103
    %v369 = vunpack.c.l.b16 %v104
    %v370 = vunpack.c.h.b16 %v104
    %v371 = vunpack.c.l.b16 %v105
    %v372 = vunpack.c.h.b16 %v105
    %v373 = vunpack.c.l.b16 %v106
    %v374 = vunpack.c.h.b16 %v106
    %v375 = vunpack.c.l.b16 %v107
    %v376 = vpack.c.b16 %v369, %v362
    %v377 = vpack.c.b16 %v370, %v363
    %v378 = vpack.c.b16 %v371, %v364
    %v379 = vpack.c.b16 %v372, %v365
    %v380 = vpack.c.b16 %v373, %v366
    %v381 = vpack.c.b16 %v374, %v367
    %v382 = vpack.c.b16 %v375, %v368
    %v614 = vunpack.c.l.b16 %v108
    %v615 = vunpack.c.h.b16 %v108
    %v616 = vunpack.c.l.b16 %v109
    %v617 = vunpack.c.h.b16 %v109
    %v618 = vunpack.c.l.b16 %v110
    %v619 = vunpack.c.h.b16 %v110
    %v620 = vunpack.c.l.b16 %v111
    %v621 = vunpack.c.h.b16 %v111
    %v622 = vunpack.c.l.b16 %v112
    %v623 = vunpack.c.h.b16 %v112
    %v624 = vunpack.c.l.b16 %v113
    %v625 = vunpack.c.h.b16 %v113
    %v626 = vunpack.c.l.b16 %v114
    %v627 = vunpack.c.h.b16 %v114
    %v628 = vunpack.c.l.b16 %v115
    %v629 = vunpack.c.h.b16 %v115
    %v630 = vunpack.c.l.b16 %v116
    %v631 = vunpack.c.h.b16 %v116
    %v632 = vunpack.c.l.b16 %v117
    %v633 = vunpack.c.h.b16 %v117
    %v634 = vunpack.c.l.b16 %v118
    %v635 = vunpack.c.h.b16 %v118
    %v636 = vunpack.c.l.b16 %v119
    %v637 = vunpack.c.h.b16 %v119
    %v638 = vunpack.c.l.b16 %v120
    %v639 = vunpack.c.h.b16 %v120
    %v640 = vunpack.c.l.b16 %v121
    %v641 = vunpack.c.h.b16 %v121
    %v642 = vunpack.c.l.b16 %v122
    %v643 = vunpack.c.h.b16 %v122
    %v644 = vunpack.c.l.b16 %v123
    %v645 = vunpack.c.h.b16 %v123
    %v646 = vunpack.c.l.b16 %v124
    %v647 = vunpack.c.h.b16 %v124
    %v648 = vunpack.c.l.b16 %v125
    %v649 = vunpack.c.h.b16 %v125
    %v650 = vunpack.c.l.b16 %v126
    %v651 = vunpack.c.h.b16 %v126
    %v652 = vunpack.c.l.b16 %v127
    %v653 = vunpack.c.h.b16 %v127
    %v654 = vunpack.c.l.b16 %v128
    %v655 = vunpack.c.h.b16 %v128
    %v656 = vunpack.c.l.b16 %v129
    %v657 = vunpack.c.h.b16 %v129
    %v658 = vunpack.c.l.b16 %v130
    %v659 = vunpack.c.h.b16 %v130
    %v660 = vunpack.c.l.b16 %v131
    %v661 = vunpack.c.h.b16 %v131
    %v662 = vunpack.c.l.b16 %v132
    %v663 = vunpack.c.h.b16 %v132
    %v664 = vunpack.c.l.b16 %v133
    %v665 = vunpack.c.h.b16 %v133
    %v666 = vunpack.c.l.b16 %v134
    %v667 = vunpack.c.h.b16 %v134
    %v668 = vunpack.c.l.b16 %v135
    %v669 = vunpack.c.h.b16 %v135
    %v670 = vunpack.c.l.b16 %v136
    %v671 = vunpack.c.h.b16 %v136
    %v672 = vunpack.c.l.b16 %v137
    %v673 = vunpack.c.h.b16 %v137
    %v674 = vunpack.c.l.b16 %v138
    %v675 = vunpack.c.h.b16 %v138
    %v676 = vunpack.c.l.b16 %v139
    %v677 = vunpack.c.h.b16 %v139
    %v678 = vunpack.c.l.b16 %v140
    %v679 = vunpack.c.h.b16 %v140
    %v680 = vunpack.c.l.b16 %v141
    %v681 = vunpack.c.h.b16 %v141
    %v682 = vunpack.c.l.b16 %v142
    %v683 = vunpack.c.h.b16 %v142
    %v684 = vunpack.c.l.b16 %v143
    %v685 = vunpack.c.h.b16 %v143
    %v686 = vunpack.c.l.b16 %v144
    %v687 = vunpack.c.h.b16 %v144
    %v688 = vunpack.c.l.b16 %v145
    %v689 = vunpack.c.h.b16 %v145
    %v690 = vunpack.c.l.b16 %v146
    %v691 = vunpack.c.h.b16 %v146
    %v692 = vunpack.c.l.b16 %v147
    %v693 = vunpack.c.h.b16 %v147
    %v694 = vunpack.c.l.b16 %v148
    %v695 = vunpack.c.h.b16 %v148
    %v696 = vunpack.c.l.b16 %v149
    %v697 = vunpack.c.h.b16 %v149
    %v698 = vunpack.c.l.b16 %v150
    %v699 = vunpack.c.h.b16 %v150
    %v700 = vunpack.c.l.b16 %v151
    %v701 = vunpack.c.h.b16 %v151
    %v702 = vunpack.c.l.b16 %v152
    %v703 = vunpack.c.h.b16 %v152
    %v704 = vunpack.c.l.b16 %v153
    %v705 = vunpack.c.h.b16 %v153
    %v706 = vunpack.c.l.b16 %v154
    %v707 = vunpack.c.h.b16 %v154
    %v708 = vunpack.c.l.b16 %v155
    %v709 = vunpack.c.h.b16 %v155
    %v710 = vunpack.c.l.b16 %v156
    %v711 = vunpack.c.h.b16 %v156
    %v712 = vunpack.c.l.b16 %v157
    %v713 = vunpack.c.h.b16 %v157
    %v714 = vunpack.c.l.b16 %v158
    %v715 = vunpack.c.h.b16 %v158
    %v716 = vunpack.c.l.b16 %v159
    %v717 = vunpack.c.h.b16 %v159
    %v718 = vunpack.c.l.b16 %v160
    %v719 = vunpack.c.h.b16 %v160
    %v720 = vunpack.c.l.b16 %v161
    %v721 = vunpack.c.h.b16 %v161
    %v722 = vunpack.c.l.b16 %v162
    %v723 = vunpack.c.h.b16 %v162
    %v724 = vunpack.c.l.b16 %v163
    %v725 = vunpack.c.h.b16 %v163
    %v726 = vunpack.c.l.b16 %v164
    %v727 = vunpack.c.h.b16 %v164
    %v728 = vunpack.c.l.b16 %v165
    %v729 = vunpack.c.h.b16 %v165
    %v730 = vunpack.c.l.b16 %v166
    %v731 = vunpack.c.h.b16 %v166
    %v732 = vunpack.c.l.b16 %v167
    %v733 = vunpack.c.h.b16 %v167
    %v734 = vunpack.c.l.b16 %v168
    %v735 = vunpack.c.h.b16 %v168
    %v736 = vunpack.c.l.b16 %v169
    %v737 = vunpack.c.h.b16 %v169
    %v738 = vunpack.c.l.b16 %v170
    %v739 = vunpack.c.h.b16 %v170
    %v740 = vunpack.c.l.b16 %v171
    %v741 = vunpack.c.h.b16 %v171
    %v742 = vunpack.c.l.b16 %v172
    %v743 = vunpack.c.h.b16 %v172
    %v744 = vunpack.c.l.b16 %v173
    %v745 = vunpack.c.h.b16 %v173
    %v746 = vunpack.c.l.b16 %v174
    %v747 = vunpack.c.h.b16 %v174
    %v748 = vunpack.c.l.b16 %v175
    %v749 = vunpack.c.h.b16 %v175
    %v750 = vunpack.c.l.b16 %v176
    %v751 = vunpack.c.h.b16 %v176
    %v752 = vunpack.c.l.b16 %v177
    %v753 = vunpack.c.h.b16 %v177
    %v754 = vunpack.c.l.b16 %v178
    %v755 = vunpack.c.h.b16 %v178
    %v756 = vunpack.c.l.b16 %v179
    %v757 = vunpack.c.h.b16 %v179
    %v758 = vunpack.c.l.b16 %v180
    %v759 = vunpack.c.h.b16 %v180
    %v760 = vunpack.c.l.b16 %v181
    %v761 = vunpack.c.h.b16 %v181
    %v762 = vunpack.c.l.b16 %v182
    %v763 = vunpack.c.h.b16 %v182
    %v764 = vunpack.c.l.b16 %v183
    %v765 = vunpack.c.h.b16 %v183
    %v766 = vunpack.c.l.b16 %v184
    %v767 = vunpack.c.h.b16 %v184
    %v768 = vunpack.c.l.b16 %v185
    %v769 = vunpack.c.h.b16 %v185
    %v770 = vunpack.c.l.b16 %v186
    %v771 = vunpack.c.h.b16 %v186
    %v772 = vunpack.c.l.b16 %v187
    %v773 = vunpack.c.h.b16 %v187
    %v774 = vunpack.c.l.b16 %v188
    %v775 = vunpack.c.h.b16 %v188
    %v776 = vunpack.c.l.b16 %v189
    %v777 = vunpack.c.h.b16 %v189
    %v778 = vunpack.c.l.b16 %v190
    %v779 = vunpack.c.h.b16 %v190
    %v780 = vunpack.c.l.b16 %v191
    %v781 = vunpack.c.h.b16 %v191
    %v782 = vunpack.c.l.b16 %v192
    %v783 = vunpack.c.h.b16 %v192
    %v784 = vunpack.c.l.b16 %v193
    %v785 = vunpack.c.h.b16 %v193
    %v786 = vunpack.c.l.b16 %v194
    %v787 = vunpack.c.h.b16 %v194
    %v788 = vunpack.c.l.b16 %v195
    %v789 = vunpack.c.h.b16 %v195
    %v790 = vunpack.c.l.b16 %v196
    %v791 = vunpack.c.h.b16 %v196
    %v792 = vunpack.c.l.b16 %v197
    %v793 = vunpack.c.h.b16 %v197
    %v794 = vunpack.c.l.b16 %v198
    %v795 = vunpack.c.h.b16 %v198
    %v796 = vunpack.c.l.b16 %v199
    %v797 = vunpack.c.h.b16 %v199
    %v798 = vunpack.c.l.b16 %v200
    %v799 = vunpack.c.h.b16 %v200
    %v800 = vunpack.c.l.b16 %v201
    %v801 = vunpack.c.h.b16 %v201
    %v802 = vunpack.c.l.b16 %v202
    %v803 = vunpack.c.h.b16 %v202
    %v804 = vunpack.c.l.b16 %v203
    %v805 = vunpack.c.h.b16 %v203
    %v806 = vunpack.c.l.b16 %v204
    %v807 = vunpack.c.h.b16 %v204
    %v808 = vunpack.c.l.b16 %v205
    %v809 = vunpack.c.h.b16 %v205
    %v810 = vunpack.c.l.b16 %v206
    %v811 = vunpack.c.h.b16 %v206
    %v812 = vunpack.c.l.b16 %v207
    %v813 = vunpack.c.h.b16 %v207
    %v814 = vunpack.c.l.b16 %v208
    %v815 = vunpack.c.h.b16 %v208
    %v816 = vunpack.c.l.b16 %v209
    %v817 = vunpack.c.h.b16 %v209
    %v818 = vunpack.c.l.b16 %v210
    %v819 = vunpack.c.h.b16 %v210
    %v820 = vunpack.c.l.b16 %v211
    %v821 = vunpack.c.h.b16 %v211
    %v822 = vunpack.c.l.b16 %v212
    %v823 = vunpack.c.h.b16 %v212
    %v824 = vunpack.c.l.b16 %v213
    %v825 = vunpack.c.h.b16 %v213
    %v826 = vunpack.c.l.b16 %v214
    %v827 = vunpack.c.h.b16 %v214
    %v828 = vunpack.c.l.b16 %v215
    %v829 = vunpack.c.h.b16 %v215
    %v830 = vunpack.c.l.b16 %v216
    %v831 = vunpack.c.h.b16 %v216
    %v832 = vunpack.c.l.b16 %v217
    %v833 = vunpack.c.h.b16 %v217
    %v834 = vunpack.c.l.b16 %v218
    %v835 = vunpack.c.h.b16 %v218
    %v836 = vunpack.c.l.b16 %v219
    %v837 = vunpack.c.h.b16 %v219
    %v838 = vunpack.c.l.b16 %v220
    %v839 = vunpack.c.h.b16 %v220
    %v840 = vunpack.c.l.b16 %v221
    %v841 = vunpack.c.h.b16 %v221
    %v842 = vunpack.c.l.b16 %v222
    %v843 = vunpack.c.h.b16 %v222
    %v844 = vunpack.c.l.b16 %v223
    %v845 = vunpack.c.h.b16 %v223
    %v846 = vunpack.c.l.b16 %v224
    %v847 = vunpack.c.h.b16 %v224
    %v848 = vunpack.c.l.b16 %v225
    %v849 = vunpack.c.h.b16 %v225
    %v850 = vunpack.c.l.b16 %v226
    %v851 = vunpack.c.h.b16 %v226
    %v852 = vunpack.c.l.b16 %v227
    %v853 = vunpack.c.h.b16 %v227
    %v854 = vunpack.c.l.b16 %v228
    %v855 = vunpack.c.h.b16 %v228
    %v856 = vunpack.c.l.b16 %v229
    %v857 = vunpack.c.h.b16 %v229
    %v858 = vunpack.c.l.b16 %v230
    %v859 = vunpack.c.h.b16 %v230
    %v860 = vunpack.c.l.b16 %v231
    %v861 = vunpack.c.h.b16 %v231
    %v862 = vunpack.c.l.b16 %v232
    %v863 = vunpack.c.h.b16 %v232
    %v864 = vunpack.c.l.b16 %v233
    %v865 = vunpack.c.h.b16 %v233
    %v866 = vunpack.c.l.b16 %v234
    %v867 = vunpack.c.h.b16 %v234
    %v868 = vunpack.c.l.b16 %v235
    %v869 = vunpack.c.h.b16 %v235
    %v870 = vunpack.c.l.b16 %v236
    %v871 = vunpack.c.h.b16 %v236
    %v872 = vunpack.c.l.b16 %v237
    %v873 = vunpack.c.h.b16 %v237
    %v874 = vunpack.c.l.b16 %v238
    %v875 = vunpack.c.h.b16 %v238
    %v876 = vunpack.c.l.b16 %v239
    %v877 = vunpack.c.h.b16 %v239
    %v878 = vunpack.c.l.b16 %v240
    %v879 = vunpack.c.h.b16 %v240
    %v880 = vunpack.c.l.b16 %v241
    %v881 = vunpack.c.h.b16 %v241
    %v882 = vunpack.c.l.b16 %v242
    %v883 = vunpack.c.h.b16 %v242
    %v884 = vunpack.c.l.b16 %v243
    %v885 = vunpack.c.h.b16 %v243
    %v886 = vunpack.c.l.b16 %v244
    %v887 = vunpack.c.h.b16 %v244
    %v888 = vunpack.c.l.b16 %v245
    %v889 = vunpack.c.h.b16 %v245
    %v890 = vunpack.c.l.b16 %v246
    %v891 = vunpack.c.h.b16 %v246
    %v892 = vunpack.c.l.b16 %v247
    %v893 = vunpack.c.h.b16 %v247
    %v894 = vunpack.c.l.b16 %v248
    %v895 = vunpack.c.h.b16 %v248
    %v896 = vunpack.c.l.b16 %v249
    %v897 = vunpack.c.h.b16 %v249
    %v898 = vunpack.c.l.b16 %v250
    %v899 = vunpack.c.h.b16 %v250
    %v900 = vunpack.c.l.b16 %v251
    %v901 = vunpack.c.h.b16 %v251
    %v902 = vunpack.c.l.b16 %v252
    %v903 = vunpack.c.h.b16 %v252
    %v904 = vunpack.c.l.b16 %v253
    %v905 = vunpack.c.h.b16 %v253
    %v906 = vunpack.c.l.b16 %v254
    %v907 = vunpack.c.h.b16 %v254
    %v908 = vunpack.c.l.b16 %v255
    %v909 = vunpack.c.h.b16 %v255
    %v910 = vunpack.c.l.b16 %v256
    %v911 = vunpack.c.h.b16 %v256
    %v912 = vunpack.c.l.b16 %v257
    %v913 = vunpack.c.h.b16 %v257
    %v914 = vunpack.c.l.b16 %v258
    %v915 = vunpack.c.h.b16 %v258
    %v916 = vunpack.c.l.b16 %v259
    %v917 = vunpack.c.h.b16 %v259
    %v918 = vunpack.c.l.b16 %v260
    %v919 = vunpack.c.h.b16 %v260
    %v920 = vunpack.c.l.b16 %v261
    %v921 = vunpack.c.h.b16 %v261
    %v922 = vunpack.c.l.b16 %v262
    %v923 = vunpack.c.h.b16 %v262
    %v924 = vunpack.c.l.b16 %v263
    %v925 = vunpack.c.h.b16 %v263
    %v926 = vunpack.c.l.b16 %v264
    %v927 = vunpack.c.h.b16 %v264
    %v928 = vunpack.c.l.b16 %v265
    %v929 = vunpack.c.h.b16 %v265
    %v930 = vunpack.c.l.b16 %v266
    %v931 = vunpack.c.h.b16 %v266
    %v932 = vunpack.c.l.b16 %v267
    %v933 = vunpack.c.h.b16 %v267
    %v934 = vunpack.c.l.b16 %v268
    %v935 = vunpack.c.h.b16 %v268
    %v936 = vunpack.c.l.b16 %v269
    %v937 = vunpack.c.h.b16 %v269
    %v938 = vunpack.c.l.b16 %v270
    %v939 = vunpack.c.h.b16 %v270
    %v940 = vunpack.c.l.b16 %v271
    %v941 = vunpack.c.h.b16 %v271
    %v942 = vunpack.c.l.b16 %v272
    %v943 = vunpack.c.h.b16 %v272
    %v944 = vunpack.c.l.b16 %v273
    %v945 = vunpack.c.h.b16 %v273
    %v946 = vunpack.c.l.b16 %v274
    %v947 = vunpack.c.h.b16 %v274
    %v948 = vunpack.c.l.b16 %v275
    %v949 = vunpack.c.h.b16 %v275
    %v950 = vunpack.c.l.b16 %v276
    %v951 = vunpack.c.h.b16 %v276
    %v952 = vunpack.c.l.b16 %v277
    %v953 = vunpack.c.h.b16 %v277
    %v954 = vunpack.c.l.b16 %v278
    %v955 = vunpack.c.h.b16 %v278
    %v956 = vunpack.c.l.b16 %v279
    %v957 = vunpack.c.h.b16 %v279
    %v958 = vunpack.c.l.b16 %v280
    %v959 = vunpack.c.h.b16 %v280
    %v960 = vunpack.c.l.b16 %v281
    %v961 = vunpack.c.h.b16 %v281
    %v962 = vunpack.c.l.b16 %v282
    %v963 = vunpack.c.h.b16 %v282
    %v964 = vunpack.c.l.b16 %v283
    %v965 = vunpack.c.h.b16 %v283
    %v966 = vunpack.c.l.b16 %v284
    %v967 = vunpack.c.h.b16 %v284
    %v968 = vunpack.c.l.b16 %v285
    %v969 = vunpack.c.h.b16 %v285
    %v970 = vunpack.c.l.b16 %v286
    %v971 = vunpack.c.h.b16 %v286
    %v972 = vunpack.c.l.b16 %v287
    %v973 = vunpack.c.h.b16 %v287
    %v974 = vunpack.c.l.b16 %v288
    %v975 = vunpack.c.h.b16 %v288
    %v976 = vunpack.c.l.b16 %v289
    %v977 = vunpack.c.h.b16 %v289
    %v978 = vunpack.c.l.b16 %v290
    %v979 = vunpack.c.h.b16 %v290
    %v980 = vunpack.c.l.b16 %v291
    %v981 = vunpack.c.h.b16 %v291
    %v982 = vunpack.c.l.b16 %v292
    %v983 = vunpack.c.h.b16 %v292
    %v984 = vunpack.c.l.b16 %v293
    %v985 = vunpack.c.h.b16 %v293
    %v986 = vunpack.c.l.b16 %v294
    %v987 = vunpack.c.h.b16 %v294
    %v988 = vunpack.c.l.b16 %v295
    %v989 = vunpack.c.h.b16 %v295
    %v990 = vunpack.c.l.b16 %v296
    %v991 = vunpack.c.h.b16 %v296
    %v992 = vunpack.c.l.b16 %v297
    %v993 = vunpack.c.h.b16 %v297
    %v994 = vunpack.c.l.b16 %v298
    %v995 = vunpack.c.h.b16 %v298
    %v996 = vunpack.c.l.b16 %v299
    %v997 = vunpack.c.h.b16 %v299
    %v998 = vunpack.c.l.b16 %v300
    %v999 = vunpack.c.h.b16 %v300
    %v1000 = vunpack.c.l.b16 %v301
    %v1001 = vunpack.c.h.b16 %v301
    %v1002 = vunpack.c.l.b16 %v302
    %v1003 = vunpack.c.h.b16 %v302
    %v1004 = vunpack.c.l.b16 %v303
    %v1005 = vunpack.c.h.b16 %v303
    %v1006 = vunpack.c.l.b16 %v304
    %v1007 = vunpack.c.h.b16 %v304
    %v1008 = vunpack.c.l.b16 %v305
    %v1009 = vunpack.c.h.b16 %v305
    %v1010 = vunpack.c.l.b16 %v306
    %v1011 = vunpack.c.h.b16 %v306
    %v1012 = vunpack.c.l.b16 %v307
    %v1013 = vunpack.c.h.b16 %v307
    %v1014 = vunpack.c.l.b16 %v308
    %v1015 = vunpack.c.h.b16 %v308
    %v1016 = vunpack.c.l.b16 %v309
    %v1017 = vunpack.c.h.b16 %v309
    %v1018 = vunpack.c.l.b16 %v310
    %v1019 = vunpack.c.h.b16 %v310
    %v1020 = vunpack.c.l.b16 %v311
    %v1021 = vunpack.c.h.b16 %v311
    %v1022 = vunpack.c.l.b16 %v312
    %v1023 = vunpack.c.h.b16 %v312
    %v1024 = vunpack.c.l.b16 %v313
    %v1025 = vunpack.c.h.b16 %v313
    %v1026 = vunpack.c.l.b16 %v314
    %v1027 = vunpack.c.h.b16 %v314
    %v1028 = vunpack.c.l.b16 %v315
    %v1029 = vunpack.c.h.b16 %v315
    %v1030 = vunpack.c.l.b16 %v316
    %v1031 = vunpack.c.h.b16 %v316
    %v1032 = vunpack.c.l.b16 %v317
    %v1033 = vunpack.c.h.b16 %v317
    %v1034 = vunpack.c.l.b16 %v318
    %v1035 = vunpack.c.h.b16 %v318
    %v1036 = vunpack.c.l.b16 %v319
    %v1037 = vunpack.c.h.b16 %v319
    %v1038 = vunpack.c.l.b16 %v320
    %v1039 = vunpack.c.h.b16 %v320
    %v1040 = vunpack.c.l.b16 %v321
    %v1041 = vunpack.c.h.b16 %v321
    %v1042 = vunpack.c.l.b16 %v322
    %v1043 = vunpack.c.h.b16 %v322
    %v1044 = vunpack.c.l.b16 %v323
    %v1045 = vunpack.c.h.b16 %v323
    %v1046 = vunpack.c.l.b16 %v324
    %v1047 = vunpack.c.h.b16 %v324
    %v1048 = vunpack.c.l.b16 %v325
    %v1049 = vunpack.c.h.b16 %v325
    %v1050 = vunpack.c.l.b16 %v326
    %v1051 = vunpack.c.h.b16 %v326
    %v1052 = vunpack.c.l.b16 %v327
    %v1053 = vunpack.c.h.b16 %v327
    %v1054 = vunpack.c.l.b16 %v328
    %v1055 = vunpack.c.h.b16 %v328
    %v1056 = vunpack.c.l.b16 %v329
    %v1057 = vunpack.c.h.b16 %v329
    %v1058 = vunpack.c.l.b16 %v330
    %v1059 = vunpack.c.h.b16 %v330
    %v1060 = vunpack.c.l.b16 %v331
    %v1061 = vunpack.c.h.b16 %v331
    %v1062 = vpack.c.b16 %v618, %v614
    %v1063 = vpack.c.b16 %v619, %v615
    %v1064 = vpack.c.b16 %v620, %v616
    %v1065 = vpack.c.b16 %v621, %v617
    %v1066 = vpack.c.b16 %v626, %v622
    %v1067 = vpack.c.b16 %v627, %v623
    %v1068 = vpack.c.b16 %v628, %v624
    %v1069 = vpack.c.b16 %v629, %v625
    %v1070 = vpack.c.b16 %v634, %v630
    %v1071 = vpack.c.b16 %v635, %v631
    %v1072 = vpack.c.b16 %v636, %v632
    %v1073 = vpack.c.b16 %v637, %v633
    %v1074 = vpack.c.b16 %v642, %v638
    %v1075 = vpack.c.b16 %v643, %v639
    %v1076 = vpack.c.b16 %v644, %v640
    %v1077 = vpack.c.b16 %v645, %v641
    %v1078 = vpack.c.b16 %v650, %v646
    %v1079 = vpack.c.b16 %v651, %v647
    %v1080 = vpack.c.b16 %v652, %v648
    %v1081 = vpack.c.b16 %v653, %v649
    %v1082 = vpack.c.b16 %v658, %v654
    %v1083 = vpack.c.b16 %v659, %v655
    %v1084 = vpack.c.b16 %v660, %v656
    %v1085 = vpack.c.b16 %v661, %v657
    %v1086 = vpack.c.b16 %v666, %v662
    %v1087 = vpack.c.b16 %v667, %v663
    %v1088 = vpack.c.b16 %v668, %v664
    %v1089 = vpack.c.b16 %v669, %v665
    %v1090 = vpack.c.b16 %v674, %v670
    %v1091 = vpack.c.b16 %v675, %v671
    %v1092 = vpack.c.b16 %v676, %v672
    %v1093 = vpack.c.b16 %v677, %v673
    %v1094 = vpack.c.b16 %v682, %v678
    %v1095 = vpack.c.b16 %v683, %v679
    %v1096 = vpack.c.b16 %v684, %v680
    %v1097 = vpack.c.b16 %v685, %v681
    %v1098 = vpack.c.b16 %v690, %v686
    %v1099 = vpack.c.b16 %v691, %v687
    %v1100 = vpack.c.b16 %v692, %v688
    %v1101 = vpack.c.b16 %v693, %v689
    %v1102 = vpack.c.b16 %v698, %v694
    %v1103 = vpack.c.b16 %v699, %v695
    %v1104 = vpack.c.b16 %v700, %v696
    %v1105 = vpack.c.b16 %v701, %v697
    %v1106 = vpack.c.b16 %v706, %v702
    %v1107 = vpack.c.b16 %v707, %v703
    %v1108 = vpack.c.b16 %v708, %v704
    %v1109 = vpack.c.b16 %v709, %v705
    %v1110 = vpack.c.b16 %v714, %v710
    %v1111 = vpack.c.b16 %v715, %v711
    %v1112 = vpack.c.b16 %v716, %v712
    %v1113 = vpack.c.b16 %v717, %v713
    %v1114 = vpack.c.b16 %v722, %v718
    %v1115 = vpack.c.b16 %v723, %v719
    %v1116 = vpack.c.b16 %v724, %v720
    %v1117 = vpack.c.b16 %v725, %v721
    %v1118 = vpack.c.b16 %v730, %v726
    %v1119 = vpack.c.b16 %v731, %v727
    %v1120 = vpack.c.b16 %v732, %v728
    %v1121 = vpack.c.b16 %v733, %v729
    %v1122 = vpack.c.b16 %v738, %v734
    %v1123 = vpack.c.b16 %v739, %v735
    %v1124 = vpack.c.b16 %v740, %v736
    %v1125 = vpack.c.b16 %v741, %v737
    %v1126 = vpack.c.b16 %v746, %v742
    %v1127 = vpack.c.b16 %v747, %v743
    %v1128 = vpack.c.b16 %v748, %v744
    %v1129 = vpack.c.b16 %v749, %v745
    %v1130 = vpack.c.b16 %v754, %v750
    %v1131 = vpack.c.b16 %v755, %v751
    %v1132 = vpack.c.b16 %v756, %v752
    %v1133 = vpack.c.b16 %v757, %v753
    %v1134 = vpack.c.b16 %v762, %v758
    %v1135 = vpack.c.b16 %v763, %v759
    %v1136 = vpack.c.b16 %v764, %v760
    %v1137 = vpack.c.b16 %v765, %v761
    %v1138 = vpack.c.b16 %v770, %v766
    %v1139 = vpack.c.b16 %v771, %v767
    %v1140 = vpack.c.b16 %v772, %v768
    %v1141 = vpack.c.b16 %v773, %v769
    %v1142 = vpack.c.b16 %v778, %v774
    %v1143 = vpack.c.b16 %v779, %v775
    %v1144 = vpack.c.b16 %v780, %v776
    %v1145 = vpack.c.b16 %v781, %v777
    %v1146 = vpack.c.b16 %v786, %v782
    %v1147 = vpack.c.b16 %v787, %v783
    %v1148 = vpack.c.b16 %v788, %v784
    %v1149 = vpack.c.b16 %v789, %v785
    %v1150 = vpack.c.b16 %v794, %v790
    %v1151 = vpack.c.b16 %v795, %v791
    %v1152 = vpack.c.b16 %v796, %v792
    %v1153 = vpack.c.b16 %v797, %v793
    %v1154 = vpack.c.b16 %v802, %v798
    %v1155 = vpack.c.b16 %v803, %v799
    %v1156 = vpack.c.b16 %v804, %v800
    %v1157 = vpack.c.b16 %v805, %v801
    %v1158 = vpack.c.b16 %v810, %v806
    %v1159 = vpack.c.b16 %v811, %v807
    %v1160 = vpack.c.b16 %v812, %v808
    %v1161 = vpack.c.b16 %v813, %v809
    %v1162 = vpack.c.b16 %v818, %v814
    %v1163 = vpack.c.b16 %v819, %v815
    %v1164 = vpack.c.b16 %v820, %v816
    %v1165 = vpack.c.b16 %v821, %v817
    %v1166 = vpack.c.b16 %v826, %v822
    %v1167 = vpack.c.b16 %v827, %v823
    %v1168 = vpack.c.b16 %v828, %v824
    %v1169 = vpack.c.b16 %v829, %v825
    %v1170 = vpack.c.b16 %v834, %v830
    %v1171 = vpack.c.b16 %v835, %v831
    %v1172 = vpack.c.b16 %v836, %v832
    %v1173 = vpack.c.b16 %v837, %v833
    %v1174 = vpack.c.b16 %v842, %v838
    %v1175 = vpack.c.b16 %v843, %v839
    %v1176 = vpack.c.b16 %v844, %v840
    %v1177 = vpack.c.b16 %v845, %v841
    %v1178 = vpack.c.b16 %v850, %v846
    %v1179 = vpack.c.b16 %v851, %v847
    %v1180 = vpack.c.b16 %v852, %v848
    %v1181 = vpack.c.b16 %v853, %v849
    %v1182 = vpack.c.b16 %v858, %v854
    %v1183 = vpack.c.b16 %v859, %v855
    %v1184 = vpack.c.b16 %v860, %v856
    %v1185 = vpack.c.b16 %v861, %v857
    %v1186 = vpack.c.b16 %v866, %v862
    %v1187 = vpack.c.b16 %v867, %v863
    %v1188 = vpack.c.b16 %v868, %v864
    %v1189 = vpack.c.b16 %v869, %v865
    %v1190 = vpack.c.b16 %v874, %v870
    %v1191 = vpack.c.b16 %v875, %v871
    %v1192 = vpack.c.b16 %v876, %v872
    %v1193 = vpack.c.b16 %v877, %v873
    %v1194 = vpack.c.b16 %v882, %v878
    %v1195 = vpack.c.b16 %v883, %v879
    %v1196 = vpack.c.b16 %v884, %v880
    %v1197 = vpack.c.b16 %v885, %v881
    %v1198 = vpack.c.b16 %v890, %v886
    %v1199 = vpack.c.b16 %v891, %v887
    %v1200 = vpack.c.b16 %v892, %v888
    %v1201 = vpack.c.b16 %v893, %v889
    %v1202 = vpack.c.b16 %v898, %v894
    %v1203 = vpack.c.b16 %v899, %v895
    %v1204 = vpack.c.b16 %v900, %v896
    %v1205 = vpack.c.b16 %v901, %v897
    %v1206 = vpack.c.b16 %v906, %v902
    %v1207 = vpack.c.b16 %v907, %v903
    %v1208 = vpack.c.b16 %v908, %v904
    %v1209 = vpack.c.b16 %v909, %v905
    %v1210 = vpack.c.b16 %v914, %v910
    %v1211 = vpack.c.b16 %v915, %v911
    %v1212 = vpack.c.b16 %v916, %v912
    %v1213 = vpack.c.b16 %v917, %v913
    %v1214 = vpack.c.b16 %v922, %v918
    %v1215 = vpack.c.b16 %v923, %v919
    %v1216 = vpack.c.b16 %v924, %v920
    %v1217 = vpack.c.b16 %v925, %v921
    %v1218 = vpack.c.b16 %v930, %v926
    %v1219 = vpack.c.b16 %v931, %v927
    %v1220 = vpack.c.b16 %v932, %v928
    %v1221 = vpack.c.b16 %v933, %v929
    %v1222 = vpack.c.b16 %v938, %v934
    %v1223 = vpack.c.b16 %v939, %v935
    %v1224 = vpack.c.b16 %v940, %v936
    %v1225 = vpack.c.b16 %v941, %v937
    %v1226 = vpack.c.b16 %v946, %v942
    %v1227 = vpack.c.b16 %v947, %v943
    %v1228 = vpack.c.b16 %v948, %v944
    %v1229 = vpack.c.b16 %v949, %v945
    %v1230 = vpack.c.b16 %v954, %v950
    %v1231 = vpack.c.b16 %v955, %v951
    %v1232 = vpack.c.b16 %v956, %v952
    %v1233 = vpack.c.b16 %v957, %v953
    %v1234 = vpack.c.b16 %v962, %v958
    %v1235 = vpack.c.b16 %v963, %v959
    %v1236 = vpack.c.b16 %v964, %v960
    %v1237 = vpack.c.b16 %v965, %v961
    %v1238 = vpack.c.b16 %v970, %v966
    %v1239 = vpack.c.b16 %v971, %v967
    %v1240 = vpack.c.b16 %v972, %v968
    %v1241 = vpack.c.b16 %v973, %v969
    %v1242 = vpack.c.b16 %v978, %v974
    %v1243 = vpack.c.b16 %v979, %v975
    %v1244 = vpack.c.b16 %v980, %v976
    %v1245 = vpack.c.b16 %v981, %v977
    %v1246 = vpack.c.b16 %v986, %v982
    %v1247 = vpack.c.b16 %v987, %v983
    %v1248 = vpack.c.b16 %v988, %v984
    %v1249 = vpack.c.b16 %v989, %v985
    %v1250 = vpack.c.b16 %v994, %v990
    %v1251 = vpack.c.b16 %v995, %v991
    %v1252 = vpack.c.b16 %v996, %v992
    %v1253 = vpack.c.b16 %v997, %v993
    %v1254 = vpack.c.b16 %v1002, %v998
    %v1255 = vpack.c.b16 %v1003, %v999
    %v1256 = vpack.c.b16 %v1004, %v1000
    %v1257 = vpack.c.b16 %v1005, %v1001
    %v1258 = vpack.c.b16 %v1010, %v1006
    %v1259 = vpack.c.b16 %v1011, %v1007
    %v1260 = vpack.c.b16 %v1012, %v1008
    %v1261 = vpack.c.b16 %v1013, %v1009
    %v1262 = vpack.c.b16 %v1018, %v1014
    %v1263 = vpack.c.b16 %v1019, %v1015
    %v1264 = vpack.c.b16 %v1020, %v1016
    %v1265 = vpack.c.b16 %v1021, %v1017
    %v1266 = vpack.c.b16 %v1026, %v1022
    %v1267 = vpack.c.b16 %v1027, %v1023
    %v1268 = vpack.c.b16 %v1028, %v1024
    %v1269 = vpack.c.b16 %v1029, %v1025
    %v1270 = vpack.c.b16 %v1034, %v1030
    %v1271 = vpack.c.b16 %v1035, %v1031
    %v1272 = vpack.c.b16 %v1036, %v1032
    %v1273 = vpack.c.b16 %v1037, %v1033
    %v1274 = vpack.c.b16 %v1042, %v1038
    %v1275 = vpack.c.b16 %v1043, %v1039
    %v1276 = vpack.c.b16 %v1044, %v1040
    %v1277 = vpack.c.b16 %v1045, %v1041
    %v1278 = vpack.c.b16 %v1050, %v1046
    %v1279 = vpack.c.b16 %v1051, %v1047
    %v1280 = vpack.c.b16 %v1052, %v1048
    %v1281 = vpack.c.b16 %v1053, %v1049
    %v1282 = vpack.c.b16 %v1058, %v1054
    %v1283 = vpack.c.b16 %v1059, %v1055
    %v1284 = vpack.c.b16 %v1060, %v1056
    %v1285 = vpack.c.b16 %v1061, %v1057
    %1510 = vmatprep.subr.bf16.mxu0 %v1063
    %1511 = vmatpush1.bf16.msra.mxu0 %v1062
    %1512 = vmatprep.subr.bf16.mxu0 %v1067
    %1513 = vmatpush1.bf16.msra.mxu0 %v1066
    %1514 = vmatprep.subr.bf16.mxu0 %v1071
    %1515 = vmatpush1.bf16.msra.mxu0 %v1070
    %1516 = vmatprep.subr.bf16.mxu0 %v1075
    %1517 = vmatpush1.bf16.msra.mxu0 %v1074
    %1518 = vmatprep.subr.bf16.mxu0 %v1079
    %1519 = vmatpush1.bf16.msra.mxu0 %v1078
    %1520 = vmatprep.subr.bf16.mxu0 %v1083
    %1521 = vmatpush1.bf16.msra.mxu0 %v1082
    %1522 = vmatprep.subr.bf16.mxu0 %v1087
    %1523 = vmatpush1.bf16.msra.mxu0 %v1086
    %1524 = vmatprep.subr.bf16.mxu0 %v1091
    %1525 = vmatpush1.bf16.msra.mxu0 %v1090
    %1526 = vmatprep.subr.bf16.mxu0 %v1095
    %1527 = vmatpush1.bf16.msra.mxu0 %v1094
    %1528 = vmatprep.subr.bf16.mxu0 %v1099
    %1529 = vmatpush1.bf16.msra.mxu0 %v1098
    %1530 = vmatprep.subr.bf16.mxu0 %v1103
    %1531 = vmatpush1.bf16.msra.mxu0 %v1102
    %1532 = vmatprep.subr.bf16.mxu0 %v1107
    %1533 = vmatpush1.bf16.msra.mxu0 %v1106
    %1534 = vmatprep.subr.bf16.mxu0 %v1111
    %1535 = vmatpush1.bf16.msra.mxu0 %v1110
    %1536 = vmatprep.subr.bf16.mxu0 %v1115
    %1537 = vmatpush1.bf16.msra.mxu0 %v1114
    %1538 = vmatprep.subr.bf16.mxu0 %v1119
    %1539 = vmatpush1.bf16.msra.mxu0 %v1118
    %1540 = vmatprep.subr.bf16.mxu0 %v1123
    %1541 = vmatpush1.bf16.msra.mxu0 %v1122
    %1542 = vmatprep.mubr.bf16.mxu0 %v377
    %1543 = vmatmul.mubr.bf16.gmra.mrb[0].mxu0 %v376
    %v1544 = vpop.f32.mrb[0].mxu0
    %v1545 = vadd.f32 %v337, %v1544
    %v1546 = vpop.f32.mrb[0].mxu0
    %v1547 = vadd.f32 %v341, %v1546
    %v1548 = vpop.f32.mrb[0].mxu0
    %v1549 = vadd.f32 %v337, %v1548
    %v1550 = vpop.f32.mrb[0].mxu0
    %v1551 = vadd.f32 %v341, %v1550
    %1552 = vdwg.mxu0
    %1553 = vmatprep.subr.bf16.mxu0 %v1127
    %1554 = vmatpush1.bf16.msra.mxu0 %v1126
    %1555 = vmatprep.subr.bf16.mxu0 %v1131
    %1556 = vmatpush1.bf16.msra.mxu0 %v1130
    %1557 = vmatprep.subr.bf16.mxu0 %v1135
    %1558 = vmatpush1.bf16.msra.mxu0 %v1134
    %1559 = vmatprep.subr.bf16.mxu0 %v1139
    %1560 = vmatpush1.bf16.msra.mxu0 %v1138
    %1561 = vmatprep.subr.bf16.mxu0 %v1143
    %1562 = vmatpush1.bf16.msra.mxu0 %v1142
    %1563 = vmatprep.subr.bf16.mxu0 %v1147
    %1564 = vmatpush1.bf16.msra.mxu0 %v1146
    %1565 = vmatprep.subr.bf16.mxu0 %v1151
    %1566 = vmatpush1.bf16.msra.mxu0 %v1150
    %1567 = vmatprep.subr.bf16.mxu0 %v1155
    %1568 = vmatpush1.bf16.msra.mxu0 %v1154
    %1569 = vmatprep.subr.bf16.mxu0 %v1159
    %1570 = vmatpush1.bf16.msra.mxu0 %v1158
    %1571 = vmatprep.subr.bf16.mxu0 %v1163
    %1572 = vmatpush1.bf16.msra.mxu0 %v1162
    %1573 = vmatprep.subr.bf16.mxu0 %v1167
    %1574 = vmatpush1.bf16.msra.mxu0 %v1166
    %1575 = vmatprep.subr.bf16.mxu0 %v1171
    %1576 = vmatpush1.bf16.msra.mxu0 %v1170
    %1577 = vmatprep.subr.bf16.mxu0 %v1175
    %1578 = vmatpush1.bf16.msra.mxu0 %v1174
    %1579 = vmatprep.subr.bf16.mxu0 %v1179
    %1580 = vmatpush1.bf16.msra.mxu0 %v1178
    %1581 = vmatprep.subr.bf16.mxu0 %v1183
    %1582 = vmatpush1.bf16.msra.mxu0 %v1182
    %1583 = vmatprep.subr.bf16.mxu0 %v1187
    %1584 = vmatpush1.bf16.msra.mxu0 %v1186
    %1585 = vmatprep.mubr.bf16.mxu0 %v379
    %1586 = vmatmul.mubr.bf16.gmra.mrb[0].mxu0 %v378
    %v1587 = vpop.f32.mrb[0].mxu0
    %v1588 = vadd.f32 %v1545, %v1587
    %v1589 = vpop.f32.mrb[0].mxu0
    %v1590 = vadd.f32 %v1547, %v1589
    %v1591 = vpop.f32.mrb[0].mxu0
    %v1592 = vadd.f32 %v1549, %v1591
    %v1593 = vpop.f32.mrb[0].mxu0
    %v1594 = vadd.f32 %v1551, %v1593
    %1595 = vdwg.mxu0
    %1596 = vmatprep.subr.bf16.mxu0 %v1191
    %1597 = vmatpush1.bf16.msra.mxu0 %v1190
    %1598 = vmatprep.subr.bf16.mxu0 %v1195
    %1599 = vmatpush1.bf16.msra.mxu0 %v1194
    %1600 = vmatprep.subr.bf16.mxu0 %v1199
    %1601 = vmatpush1.bf16.msra.mxu0 %v1198
    %1602 = vmatprep.subr.bf16.mxu0 %v1203
    %1603 = vmatpush1.bf16.msra.mxu0 %v1202
    %1604 = vmatprep.subr.bf16.mxu0 %v1207
    %1605 = vmatpush1.bf16.msra.mxu0 %v1206
    %1606 = vmatprep.subr.bf16.mxu0 %v1211
    %1607 = vmatpush1.bf16.msra.mxu0 %v1210
    %1608 = vmatprep.subr.bf16.mxu0 %v1215
    %1609 = vmatpush1.bf16.msra.mxu0 %v1214
    %1610 = vmatprep.subr.bf16.mxu0 %v1219
    %1611 = vmatpush1.bf16.msra.mxu0 %v1218
    %1612 = vmatprep.subr.bf16.mxu0 %v1223
    %1613 = vmatpush1.bf16.msra.mxu0 %v1222
    %1614 = vmatprep.subr.bf16.mxu0 %v1227
    %1615 = vmatpush1.bf16.msra.mxu0 %v1226
    %1616 = vmatprep.subr.bf16.mxu0 %v1231
    %1617 = vmatpush1.bf16.msra.mxu0 %v1230
    %1618 = vmatprep.subr.bf16.mxu0 %v1235
    %1619 = vmatpush1.bf16.msra.mxu0 %v1234
    %1620 = vmatprep.subr.bf16.mxu0 %v1239
    %1621 = vmatpush1.bf16.msra.mxu0 %v1238
    %1622 = vmatprep.subr.bf16.mxu0 %v1243
    %1623 = vmatpush1.bf16.msra.mxu0 %v1242
    %1624 = vmatprep.subr.bf16.mxu0 %v1247
    %1625 = vmatpush1.bf16.msra.mxu0 %v1246
    %1626 = vmatprep.subr.bf16.mxu0 %v1251
    %1627 = vmatpush1.bf16.msra.mxu0 %v1250
    %1628 = vmatprep.mubr.bf16.mxu0 %v381
    %1629 = vmatmul.mubr.bf16.gmra.mrb[0].mxu0 %v380
    %v1630 = vpop.f32.mrb[0].mxu0
    %v1631 = vadd.f32 %v1588, %v1630
    %v1632 = vpop.f32.mrb[0].mxu0
    %v1633 = vadd.f32 %v1590, %v1632
    %v1634 = vpop.f32.mrb[0].mxu0
    %v1635 = vadd.f32 %v1592, %v1634
    %v1636 = vpop.f32.mrb[0].mxu0
    %v1637 = vadd.f32 %v1594, %v1636
    %1638 = vdwg.mxu0
    %1639 = vmatprep.subr.bf16.mxu0 %v1255
    %1640 = vmatpush1.bf16.msra.mxu0 %v1254
    %1641 = vmatprep.subr.bf16.mxu0 %v1259
    %1642 = vmatpush1.bf16.msra.mxu0 %v1258
    %1643 = vmatprep.subr.bf16.mxu0 %v1263
    %1644 = vmatpush1.bf16.msra.mxu0 %v1262
    %1645 = vmatprep.subr.bf16.mxu0 %v1267
    %1646 = vmatpush1.bf16.msra.mxu0 %v1266
    %1647 = vmatprep.subr.bf16.mxu0 %v1271
    %1648 = vmatpush1.bf16.msra.mxu0 %v1270
    %1649 = vmatprep.subr.bf16.mxu0 %v1275
    %1650 = vmatpush1.bf16.msra.mxu0 %v1274
    %1651 = vmatprep.subr.bf16.mxu0 %v1279
    %1652 = vmatpush1.bf16.msra.mxu0 %v1278
    %1653 = vmatprep.subr.bf16.mxu0 %v1283
    %1654 = vmatpush1.bf16.msra.mxu0 %v1282
    %1655 = vmatprep.subr.bf16.mxu0 0
    %1656 = vmatpush1.bf16.msra.mxu0 0
    %1657 = vmatprep.subr.bf16.mxu0 0
    %1658 = vmatpush1.bf16.msra.mxu0 0
    %1659 = vmatprep.subr.bf16.mxu0 0
    %1660 = vmatpush1.bf16.msra.mxu0 0
    %1661 = vmatprep.subr.bf16.mxu0 0
    %1662 = vmatpush1.bf16.msra.mxu0 0
    %1663 = vmatprep.subr.bf16.mxu0 0
    %1664 = vmatpush1.bf16.msra.mxu0 0
    %1665 = vmatprep.subr.bf16.mxu0 0
    %1666 = vmatpush1.bf16.msra.mxu0 0
    %1667 = vmatprep.subr.bf16.mxu0 0
    %1668 = vmatpush1.bf16.msra.mxu0 0
    %1669 = vmatprep.subr.bf16.mxu0 0
    %1670 = vmatpush1.bf16.msra.mxu0 0
    %1671 = vmatprep.mubr.bf16.mxu0 0
    %1672 = vmatmul.mubr.bf16.gmra.mrb[0].mxu0 %v382
    %v1673 = vpop.f32.mrb[0].mxu0
    %v1674 = vadd.f32 %v1631, %v1673
    %v1675 = vpop.f32.mrb[0].mxu0
    %v1676 = vadd.f32 %v1633, %v1675
    %v1677 = vpop.f32.mrb[0].mxu0
    %v1678 = vadd.f32 %v1635, %v1677
    %v1679 = vpop.f32.mrb[0].mxu0
    %v1680 = vadd.f32 %v1637, %v1679
    %1681 = vdwg.mxu0
    %1682 = vmatprep.subr.bf16.mxu0 %v1065
    %1683 = vmatpush1.bf16.msra.mxu0 %v1064
    %1684 = vmatprep.subr.bf16.mxu0 %v1069
    %1685 = vmatpush1.bf16.msra.mxu0 %v1068
    %1686 = vmatprep.subr.bf16.mxu0 %v1073
    %1687 = vmatpush1.bf16.msra.mxu0 %v1072
    %1688 = vmatprep.subr.bf16.mxu0 %v1077
    %1689 = vmatpush1.bf16.msra.mxu0 %v1076
    %1690 = vmatprep.subr.bf16.mxu0 %v1081
    %1691 = vmatpush1.bf16.msra.mxu0 %v1080
    %1692 = vmatprep.subr.bf16.mxu0 %v1085
    %1693 = vmatpush1.bf16.msra.mxu0 %v1084
    %1694 = vmatprep.subr.bf16.mxu0 %v1089
    %1695 = vmatpush1.bf16.msra.mxu0 %v1088
    %1696 = vmatprep.subr.bf16.mxu0 %v1093
    %1697 = vmatpush1.bf16.msra.mxu0 %v1092
    %1698 = vmatprep.subr.bf16.mxu0 %v1097
    %1699 = vmatpush1.bf16.msra.mxu0 %v1096
    %1700 = vmatprep.subr.bf16.mxu0 %v1101
    %1701 = vmatpush1.bf16.msra.mxu0 %v1100
    %1702 = vmatprep.subr.bf16.mxu0 %v1105
    %1703 = vmatpush1.bf16.msra.mxu0 %v1104
    %1704 = vmatprep.subr.bf16.mxu0 %v1109
    %1705 = vmatpush1.bf16.msra.mxu0 %v1108
    %1706 = vmatprep.subr.bf16.mxu0 %v1113
    %1707 = vmatpush1.bf16.msra.mxu0 %v1112
    %1708 = vmatprep.subr.bf16.mxu0 %v1117
    %1709 = vmatpush1.bf16.msra.mxu0 %v1116
    %1710 = vmatprep.subr.bf16.mxu0 %v1121
    %1711 = vmatpush1.bf16.msra.mxu0 %v1120
    %1712 = vmatprep.subr.bf16.mxu0 %v1125
    %1713 = vmatpush1.bf16.msra.mxu0 %v1124
    %1714 = vmatprep.mubr.bf16.mxu0 %v377
    %1715 = vmatmul.mubr.bf16.gmra.mrb[0].mxu0 %v376
    %v1716 = vpop.f32.mrb[0].mxu0
    %v1717 = vadd.f32 %v345, %v1716
    %v1718 = vpop.f32.mrb[0].mxu0
    %v1719 = vadd.f32 %v349, %v1718
    %v1720 = vpop.f32.mrb[0].mxu0
    %v1721 = vadd.f32 %v345, %v1720
    %v1722 = vpop.f32.mrb[0].mxu0
    %v1723 = vadd.f32 %v349, %v1722
    %1724 = vdwg.mxu0
    %1725 = vmatprep.subr.bf16.mxu0 %v1129
    %1726 = vmatpush1.bf16.msra.mxu0 %v1128
    %1727 = vmatprep.subr.bf16.mxu0 %v1133
    %1728 = vmatpush1.bf16.msra.mxu0 %v1132
    %1729 = vmatprep.subr.bf16.mxu0 %v1137
    %1730 = vmatpush1.bf16.msra.mxu0 %v1136
    %1731 = vmatprep.subr.bf16.mxu0 %v1141
    %1732 = vmatpush1.bf16.msra.mxu0 %v1140
    %1733 = vmatprep.subr.bf16.mxu0 %v1145
    %1734 = vmatpush1.bf16.msra.mxu0 %v1144
    %1735 = vmatprep.subr.bf16.mxu0 %v1149
    %1736 = vmatpush1.bf16.msra.mxu0 %v1148
    %1737 = vmatprep.subr.bf16.mxu0 %v1153
    %1738 = vmatpush1.bf16.msra.mxu0 %v1152
    %1739 = vmatprep.subr.bf16.mxu0 %v1157
    %1740 = vmatpush1.bf16.msra.mxu0 %v1156
    %1741 = vmatprep.subr.bf16.mxu0 %v1161
    %1742 = vmatpush1.bf16.msra.mxu0 %v1160
    %1743 = vmatprep.subr.bf16.mxu0 %v1165
    %1744 = vmatpush1.bf16.msra.mxu0 %v1164
    %1745 = vmatprep.subr.bf16.mxu0 %v1169
    %1746 = vmatpush1.bf16.msra.mxu0 %v1168
    %1747 = vmatprep.subr.bf16.mxu0 %v1173
    %1748 = vmatpush1.bf16.msra.mxu0 %v1172
    %1749 = vmatprep.subr.bf16.mxu0 %v1177
    %1750 = vmatpush1.bf16.msra.mxu0 %v1176
    %1751 = vmatprep.subr.bf16.mxu0 %v1181
    %1752 = vmatpush1.bf16.msra.mxu0 %v1180
    %1753 = vmatprep.subr.bf16.mxu0 %v1185
    %1754 = vmatpush1.bf16.msra.mxu0 %v1184
    %1755 = vmatprep.subr.bf16.mxu0 %v1189
    %1756 = vmatpush1.bf16.msra.mxu0 %v1188
    %1757 = vmatprep.mubr.bf16.mxu0 %v379
    %1758 = vmatmul.mubr.bf16.gmra.mrb[0].mxu0 %v378
    %v1759 = vpop.f32.mrb[0].mxu0
    %v1760 = vadd.f32 %v1717, %v1759
    %v1761 = vpop.f32.mrb[0].mxu0
    %v1762 = vadd.f32 %v1719, %v1761
    %v1763 = vpop.f32.mrb[0].mxu0
    %v1764 = vadd.f32 %v1721, %v1763
    %v1765 = vpop.f32.mrb[0].mxu0
    %v1766 = vadd.f32 %v1723, %v1765
    %1767 = vdwg.mxu0
    %1768 = vmatprep.subr.bf16.mxu0 %v1193
    %1769 = vmatpush1.bf16.msra.mxu0 %v1192
    %1770 = vmatprep.subr.bf16.mxu0 %v1197
    %1771 = vmatpush1.bf16.msra.mxu0 %v1196
    %1772 = vmatprep.subr.bf16.mxu0 %v1201
    %1773 = vmatpush1.bf16.msra.mxu0 %v1200
    %1774 = vmatprep.subr.bf16.mxu0 %v1205
    %1775 = vmatpush1.bf16.msra.mxu0 %v1204
    %1776 = vmatprep.subr.bf16.mxu0 %v1209
    %1777 = vmatpush1.bf16.msra.mxu0 %v1208
    %1778 = vmatprep.subr.bf16.mxu0 %v1213
    %1779 = vmatpush1.bf16.msra.mxu0 %v1212
    %1780 = vmatprep.subr.bf16.mxu0 %v1217
    %1781 = vmatpush1.bf16.msra.mxu0 %v1216
    %1782 = vmatprep.subr.bf16.mxu0 %v1221
    %1783 = vmatpush1.bf16.msra.mxu0 %v1220
    %1784 = vmatprep.subr.bf16.mxu0 %v1225
    %1785 = vmatpush1.bf16.msra.mxu0 %v1224
    %1786 = vmatprep.subr.bf16.mxu0 %v1229
    %1787 = vmatpush1.bf16.msra.mxu0 %v1228
    %1788 = vmatprep.subr.bf16.mxu0 %v1233
    %1789 = vmatpush1.bf16.msra.mxu0 %v1232
    %1790 = vmatprep.subr.bf16.mxu0 %v1237
    %1791 = vmatpush1.bf16.msra.mxu0 %v1236
    %1792 = vmatprep.subr.bf16.mxu0 %v1241
    %1793 = vmatpush1.bf16.msra.mxu0 %v1240
    %1794 = vmatprep.subr.bf16.mxu0 %v1245
    %1795 = vmatpush1.bf16.msra.mxu0 %v1244
    %1796 = vmatprep.subr.bf16.mxu0 %v1249
    %1797 = vmatpush1.bf16.msra.mxu0 %v1248
    %1798 = vmatprep.subr.bf16.mxu0 %v1253
    %1799 = vmatpush1.bf16.msra.mxu0 %v1252
    %1800 = vmatprep.mubr.bf16.mxu0 %v381
    %1801 = vmatmul.mubr.bf16.gmra.mrb[0].mxu0 %v380
    %v1802 = vpop.f32.mrb[0].mxu0
    %v1803 = vadd.f32 %v1760, %v1802
    %v1804 = vpop.f32.mrb[0].mxu0
    %v1805 = vadd.f32 %v1762, %v1804
    %v1806 = vpop.f32.mrb[0].mxu0
    %v1807 = vadd.f32 %v1764, %v1806
    %v1808 = vpop.f32.mrb[0].mxu0
    %v1809 = vadd.f32 %v1766, %v1808
    %1810 = vdwg.mxu0
    %1811 = vmatprep.subr.bf16.mxu0 %v1257
    %1812 = vmatpush1.bf16.msra.mxu0 %v1256
    %1813 = vmatprep.subr.bf16.mxu0 %v1261
    %1814 = vmatpush1.bf16.msra.mxu0 %v1260
    %1815 = vmatprep.subr.bf16.mxu0 %v1265
    %1816 = vmatpush1.bf16.msra.mxu0 %v1264
    %1817 = vmatprep.subr.bf16.mxu0 %v1269
    %1818 = vmatpush1.bf16.msra.mxu0 %v1268
    %1819 = vmatprep.subr.bf16.mxu0 %v1273
    %1820 = vmatpush1.bf16.msra.mxu0 %v1272
    %1821 = vmatprep.subr.bf16.mxu0 %v1277
    %1822 = vmatpush1.bf16.msra.mxu0 %v1276
    %1823 = vmatprep.subr.bf16.mxu0 %v1281
    %1824 = vmatpush1.bf16.msra.mxu0 %v1280
    %1825 = vmatprep.subr.bf16.mxu0 %v1285
    %1826 = vmatpush1.bf16.msra.mxu0 %v1284
    %1827 = vmatprep.subr.bf16.mxu0 0
    %1828 = vmatpush1.bf16.msra.mxu0 0
    %1829 = vmatprep.subr.bf16.mxu0 0
    %1830 = vmatpush1.bf16.msra.mxu0 0
    %1831 = vmatprep.subr.bf16.mxu0 0
    %1832 = vmatpush1.bf16.msra.mxu0 0
    %1833 = vmatprep.subr.bf16.mxu0 0
    %1834 = vmatpush1.bf16.msra.mxu0 0
    %1835 = vmatprep.subr.bf16.mxu0 0
    %1836 = vmatpush1.bf16.msra.mxu0 0
    %1837 = vmatprep.subr.bf16.mxu0 0
    %1838 = vmatpush1.bf16.msra.mxu0 0
    %1839 = vmatprep.subr.bf16.mxu0 0
    %1840 = vmatpush1.bf16.msra.mxu0 0
    %1841 = vmatprep.subr.bf16.mxu0 0
    %1842 = vmatpush1.bf16.msra.mxu0 0
    %1843 = vmatprep.mubr.bf16.mxu0 0
    %1844 = vmatmul.mubr.bf16.gmra.mrb[0].mxu0 %v382
    %v1845 = vpop.f32.mrb[0].mxu0
    %v1846 = vadd.f32 %v1803, %v1845
    %v1847 = vpop.f32.mrb[0].mxu0
    %v1848 = vadd.f32 %v1805, %v1847
    %v1849 = vpop.f32.mrb[0].mxu0
    %v1850 = vadd.f32 %v1807, %v1849
    %v1851 = vpop.f32.mrb[0].mxu0
    %v1852 = vadd.f32 %v1809, %v1851
    %1853 = vdwg.mxu0
    %v1854 = vmax.f32 %v1674, 0.0
    %v1855 = vmax.f32 %v1676, 0.0
    %v1856 = vmax.f32 %v1846, 0.0
    %v1857 = vmax.f32 %v1848, 0.0
    %v1858 = vmax.f32 %v1678, 0.0
    %v1859 = vmax.f32 %v1680, 0.0
    %v1860 = vmax.f32 %v1850, 0.0
    %v1861 = vmax.f32 %v1852, 0.0
    %v1862 = vpack.c.bf16 %v1858, %v1854
    %v1863 = vpack.c.bf16 %v1859, %v1855
    %v1864 = vpack.c.bf16 %v1860, %v1856
    %v1865 = vpack.c.bf16 %v1861, %v1857
    %v1866 = vld [vmem:[%s2] sm:$0xff]
    %v1867 = vld [vmem:[%s2 + $0x8] sm:$0xff]
    %v1868 = vld [vmem:[%s2 + $0x10] sm:$0xff]
    %v1869 = vld [vmem:[%s2 + $0x18] sm:$0xff]
    %v1870 = vld [vmem:[%s2 + $0x20] sm:$0xff]
    %v1871 = vld [vmem:[%s2 + $0x28] sm:$0xff]
    %v1872 = vld [vmem:[%s2 + $0x30] sm:$0xff]
    %v1873 = vld [vmem:[%s2 + $0x38] sm:$0xff]
    %v1874 = vld [vmem:[%s2 + $0x40] sm:$0xff]
    %v1875 = vld [vmem:[%s2 + $0x48] sm:$0xff]
    %v1876 = vld [vmem:[%s2 + $0x50] sm:$0xff]
    %v1877 = vld [vmem:[%s2 + $0x58] sm:$0xff]
    %v1878 = vld [vmem:[%s2 + $0x60] sm:$0xff]
    %v1879 = vld [vmem:[%s2 + $0x68] sm:$0xff]
    %v1880 = vld [vmem:[%s2 + $0x70] sm:$0xff]
    %v1881 = vld [vmem:[%s2 + $0x78] sm:$0xff]
    %v1882 = vld [vmem:[%s2 + $0x80] sm:$0xff]
    %v1883 = vld [vmem:[%s2 + $0x88] sm:$0xff]
    %v1884 = vld [vmem:[%s2 + $0x90] sm:$0xff]
    %v1885 = vld [vmem:[%s2 + $0x98] sm:$0xff]
    %v1886 = vld [vmem:[%s2 + $0xa0] sm:$0xff]
    %v1887 = vld [vmem:[%s2 + $0xa8] sm:$0xff]
    %v1888 = vld [vmem:[%s2 + $0xb0] sm:$0xff]
    %v1889 = vld [vmem:[%s2 + $0xb8] sm:$0xff]
    %v1890 = vld [vmem:[%s2 + $0xc0] sm:$0xff]
    %v1891 = vld [vmem:[%s2 + $0xc8] sm:$0xff]
    %v1892 = vld [vmem:[%s2 + $0xd0] sm:$0xff]
    %v1893 = vld [vmem:[%s2 + $0xd8] sm:$0xff]
    %v1894 = vld [vmem:[%s2 + $0xe0] sm:$0xff]
    %v1895 = vld [vmem:[%s2 + $0xe8] sm:$0xff]
    %v1896 = vld [vmem:[%s2 + $0xf0] sm:$0xff]
    %v1897 = vld [vmem:[%s2 + $0xf8] sm:$0xff]
    %v1898 = vld [vmem:[%s2 + $0x100] sm:$0xff]
    %v1899 = vld [vmem:[%s2 + $0x108] sm:$0xff]
    %v1900 = vld [vmem:[%s2 + $0x110] sm:$0xff]
    %v1901 = vld [vmem:[%s2 + $0x118] sm:$0xff]
    %v1902 = vld [vmem:[%s2 + $0x120] sm:$0xff]
    %v1903 = vld [vmem:[%s2 + $0x128] sm:$0xff]
    %v1904 = vld [vmem:[%s2 + $0x130] sm:$0xff]
    %v1905 = vld [vmem:[%s2 + $0x138] sm:$0xff]
    %v1906 = vld [vmem:[%s2 + $0x140] sm:$0xff]
    %v1907 = vld [vmem:[%s2 + $0x148] sm:$0xff]
    %v1908 = vld [vmem:[%s2 + $0x150] sm:$0xff]
    %v1909 = vld [vmem:[%s2 + $0x158] sm:$0xff]
    %v1910 = vld [vmem:[%s2 + $0x160] sm:$0xff]
    %v1911 = vld [vmem:[%s2 + $0x168] sm:$0xff]
    %v1912 = vld [vmem:[%s2 + $0x170] sm:$0xff]
    %v1913 = vld [vmem:[%s2 + $0x178] sm:$0xff]
    %v1914 = vld [vmem:[%s2 + $0x180] sm:$0xff]
    %v1915 = vld [vmem:[%s2 + $0x188] sm:$0xff]
    %v1916 = vld [vmem:[%s2 + $0x190] sm:$0xff]
    %v1917 = vld [vmem:[%s2 + $0x198] sm:$0xff]
    %v1918 = vld [vmem:[%s2 + $0x1a0] sm:$0xff]
    %v1919 = vld [vmem:[%s2 + $0x1a8] sm:$0xff]
    %v1920 = vld [vmem:[%s2 + $0x1b0] sm:$0xff]
    %v1921 = vld [vmem:[%s2 + $0x1b8] sm:$0xff]
    %v1922 = vld [vmem:[%s2 + $0x1c0] sm:$0xff]
    %v1923 = vld [vmem:[%s2 + $0x1c8] sm:$0xff]
    %v1924 = vld [vmem:[%s2 + $0x1d0] sm:$0xff]
    %v1925 = vld [vmem:[%s2 + $0x1d8] sm:$0xff]
    %v1926 = vld [vmem:[%s2 + $0x1e0] sm:$0xff]
    %v1927 = vld [vmem:[%s2 + $0x1e8] sm:$0xff]
    %v1928 = vld [vmem:[%s2 + $0x1f0] sm:$0xff]
    %v1929 = vld [vmem:[%s2 + $0x1f8] sm:$0xff]
    %v1930 = vld [vmem:[%s2 + $0x200] sm:$0xff]
    %v1931 = vld [vmem:[%s2 + $0x208] sm:$0xff]
    %v1932 = vld [vmem:[%s2 + $0x210] sm:$0xff]
    %v1933 = vld [vmem:[%s2 + $0x218] sm:$0xff]
    %v1934 = vld [vmem:[%s2 + $0x220] sm:$0xff]
    %v1935 = vld [vmem:[%s2 + $0x228] sm:$0xff]
    %v1936 = vld [vmem:[%s2 + $0x230] sm:$0xff]
    %v1937 = vld [vmem:[%s2 + $0x238] sm:$0xff]
    %v1938 = vld [vmem:[%s2 + $0x240] sm:$0xff]
    %v1939 = vld [vmem:[%s2 + $0x248] sm:$0xff]
    %v1940 = vld [vmem:[%s2 + $0x250] sm:$0xff]
    %v1941 = vld [vmem:[%s2 + $0x258] sm:$0xff]
    %v1942 = vld [vmem:[%s2 + $0x260] sm:$0xff]
    %v1943 = vld [vmem:[%s2 + $0x268] sm:$0xff]
    %v1944 = vld [vmem:[%s2 + $0x270] sm:$0xff]
    %v1945 = vld [vmem:[%s2 + $0x278] sm:$0xff]
    %v1946 = vld [vmem:[%s2 + $0x280] sm:$0xff]
    %v1947 = vld [vmem:[%s2 + $0x288] sm:$0xff]
    %v1948 = vld [vmem:[%s2 + $0x290] sm:$0xff]
    %v1949 = vld [vmem:[%s2 + $0x298] sm:$0xff]
    %v1950 = vld [vmem:[%s2 + $0x2a0] sm:$0xff]
    %v1951 = vld [vmem:[%s2 + $0x2a8] sm:$0xff]
    %v1952 = vld [vmem:[%s2 + $0x2b0] sm:$0xff]
    %v1953 = vld [vmem:[%s2 + $0x2b8] sm:$0xff]
    %v1954 = vld [vmem:[%s2 + $0x2c0] sm:$0xff]
    %v1955 = vld [vmem:[%s2 + $0x2c8] sm:$0xff]
    %v1956 = vld [vmem:[%s2 + $0x2d0] sm:$0xff]
    %v1957 = vld [vmem:[%s2 + $0x2d8] sm:$0xff]
    %v1958 = vld [vmem:[%s2 + $0x2e0] sm:$0xff]
    %v1959 = vld [vmem:[%s2 + $0x2e8] sm:$0xff]
    %v1960 = vld [vmem:[%s2 + $0x2f0] sm:$0xff]
    %v1961 = vld [vmem:[%s2 + $0x2f8] sm:$0xff]
    %v1962 = vld [vmem:[%s2 + $0x300] sm:$0xff]
    %v1963 = vld [vmem:[%s2 + $0x308] sm:$0xff]
    %v1964 = vld [vmem:[%s2 + $0x310] sm:$0xff]
    %v1965 = vld [vmem:[%s2 + $0x318] sm:$0xff]
    %v1966 = vld [vmem:[%s2 + $0x320] sm:$0xff]
    %v1967 = vld [vmem:[%s2 + $0x328] sm:$0xff]
    %v1968 = vld [vmem:[%s2 + $0x330] sm:$0xff]
    %v1969 = vld [vmem:[%s2 + $0x338] sm:$0xff]
    %v1970 = vld [vmem:[%s2 + $0x340] sm:$0xff]
    %v1971 = vld [vmem:[%s2 + $0x348] sm:$0xff]
    %v1972 = vld [vmem:[%s2 + $0x350] sm:$0xff]
    %v1973 = vld [vmem:[%s2 + $0x358] sm:$0xff]
    %v1974 = vld [vmem:[%s2 + $0x360] sm:$0xff]
    %v1975 = vld [vmem:[%s2 + $0x368] sm:$0xff]
    %v1976 = vld [vmem:[%s2 + $0x370] sm:$0xff]
    %v1977 = vld [vmem:[%s2 + $0x378] sm:$0xff]
    %v1978 = vld [vmem:[%s2 + $0x380] sm:$0xff]
    %v1979 = vld [vmem:[%s2 + $0x388] sm:$0xff]
    %v1980 = vld [vmem:[%s2 + $0x390] sm:$0xff]
    %v1981 = vld [vmem:[%s2 + $0x398] sm:$0xff]
    %v1982 = vld [vmem:[%s2 + $0x3a0] sm:$0xff]
    %v1983 = vld [vmem:[%s2 + $0x3a8] sm:$0xff]
    %v1984 = vld [vmem:[%s2 + $0x3b0] sm:$0xff]
    %v1985 = vld [vmem:[%s2 + $0x3b8] sm:$0xff]
    %v1986 = vld [vmem:[%s2 + $0x3c0] sm:$0xff]
    %v1987 = vld [vmem:[%s2 + $0x3c8] sm:$0xff]
    %v1988 = vld [vmem:[%s2 + $0x3d0] sm:$0xff]
    %v1989 = vld [vmem:[%s2 + $0x3d8] sm:$0xff]
    %v1990 = vld [vmem:[%s2 + $0x3e0] sm:$0xff]
    %v1991 = vld [vmem:[%s2 + $0x3e8] sm:$0xff]
    %v1992 = vld [vmem:[%s2 + $0x3f0] sm:$0xff]
    %v1993 = vld [vmem:[%s2 + $0x3f8] sm:$0xff]
    %s1994 = scalar_lea.vmem %s7, 1
    %v1995 = vld [vmem:[%s1994] ss:$8 sm:$0xf]
    %v1997 = vlaneseq
    %v1998 = vshrl.u32 %v1997, 7
    %v1999 = vsub.s32 0, %v1998
    %v2000 = vrot.slane %v1995, %v1999
    %v2001 = vlaneseq
    %v2002 = vshrl.u32 %v2001, 7
    %v2003 = vsub.s32 1, %v2002
    %v2004 = vrot.slane %v1995, %v2003
    %v2005 = vlaneseq
    %v2006 = vshrl.u32 %v2005, 7
    %v2007 = vsub.s32 2, %v2006
    %v2008 = vrot.slane %v1995, %v2007
    %v2009 = vlaneseq
    %v2010 = vshrl.u32 %v2009, 7
    %v2011 = vsub.s32 3, %v2010
    %v2012 = vrot.slane %v1995, %v2011
    %v2145 = vunpack.c.l.b16 %v1866
    %v2146 = vunpack.c.h.b16 %v1866
    %v2147 = vunpack.c.l.b16 %v1867
    %v2148 = vunpack.c.h.b16 %v1867
    %v2149 = vunpack.c.l.b16 %v1868
    %v2150 = vunpack.c.h.b16 %v1868
    %v2151 = vunpack.c.l.b16 %v1869
    %v2152 = vunpack.c.h.b16 %v1869
    %v2153 = vunpack.c.l.b16 %v1870
    %v2154 = vunpack.c.h.b16 %v1870
    %v2155 = vunpack.c.l.b16 %v1871
    %v2156 = vunpack.c.h.b16 %v1871
    %v2157 = vunpack.c.l.b16 %v1872
    %v2158 = vunpack.c.h.b16 %v1872
    %v2159 = vunpack.c.l.b16 %v1873
    %v2160 = vunpack.c.h.b16 %v1873
    %v2161 = vunpack.c.l.b16 %v1874
    %v2162 = vunpack.c.h.b16 %v1874
    %v2163 = vunpack.c.l.b16 %v1875
    %v2164 = vunpack.c.h.b16 %v1875
    %v2165 = vunpack.c.l.b16 %v1876
    %v2166 = vunpack.c.h.b16 %v1876
    %v2167 = vunpack.c.l.b16 %v1877
    %v2168 = vunpack.c.h.b16 %v1877
    %v2169 = vunpack.c.l.b16 %v1878
    %v2170 = vunpack.c.h.b16 %v1878
    %v2171 = vunpack.c.l.b16 %v1879
    %v2172 = vunpack.c.h.b16 %v1879
    %v2173 = vunpack.c.l.b16 %v1880
    %v2174 = vunpack.c.h.b16 %v1880
    %v2175 = vunpack.c.l.b16 %v1881
    %v2176 = vunpack.c.h.b16 %v1881
    %v2177 = vunpack.c.l.b16 %v1882
    %v2178 = vunpack.c.h.b16 %v1882
    %v2179 = vunpack.c.l.b16 %v1883
    %v2180 = vunpack.c.h.b16 %v1883
    %v2181 = vunpack.c.l.b16 %v1884
    %v2182 = vunpack.c.h.b16 %v1884
    %v2183 = vunpack.c.l.b16 %v1885
    %v2184 = vunpack.c.h.b16 %v1885
    %v2185 = vunpack.c.l.b16 %v1886
    %v2186 = vunpack.c.h.b16 %v1886
    %v2187 = vunpack.c.l.b16 %v1887
    %v2188 = vunpack.c.h.b16 %v1887
    %v2189 = vunpack.c.l.b16 %v1888
    %v2190 = vunpack.c.h.b16 %v1888
    %v2191 = vunpack.c.l.b16 %v1889
    %v2192 = vunpack.c.h.b16 %v1889
    %v2193 = vunpack.c.l.b16 %v1890
    %v2194 = vunpack.c.h.b16 %v1890
    %v2195 = vunpack.c.l.b16 %v1891
    %v2196 = vunpack.c.h.b16 %v1891
    %v2197 = vunpack.c.l.b16 %v1892
    %v2198 = vunpack.c.h.b16 %v1892
    %v2199 = vunpack.c.l.b16 %v1893
    %v2200 = vunpack.c.h.b16 %v1893
    %v2201 = vunpack.c.l.b16 %v1894
    %v2202 = vunpack.c.h.b16 %v1894
    %v2203 = vunpack.c.l.b16 %v1895
    %v2204 = vunpack.c.h.b16 %v1895
    %v2205 = vunpack.c.l.b16 %v1896
    %v2206 = vunpack.c.h.b16 %v1896
    %v2207 = vunpack.c.l.b16 %v1897
    %v2208 = vunpack.c.h.b16 %v1897
    %v2209 = vunpack.c.l.b16 %v1898
    %v2210 = vunpack.c.h.b16 %v1898
    %v2211 = vunpack.c.l.b16 %v1899
    %v2212 = vunpack.c.h.b16 %v1899
    %v2213 = vunpack.c.l.b16 %v1900
    %v2214 = vunpack.c.h.b16 %v1900
    %v2215 = vunpack.c.l.b16 %v1901
    %v2216 = vunpack.c.h.b16 %v1901
    %v2217 = vunpack.c.l.b16 %v1902
    %v2218 = vunpack.c.h.b16 %v1902
    %v2219 = vunpack.c.l.b16 %v1903
    %v2220 = vunpack.c.h.b16 %v1903
    %v2221 = vunpack.c.l.b16 %v1904
    %v2222 = vunpack.c.h.b16 %v1904
    %v2223 = vunpack.c.l.b16 %v1905
    %v2224 = vunpack.c.h.b16 %v1905
    %v2225 = vunpack.c.l.b16 %v1906
    %v2226 = vunpack.c.h.b16 %v1906
    %v2227 = vunpack.c.l.b16 %v1907
    %v2228 = vunpack.c.h.b16 %v1907
    %v2229 = vunpack.c.l.b16 %v1908
    %v2230 = vunpack.c.h.b16 %v1908
    %v2231 = vunpack.c.l.b16 %v1909
    %v2232 = vunpack.c.h.b16 %v1909
    %v2233 = vunpack.c.l.b16 %v1910
    %v2234 = vunpack.c.h.b16 %v1910
    %v2235 = vunpack.c.l.b16 %v1911
    %v2236 = vunpack.c.h.b16 %v1911
    %v2237 = vunpack.c.l.b16 %v1912
    %v2238 = vunpack.c.h.b16 %v1912
    %v2239 = vunpack.c.l.b16 %v1913
    %v2240 = vunpack.c.h.b16 %v1913
    %v2241 = vunpack.c.l.b16 %v1914
    %v2242 = vunpack.c.h.b16 %v1914
    %v2243 = vunpack.c.l.b16 %v1915
    %v2244 = vunpack.c.h.b16 %v1915
    %v2245 = vunpack.c.l.b16 %v1916
    %v2246 = vunpack.c.h.b16 %v1916
    %v2247 = vunpack.c.l.b16 %v1917
    %v2248 = vunpack.c.h.b16 %v1917
    %v2249 = vunpack.c.l.b16 %v1918
    %v2250 = vunpack.c.h.b16 %v1918
    %v2251 = vunpack.c.l.b16 %v1919
    %v2252 = vunpack.c.h.b16 %v1919
    %v2253 = vunpack.c.l.b16 %v1920
    %v2254 = vunpack.c.h.b16 %v1920
    %v2255 = vunpack.c.l.b16 %v1921
    %v2256 = vunpack.c.h.b16 %v1921
    %v2257 = vunpack.c.l.b16 %v1922
    %v2258 = vunpack.c.h.b16 %v1922
    %v2259 = vunpack.c.l.b16 %v1923
    %v2260 = vunpack.c.h.b16 %v1923
    %v2261 = vunpack.c.l.b16 %v1924
    %v2262 = vunpack.c.h.b16 %v1924
    %v2263 = vunpack.c.l.b16 %v1925
    %v2264 = vunpack.c.h.b16 %v1925
    %v2265 = vunpack.c.l.b16 %v1926
    %v2266 = vunpack.c.h.b16 %v1926
    %v2267 = vunpack.c.l.b16 %v1927
    %v2268 = vunpack.c.h.b16 %v1927
    %v2269 = vunpack.c.l.b16 %v1928
    %v2270 = vunpack.c.h.b16 %v1928
    %v2271 = vunpack.c.l.b16 %v1929
    %v2272 = vunpack.c.h.b16 %v1929
    %v2273 = vunpack.c.l.b16 %v1930
    %v2274 = vunpack.c.h.b16 %v1930
    %v2275 = vunpack.c.l.b16 %v1931
    %v2276 = vunpack.c.h.b16 %v1931
    %v2277 = vunpack.c.l.b16 %v1932
    %v2278 = vunpack.c.h.b16 %v1932
    %v2279 = vunpack.c.l.b16 %v1933
    %v2280 = vunpack.c.h.b16 %v1933
    %v2281 = vunpack.c.l.b16 %v1934
    %v2282 = vunpack.c.h.b16 %v1934
    %v2283 = vunpack.c.l.b16 %v1935
    %v2284 = vunpack.c.h.b16 %v1935
    %v2285 = vunpack.c.l.b16 %v1936
    %v2286 = vunpack.c.h.b16 %v1936
    %v2287 = vunpack.c.l.b16 %v1937
    %v2288 = vunpack.c.h.b16 %v1937
    %v2289 = vunpack.c.l.b16 %v1938
    %v2290 = vunpack.c.h.b16 %v1938
    %v2291 = vunpack.c.l.b16 %v1939
    %v2292 = vunpack.c.h.b16 %v1939
    %v2293 = vunpack.c.l.b16 %v1940
    %v2294 = vunpack.c.h.b16 %v1940
    %v2295 = vunpack.c.l.b16 %v1941
    %v2296 = vunpack.c.h.b16 %v1941
    %v2297 = vunpack.c.l.b16 %v1942
    %v2298 = vunpack.c.h.b16 %v1942
    %v2299 = vunpack.c.l.b16 %v1943
    %v2300 = vunpack.c.h.b16 %v1943
    %v2301 = vunpack.c.l.b16 %v1944
    %v2302 = vunpack.c.h.b16 %v1944
    %v2303 = vunpack.c.l.b16 %v1945
    %v2304 = vunpack.c.h.b16 %v1945
    %v2305 = vunpack.c.l.b16 %v1946
    %v2306 = vunpack.c.h.b16 %v1946
    %v2307 = vunpack.c.l.b16 %v1947
    %v2308 = vunpack.c.h.b16 %v1947
    %v2309 = vunpack.c.l.b16 %v1948
    %v2310 = vunpack.c.h.b16 %v1948
    %v2311 = vunpack.c.l.b16 %v1949
    %v2312 = vunpack.c.h.b16 %v1949
    %v2313 = vunpack.c.l.b16 %v1950
    %v2314 = vunpack.c.h.b16 %v1950
    %v2315 = vunpack.c.l.b16 %v1951
    %v2316 = vunpack.c.h.b16 %v1951
    %v2317 = vunpack.c.l.b16 %v1952
    %v2318 = vunpack.c.h.b16 %v1952
    %v2319 = vunpack.c.l.b16 %v1953
    %v2320 = vunpack.c.h.b16 %v1953
    %v2321 = vunpack.c.l.b16 %v1954
    %v2322 = vunpack.c.h.b16 %v1954
    %v2323 = vunpack.c.l.b16 %v1955
    %v2324 = vunpack.c.h.b16 %v1955
    %v2325 = vunpack.c.l.b16 %v1956
    %v2326 = vunpack.c.h.b16 %v1956
    %v2327 = vunpack.c.l.b16 %v1957
    %v2328 = vunpack.c.h.b16 %v1957
    %v2329 = vunpack.c.l.b16 %v1958
    %v2330 = vunpack.c.h.b16 %v1958
    %v2331 = vunpack.c.l.b16 %v1959
    %v2332 = vunpack.c.h.b16 %v1959
    %v2333 = vunpack.c.l.b16 %v1960
    %v2334 = vunpack.c.h.b16 %v1960
    %v2335 = vunpack.c.l.b16 %v1961
    %v2336 = vunpack.c.h.b16 %v1961
    %v2337 = vunpack.c.l.b16 %v1962
    %v2338 = vunpack.c.h.b16 %v1962
    %v2339 = vunpack.c.l.b16 %v1963
    %v2340 = vunpack.c.h.b16 %v1963
    %v2341 = vunpack.c.l.b16 %v1964
    %v2342 = vunpack.c.h.b16 %v1964
    %v2343 = vunpack.c.l.b16 %v1965
    %v2344 = vunpack.c.h.b16 %v1965
    %v2345 = vunpack.c.l.b16 %v1966
    %v2346 = vunpack.c.h.b16 %v1966
    %v2347 = vunpack.c.l.b16 %v1967
    %v2348 = vunpack.c.h.b16 %v1967
    %v2349 = vunpack.c.l.b16 %v1968
    %v2350 = vunpack.c.h.b16 %v1968
    %v2351 = vunpack.c.l.b16 %v1969
    %v2352 = vunpack.c.h.b16 %v1969
    %v2353 = vunpack.c.l.b16 %v1970
    %v2354 = vunpack.c.h.b16 %v1970
    %v2355 = vunpack.c.l.b16 %v1971
    %v2356 = vunpack.c.h.b16 %v1971
    %v2357 = vunpack.c.l.b16 %v1972
    %v2358 = vunpack.c.h.b16 %v1972
    %v2359 = vunpack.c.l.b16 %v1973
    %v2360 = vunpack.c.h.b16 %v1973
    %v2361 = vunpack.c.l.b16 %v1974
    %v2362 = vunpack.c.h.b16 %v1974
    %v2363 = vunpack.c.l.b16 %v1975
    %v2364 = vunpack.c.h.b16 %v1975
    %v2365 = vunpack.c.l.b16 %v1976
    %v2366 = vunpack.c.h.b16 %v1976
    %v2367 = vunpack.c.l.b16 %v1977
    %v2368 = vunpack.c.h.b16 %v1977
    %v2369 = vunpack.c.l.b16 %v1978
    %v2370 = vunpack.c.h.b16 %v1978
    %v2371 = vunpack.c.l.b16 %v1979
    %v2372 = vunpack.c.h.b16 %v1979
    %v2373 = vunpack.c.l.b16 %v1980
    %v2374 = vunpack.c.h.b16 %v1980
    %v2375 = vunpack.c.l.b16 %v1981
    %v2376 = vunpack.c.h.b16 %v1981
    %v2377 = vunpack.c.l.b16 %v1982
    %v2378 = vunpack.c.h.b16 %v1982
    %v2379 = vunpack.c.l.b16 %v1983
    %v2380 = vunpack.c.h.b16 %v1983
    %v2381 = vunpack.c.l.b16 %v1984
    %v2382 = vunpack.c.h.b16 %v1984
    %v2383 = vunpack.c.l.b16 %v1985
    %v2384 = vunpack.c.h.b16 %v1985
    %v2385 = vunpack.c.l.b16 %v1986
    %v2386 = vunpack.c.h.b16 %v1986
    %v2387 = vunpack.c.l.b16 %v1987
    %v2388 = vunpack.c.h.b16 %v1987
    %v2389 = vunpack.c.l.b16 %v1988
    %v2390 = vunpack.c.h.b16 %v1988
    %v2391 = vunpack.c.l.b16 %v1989
    %v2392 = vunpack.c.h.b16 %v1989
    %v2393 = vunpack.c.l.b16 %v1990
    %v2394 = vunpack.c.h.b16 %v1990
    %v2395 = vunpack.c.l.b16 %v1991
    %v2396 = vunpack.c.h.b16 %v1991
    %v2397 = vunpack.c.l.b16 %v1992
    %v2398 = vunpack.c.h.b16 %v1992
    %v2399 = vunpack.c.l.b16 %v1993
    %v2400 = vunpack.c.h.b16 %v1993
    %v2401 = vpack.c.b16 %v2149, %v2145
    %v2402 = vpack.c.b16 %v2150, %v2146
    %v2403 = vpack.c.b16 %v2151, %v2147
    %v2404 = vpack.c.b16 %v2152, %v2148
    %v2405 = vpack.c.b16 %v2157, %v2153
    %v2406 = vpack.c.b16 %v2158, %v2154
    %v2407 = vpack.c.b16 %v2159, %v2155
    %v2408 = vpack.c.b16 %v2160, %v2156
    %v2409 = vpack.c.b16 %v2165, %v2161
    %v2410 = vpack.c.b16 %v2166, %v2162
    %v2411 = vpack.c.b16 %v2167, %v2163
    %v2412 = vpack.c.b16 %v2168, %v2164
    %v2413 = vpack.c.b16 %v2173, %v2169
    %v2414 = vpack.c.b16 %v2174, %v2170
    %v2415 = vpack.c.b16 %v2175, %v2171
    %v2416 = vpack.c.b16 %v2176, %v2172
    %v2417 = vpack.c.b16 %v2181, %v2177
    %v2418 = vpack.c.b16 %v2182, %v2178
    %v2419 = vpack.c.b16 %v2183, %v2179
    %v2420 = vpack.c.b16 %v2184, %v2180
    %v2421 = vpack.c.b16 %v2189, %v2185
    %v2422 = vpack.c.b16 %v2190, %v2186
    %v2423 = vpack.c.b16 %v2191, %v2187
    %v2424 = vpack.c.b16 %v2192, %v2188
    %v2425 = vpack.c.b16 %v2197, %v2193
    %v2426 = vpack.c.b16 %v2198, %v2194
    %v2427 = vpack.c.b16 %v2199, %v2195
    %v2428 = vpack.c.b16 %v2200, %v2196
    %v2429 = vpack.c.b16 %v2205, %v2201
    %v2430 = vpack.c.b16 %v2206, %v2202
    %v2431 = vpack.c.b16 %v2207, %v2203
    %v2432 = vpack.c.b16 %v2208, %v2204
    %v2433 = vpack.c.b16 %v2213, %v2209
    %v2434 = vpack.c.b16 %v2214, %v2210
    %v2435 = vpack.c.b16 %v2215, %v2211
    %v2436 = vpack.c.b16 %v2216, %v2212
    %v2437 = vpack.c.b16 %v2221, %v2217
    %v2438 = vpack.c.b16 %v2222, %v2218
    %v2439 = vpack.c.b16 %v2223, %v2219
    %v2440 = vpack.c.b16 %v2224, %v2220
    %v2441 = vpack.c.b16 %v2229, %v2225
    %v2442 = vpack.c.b16 %v2230, %v2226
    %v2443 = vpack.c.b16 %v2231, %v2227
    %v2444 = vpack.c.b16 %v2232, %v2228
    %v2445 = vpack.c.b16 %v2237, %v2233
    %v2446 = vpack.c.b16 %v2238, %v2234
    %v2447 = vpack.c.b16 %v2239, %v2235
    %v2448 = vpack.c.b16 %v2240, %v2236
    %v2449 = vpack.c.b16 %v2245, %v2241
    %v2450 = vpack.c.b16 %v2246, %v2242
    %v2451 = vpack.c.b16 %v2247, %v2243
    %v2452 = vpack.c.b16 %v2248, %v2244
    %v2453 = vpack.c.b16 %v2253, %v2249
    %v2454 = vpack.c.b16 %v2254, %v2250
    %v2455 = vpack.c.b16 %v2255, %v2251
    %v2456 = vpack.c.b16 %v2256, %v2252
    %v2457 = vpack.c.b16 %v2261, %v2257
    %v2458 = vpack.c.b16 %v2262, %v2258
    %v2459 = vpack.c.b16 %v2263, %v2259
    %v2460 = vpack.c.b16 %v2264, %v2260
    %v2461 = vpack.c.b16 %v2269, %v2265
    %v2462 = vpack.c.b16 %v2270, %v2266
    %v2463 = vpack.c.b16 %v2271, %v2267
    %v2464 = vpack.c.b16 %v2272, %v2268
    %v2465 = vpack.c.b16 %v2277, %v2273
    %v2466 = vpack.c.b16 %v2278, %v2274
    %v2467 = vpack.c.b16 %v2279, %v2275
    %v2468 = vpack.c.b16 %v2280, %v2276
    %v2469 = vpack.c.b16 %v2285, %v2281
    %v2470 = vpack.c.b16 %v2286, %v2282
    %v2471 = vpack.c.b16 %v2287, %v2283
    %v2472 = vpack.c.b16 %v2288, %v2284
    %v2473 = vpack.c.b16 %v2293, %v2289
    %v2474 = vpack.c.b16 %v2294, %v2290
    %v2475 = vpack.c.b16 %v2295, %v2291
    %v2476 = vpack.c.b16 %v2296, %v2292
    %v2477 = vpack.c.b16 %v2301, %v2297
    %v2478 = vpack.c.b16 %v2302, %v2298
    %v2479 = vpack.c.b16 %v2303, %v2299
    %v2480 = vpack.c.b16 %v2304, %v2300
    %v2481 = vpack.c.b16 %v2309, %v2305
    %v2482 = vpack.c.b16 %v2310, %v2306
    %v2483 = vpack.c.b16 %v2311, %v2307
    %v2484 = vpack.c.b16 %v2312, %v2308
    %v2485 = vpack.c.b16 %v2317, %v2313
    %v2486 = vpack.c.b16 %v2318, %v2314
    %v2487 = vpack.c.b16 %v2319, %v2315
    %v2488 = vpack.c.b16 %v2320, %v2316
    %v2489 = vpack.c.b16 %v2325, %v2321
    %v2490 = vpack.c.b16 %v2326, %v2322
    %v2491 = vpack.c.b16 %v2327, %v2323
    %v2492 = vpack.c.b16 %v2328, %v2324
    %v2493 = vpack.c.b16 %v2333, %v2329
    %v2494 = vpack.c.b16 %v2334, %v2330
    %v2495 = vpack.c.b16 %v2335, %v2331
    %v2496 = vpack.c.b16 %v2336, %v2332
    %v2497 = vpack.c.b16 %v2341, %v2337
    %v2498 = vpack.c.b16 %v2342, %v2338
    %v2499 = vpack.c.b16 %v2343, %v2339
    %v2500 = vpack.c.b16 %v2344, %v2340
    %v2501 = vpack.c.b16 %v2349, %v2345
    %v2502 = vpack.c.b16 %v2350, %v2346
    %v2503 = vpack.c.b16 %v2351, %v2347
    %v2504 = vpack.c.b16 %v2352, %v2348
    %v2505 = vpack.c.b16 %v2357, %v2353
    %v2506 = vpack.c.b16 %v2358, %v2354
    %v2507 = vpack.c.b16 %v2359, %v2355
    %v2508 = vpack.c.b16 %v2360, %v2356
    %v2509 = vpack.c.b16 %v2365, %v2361
    %v2510 = vpack.c.b16 %v2366, %v2362
    %v2511 = vpack.c.b16 %v2367, %v2363
    %v2512 = vpack.c.b16 %v2368, %v2364
    %v2513 = vpack.c.b16 %v2373, %v2369
    %v2514 = vpack.c.b16 %v2374, %v2370
    %v2515 = vpack.c.b16 %v2375, %v2371
    %v2516 = vpack.c.b16 %v2376, %v2372
    %v2517 = vpack.c.b16 %v2381, %v2377
    %v2518 = vpack.c.b16 %v2382, %v2378
    %v2519 = vpack.c.b16 %v2383, %v2379
    %v2520 = vpack.c.b16 %v2384, %v2380
    %v2521 = vpack.c.b16 %v2389, %v2385
    %v2522 = vpack.c.b16 %v2390, %v2386
    %v2523 = vpack.c.b16 %v2391, %v2387
    %v2524 = vpack.c.b16 %v2392, %v2388
    %v2525 = vpack.c.b16 %v2397, %v2393
    %v2526 = vpack.c.b16 %v2398, %v2394
    %v2527 = vpack.c.b16 %v2399, %v2395
    %v2528 = vpack.c.b16 %v2400, %v2396
    %2657 = vmatprep.subr.bf16.mxu0 %v2402
    %2658 = vmatpush1.bf16.msra.mxu0 %v2401
    %2659 = vmatprep.subr.bf16.mxu0 %v2406
    %2660 = vmatpush1.bf16.msra.mxu0 %v2405
    %2661 = vmatprep.subr.bf16.mxu0 %v2410
    %2662 = vmatpush1.bf16.msra.mxu0 %v2409
    %2663 = vmatprep.subr.bf16.mxu0 %v2414
    %2664 = vmatpush1.bf16.msra.mxu0 %v2413
    %2665 = vmatprep.subr.bf16.mxu0 %v2418
    %2666 = vmatpush1.bf16.msra.mxu0 %v2417
    %2667 = vmatprep.subr.bf16.mxu0 %v2422
    %2668 = vmatpush1.bf16.msra.mxu0 %v2421
    %2669 = vmatprep.subr.bf16.mxu0 %v2426
    %2670 = vmatpush1.bf16.msra.mxu0 %v2425
    %2671 = vmatprep.subr.bf16.mxu0 %v2430
    %2672 = vmatpush1.bf16.msra.mxu0 %v2429
    %2673 = vmatprep.subr.bf16.mxu0 %v2434
    %2674 = vmatpush1.bf16.msra.mxu0 %v2433
    %2675 = vmatprep.subr.bf16.mxu0 %v2438
    %2676 = vmatpush1.bf16.msra.mxu0 %v2437
    %2677 = vmatprep.subr.bf16.mxu0 %v2442
    %2678 = vmatpush1.bf16.msra.mxu0 %v2441
    %2679 = vmatprep.subr.bf16.mxu0 %v2446
    %2680 = vmatpush1.bf16.msra.mxu0 %v2445
    %2681 = vmatprep.subr.bf16.mxu0 %v2450
    %2682 = vmatpush1.bf16.msra.mxu0 %v2449
    %2683 = vmatprep.subr.bf16.mxu0 %v2454
    %2684 = vmatpush1.bf16.msra.mxu0 %v2453
    %2685 = vmatprep.subr.bf16.mxu0 %v2458
    %2686 = vmatpush1.bf16.msra.mxu0 %v2457
    %2687 = vmatprep.subr.bf16.mxu0 %v2462
    %2688 = vmatpush1.bf16.msra.mxu0 %v2461
    %2689 = vmatprep.mubr.bf16.mxu0 %v1863
    %2690 = vmatmul.mubr.bf16.gmra.mrb[0].mxu0 %v1862
    %v2691 = vpop.f32.mrb[0].mxu0
    %v2692 = vadd.f32 %v2000, %v2691
    %v2693 = vpop.f32.mrb[0].mxu0
    %v2694 = vadd.f32 %v2004, %v2693
    %v2695 = vpop.f32.mrb[0].mxu0
    %v2696 = vadd.f32 %v2000, %v2695
    %v2697 = vpop.f32.mrb[0].mxu0
    %v2698 = vadd.f32 %v2004, %v2697
    %2699 = vdwg.mxu0
    %2700 = vmatprep.subr.bf16.mxu0 %v2466
    %2701 = vmatpush1.bf16.msra.mxu0 %v2465
    %2702 = vmatprep.subr.bf16.mxu0 %v2470
    %2703 = vmatpush1.bf16.msra.mxu0 %v2469
    %2704 = vmatprep.subr.bf16.mxu0 %v2474
    %2705 = vmatpush1.bf16.msra.mxu0 %v2473
    %2706 = vmatprep.subr.bf16.mxu0 %v2478
    %2707 = vmatpush1.bf16.msra.mxu0 %v2477
    %2708 = vmatprep.subr.bf16.mxu0 %v2482
    %2709 = vmatpush1.bf16.msra.mxu0 %v2481
    %2710 = vmatprep.subr.bf16.mxu0 %v2486
    %2711 = vmatpush1.bf16.msra.mxu0 %v2485
    %2712 = vmatprep.subr.bf16.mxu0 %v2490
    %2713 = vmatpush1.bf16.msra.mxu0 %v2489
    %2714 = vmatprep.subr.bf16.mxu0 %v2494
    %2715 = vmatpush1.bf16.msra.mxu0 %v2493
    %2716 = vmatprep.subr.bf16.mxu0 %v2498
    %2717 = vmatpush1.bf16.msra.mxu0 %v2497
    %2718 = vmatprep.subr.bf16.mxu0 %v2502
    %2719 = vmatpush1.bf16.msra.mxu0 %v2501
    %2720 = vmatprep.subr.bf16.mxu0 %v2506
    %2721 = vmatpush1.bf16.msra.mxu0 %v2505
    %2722 = vmatprep.subr.bf16.mxu0 %v2510
    %2723 = vmatpush1.bf16.msra.mxu0 %v2509
    %2724 = vmatprep.subr.bf16.mxu0 %v2514
    %2725 = vmatpush1.bf16.msra.mxu0 %v2513
    %2726 = vmatprep.subr.bf16.mxu0 %v2518
    %2727 = vmatpush1.bf16.msra.mxu0 %v2517
    %2728 = vmatprep.subr.bf16.mxu0 %v2522
    %2729 = vmatpush1.bf16.msra.mxu0 %v2521
    %2730 = vmatprep.subr.bf16.mxu0 %v2526
    %2731 = vmatpush1.bf16.msra.mxu0 %v2525
    %2732 = vmatprep.mubr.bf16.mxu0 %v1865
    %2733 = vmatmul.mubr.bf16.gmra.mrb[0].mxu0 %v1864
    %v2734 = vpop.f32.mrb[0].mxu0
    %v2735 = vadd.f32 %v2692, %v2734
    %v2736 = vpop.f32.mrb[0].mxu0
    %v2737 = vadd.f32 %v2694, %v2736
    %v2738 = vpop.f32.mrb[0].mxu0
    %v2739 = vadd.f32 %v2696, %v2738
    %v2740 = vpop.f32.mrb[0].mxu0
    %v2741 = vadd.f32 %v2698, %v2740
    %2742 = vdwg.mxu0
    %2743 = vmatprep.subr.bf16.mxu0 %v2404
    %2744 = vmatpush1.bf16.msra.mxu0 %v2403
    %2745 = vmatprep.subr.bf16.mxu0 %v2408
    %2746 = vmatpush1.bf16.msra.mxu0 %v2407
    %2747 = vmatprep.subr.bf16.mxu0 %v2412
    %2748 = vmatpush1.bf16.msra.mxu0 %v2411
    %2749 = vmatprep.subr.bf16.mxu0 %v2416
    %2750 = vmatpush1.bf16.msra.mxu0 %v2415
    %2751 = vmatprep.subr.bf16.mxu0 %v2420
    %2752 = vmatpush1.bf16.msra.mxu0 %v2419
    %2753 = vmatprep.subr.bf16.mxu0 %v2424
    %2754 = vmatpush1.bf16.msra.mxu0 %v2423
    %2755 = vmatprep.subr.bf16.mxu0 %v2428
    %2756 = vmatpush1.bf16.msra.mxu0 %v2427
    %2757 = vmatprep.subr.bf16.mxu0 %v2432
    %2758 = vmatpush1.bf16.msra.mxu0 %v2431
    %2759 = vmatprep.subr.bf16.mxu0 %v2436
    %2760 = vmatpush1.bf16.msra.mxu0 %v2435
    %2761 = vmatprep.subr.bf16.mxu0 %v2440
    %2762 = vmatpush1.bf16.msra.mxu0 %v2439
    %2763 = vmatprep.subr.bf16.mxu0 %v2444
    %2764 = vmatpush1.bf16.msra.mxu0 %v2443
    %2765 = vmatprep.subr.bf16.mxu0 %v2448
    %2766 = vmatpush1.bf16.msra.mxu0 %v2447
    %2767 = vmatprep.subr.bf16.mxu0 %v2452
    %2768 = vmatpush1.bf16.msra.mxu0 %v2451
    %2769 = vmatprep.subr.bf16.mxu0 %v2456
    %2770 = vmatpush1.bf16.msra.mxu0 %v2455
    %2771 = vmatprep.subr.bf16.mxu0 %v2460
    %2772 = vmatpush1.bf16.msra.mxu0 %v2459
    %2773 = vmatprep.subr.bf16.mxu0 %v2464
    %2774 = vmatpush1.bf16.msra.mxu0 %v2463
    %2775 = vmatprep.mubr.bf16.mxu0 %v1863
    %2776 = vmatmul.mubr.bf16.gmra.mrb[0].mxu0 %v1862
    %v2777 = vpop.f32.mrb[0].mxu0
    %v2778 = vadd.f32 %v2008, %v2777
    %v2779 = vpop.f32.mrb[0].mxu0
    %v2780 = vadd.f32 %v2012, %v2779
    %v2781 = vpop.f32.mrb[0].mxu0
    %v2782 = vadd.f32 %v2008, %v2781
    %v2783 = vpop.f32.mrb[0].mxu0
    %v2784 = vadd.f32 %v2012, %v2783
    %2785 = vdwg.mxu0
    %2786 = vmatprep.subr.bf16.mxu0 %v2468
    %2787 = vmatpush1.bf16.msra.mxu0 %v2467
    %2788 = vmatprep.subr.bf16.mxu0 %v2472
    %2789 = vmatpush1.bf16.msra.mxu0 %v2471
    %2790 = vmatprep.subr.bf16.mxu0 %v2476
    %2791 = vmatpush1.bf16.msra.mxu0 %v2475
    %2792 = vmatprep.subr.bf16.mxu0 %v2480
    %2793 = vmatpush1.bf16.msra.mxu0 %v2479
    %2794 = vmatprep.subr.bf16.mxu0 %v2484
    %2795 = vmatpush1.bf16.msra.mxu0 %v2483
    %2796 = vmatprep.subr.bf16.mxu0 %v2488
    %2797 = vmatpush1.bf16.msra.mxu0 %v2487
    %2798 = vmatprep.subr.bf16.mxu0 %v2492
    %2799 = vmatpush1.bf16.msra.mxu0 %v2491
    %2800 = vmatprep.subr.bf16.mxu0 %v2496
    %2801 = vmatpush1.bf16.msra.mxu0 %v2495
    %2802 = vmatprep.subr.bf16.mxu0 %v2500
    %2803 = vmatpush1.bf16.msra.mxu0 %v2499
    %2804 = vmatprep.subr.bf16.mxu0 %v2504
    %2805 = vmatpush1.bf16.msra.mxu0 %v2503
    %2806 = vmatprep.subr.bf16.mxu0 %v2508
    %2807 = vmatpush1.bf16.msra.mxu0 %v2507
    %2808 = vmatprep.subr.bf16.mxu0 %v2512
    %2809 = vmatpush1.bf16.msra.mxu0 %v2511
    %2810 = vmatprep.subr.bf16.mxu0 %v2516
    %2811 = vmatpush1.bf16.msra.mxu0 %v2515
    %2812 = vmatprep.subr.bf16.mxu0 %v2520
    %2813 = vmatpush1.bf16.msra.mxu0 %v2519
    %2814 = vmatprep.subr.bf16.mxu0 %v2524
    %2815 = vmatpush1.bf16.msra.mxu0 %v2523
    %2816 = vmatprep.subr.bf16.mxu0 %v2528
    %2817 = vmatpush1.bf16.msra.mxu0 %v2527
    %2818 = vmatprep.mubr.bf16.mxu0 %v1865
    %2819 = vmatmul.mubr.bf16.gmra.mrb[0].mxu0 %v1864
    %v2820 = vpop.f32.mrb[0].mxu0
    %v2821 = vadd.f32 %v2778, %v2820
    %v2822 = vpop.f32.mrb[0].mxu0
    %v2823 = vadd.f32 %v2780, %v2822
    %v2824 = vpop.f32.mrb[0].mxu0
    %v2825 = vadd.f32 %v2782, %v2824
    %v2826 = vpop.f32.mrb[0].mxu0
    %v2827 = vadd.f32 %v2784, %v2826
    %2828 = vdwg.mxu0
    %v2829 = vmax.f32 %v2735, 0.0
    %v2830 = vmax.f32 %v2737, 0.0
    %v2831 = vmax.f32 %v2821, 0.0
    %v2832 = vmax.f32 %v2823, 0.0
    %v2833 = vmax.f32 %v2739, 0.0
    %v2834 = vmax.f32 %v2741, 0.0
    %v2835 = vmax.f32 %v2825, 0.0
    %v2836 = vmax.f32 %v2827, 0.0
    %v2837 = vpack.c.bf16 %v2833, %v2829
    %v2838 = vpack.c.bf16 %v2834, %v2830
    %v2839 = vpack.c.bf16 %v2835, %v2831
    %v2840 = vpack.c.bf16 %v2836, %v2832
    %v2841 = vld [vmem:[#allocation4] sm:$0xff]
    %v2842 = vld [vmem:[#allocation4 + $0x8] sm:$0xf]
    %v2843 = vld [vmem:[#allocation4 + $0xc] sm:$0xff]
    %v2844 = vld [vmem:[#allocation4 + $0x14] sm:$0xf]
    %v2845 = vld [vmem:[#allocation4 + $0x18] sm:$0xff]
    %v2846 = vld [vmem:[#allocation4 + $0x20] sm:$0xf]
    %v2847 = vld [vmem:[#allocation4 + $0x24] sm:$0xff]
    %v2848 = vld [vmem:[#allocation4 + $0x2c] sm:$0xf]
    %v2849 = vld [vmem:[#allocation4 + $0x30] sm:$0xff]
    %v2850 = vld [vmem:[#allocation4 + $0x38] sm:$0xf]
    %v2851 = vld [vmem:[#allocation4 + $0x3c] sm:$0xff]
    %v2852 = vld [vmem:[#allocation4 + $0x44] sm:$0xf]
    %v2853 = vld [vmem:[#allocation4 + $0x48] sm:$0xff]
    %v2854 = vld [vmem:[#allocation4 + $0x50] sm:$0xf]
    %v2855 = vld [vmem:[#allocation4 + $0x54] sm:$0xff]
    %v2856 = vld [vmem:[#allocation4 + $0x5c] sm:$0xf]
    %v2857 = vld [vmem:[#allocation4 + $0x60] sm:$0xff]
    %v2858 = vld [vmem:[#allocation4 + $0x68] sm:$0xf]
    %v2859 = vld [vmem:[#allocation4 + $0x6c] sm:$0xff]
    %v2860 = vld [vmem:[#allocation4 + $0x74] sm:$0xf]
    %v2861 = vld [vmem:[#allocation4 + $0x78] sm:$0xff]
    %v2862 = vld [vmem:[#allocation4 + $0x80] sm:$0xf]
    %v2863 = vld [vmem:[#allocation4 + $0x84] sm:$0xff]
    %v2864 = vld [vmem:[#allocation4 + $0x8c] sm:$0xf]
    %v2865 = vld [vmem:[#allocation4 + $0x90] sm:$0xff]
    %v2866 = vld [vmem:[#allocation4 + $0x98] sm:$0xf]
    %v2867 = vld [vmem:[#allocation4 + $0x9c] sm:$0xff]
    %v2868 = vld [vmem:[#allocation4 + $0xa4] sm:$0xf]
    %v2869 = vld [vmem:[#allocation4 + $0xa8] sm:$0xff]
    %v2870 = vld [vmem:[#allocation4 + $0xb0] sm:$0xf]
    %v2871 = vld [vmem:[#allocation4 + $0xb4] sm:$0xff]
    %v2872 = vld [vmem:[#allocation4 + $0xbc] sm:$0xf]
    %v2873 = vld [vmem:[#allocation4 + $0xc0] sm:$0xff]
    %v2874 = vld [vmem:[#allocation4 + $0xc8] sm:$0xf]
    %v2875 = vld [vmem:[#allocation4 + $0xcc] sm:$0xff]
    %v2876 = vld [vmem:[#allocation4 + $0xd4] sm:$0xf]
    %v2877 = vld [vmem:[#allocation4 + $0xd8] sm:$0xff]
    %v2878 = vld [vmem:[#allocation4 + $0xe0] sm:$0xf]
    %v2879 = vld [vmem:[#allocation4 + $0xe4] sm:$0xff]
    %v2880 = vld [vmem:[#allocation4 + $0xec] sm:$0xf]
    %v2881 = vld [vmem:[#allocation4 + $0xf0] sm:$0xff]
    %v2882 = vld [vmem:[#allocation4 + $0xf8] sm:$0xf]
    %v2883 = vld [vmem:[#allocation4 + $0xfc] sm:$0xff]
    %v2884 = vld [vmem:[#allocation4 + $0x104] sm:$0xf]
    %v2885 = vld [vmem:[#allocation4 + $0x108] sm:$0xff]
    %v2886 = vld [vmem:[#allocation4 + $0x110] sm:$0xf]
    %v2887 = vld [vmem:[#allocation4 + $0x114] sm:$0xff]
    %v2888 = vld [vmem:[#allocation4 + $0x11c] sm:$0xf]
    %v2889 = vld [vmem:[#allocation4 + $0x120] sm:$0xff]
    %v2890 = vld [vmem:[#allocation4 + $0x128] sm:$0xf]
    %v2891 = vld [vmem:[#allocation4 + $0x12c] sm:$0xff]
    %v2892 = vld [vmem:[#allocation4 + $0x134] sm:$0xf]
    %v2893 = vld [vmem:[#allocation4 + $0x138] sm:$0xff]
    %v2894 = vld [vmem:[#allocation4 + $0x140] sm:$0xf]
    %v2895 = vld [vmem:[#allocation4 + $0x144] sm:$0xff]
    %v2896 = vld [vmem:[#allocation4 + $0x14c] sm:$0xf]
    %v2897 = vld [vmem:[#allocation4 + $0x150] sm:$0xff]
    %v2898 = vld [vmem:[#allocation4 + $0x158] sm:$0xf]
    %v2899 = vld [vmem:[#allocation4 + $0x15c] sm:$0xff]
    %v2900 = vld [vmem:[#allocation4 + $0x164] sm:$0xf]
    %v2901 = vld [vmem:[#allocation4 + $0x168] sm:$0xff]
    %v2902 = vld [vmem:[#allocation4 + $0x170] sm:$0xf]
    %v2903 = vld [vmem:[#allocation4 + $0x174] sm:$0xff]
    %v2904 = vld [vmem:[#allocation4 + $0x17c] sm:$0xf]
    %v2905 = vld [vmem:[#allocation4 + $0x180] sm:$0xff]
    %v2906 = vld [vmem:[#allocation4 + $0x188] sm:$0xf]
    %v2907 = vld [vmem:[#allocation4 + $0x18c] sm:$0xff]
    %v2908 = vld [vmem:[#allocation4 + $0x194] sm:$0xf]
    %v2909 = vld [vmem:[#allocation4 + $0x198] sm:$0xff]
    %v2910 = vld [vmem:[#allocation4 + $0x1a0] sm:$0xf]
    %v2911 = vld [vmem:[#allocation4 + $0x1a4] sm:$0xff]
    %v2912 = vld [vmem:[#allocation4 + $0x1ac] sm:$0xf]
    %v2913 = vld [vmem:[#allocation4 + $0x1b0] sm:$0xff]
    %v2914 = vld [vmem:[#allocation4 + $0x1b8] sm:$0xf]
    %v2915 = vld [vmem:[#allocation4 + $0x1bc] sm:$0xff]
    %v2916 = vld [vmem:[#allocation4 + $0x1c4] sm:$0xf]
    %v2917 = vld [vmem:[#allocation4 + $0x1c8] sm:$0xff]
    %v2918 = vld [vmem:[#allocation4 + $0x1d0] sm:$0xf]
    %v2919 = vld [vmem:[#allocation4 + $0x1d4] sm:$0xff]
    %v2920 = vld [vmem:[#allocation4 + $0x1dc] sm:$0xf]
    %v2921 = vld [vmem:[#allocation4 + $0x1e0] sm:$0xff]
    %v2922 = vld [vmem:[#allocation4 + $0x1e8] sm:$0xf]
    %v2923 = vld [vmem:[#allocation4 + $0x1ec] sm:$0xff]
    %v2924 = vld [vmem:[#allocation4 + $0x1f4] sm:$0xf]
    %v2925 = vld [vmem:[#allocation4 + $0x1f8] sm:$0xff]
    %v2926 = vld [vmem:[#allocation4 + $0x200] sm:$0xf]
    %v2927 = vld [vmem:[#allocation4 + $0x204] sm:$0xff]
    %v2928 = vld [vmem:[#allocation4 + $0x20c] sm:$0xf]
    %v2929 = vld [vmem:[#allocation4 + $0x210] sm:$0xff]
    %v2930 = vld [vmem:[#allocation4 + $0x218] sm:$0xf]
    %v2931 = vld [vmem:[#allocation4 + $0x21c] sm:$0xff]
    %v2932 = vld [vmem:[#allocation4 + $0x224] sm:$0xf]
    %v2933 = vld [vmem:[#allocation4 + $0x228] sm:$0xff]
    %v2934 = vld [vmem:[#allocation4 + $0x230] sm:$0xf]
    %v2935 = vld [vmem:[#allocation4 + $0x234] sm:$0xff]
    %v2936 = vld [vmem:[#allocation4 + $0x23c] sm:$0xf]
    %v2937 = vld [vmem:[#allocation4 + $0x240] sm:$0xff]
    %v2938 = vld [vmem:[#allocation4 + $0x248] sm:$0xf]
    %v2939 = vld [vmem:[#allocation4 + $0x24c] sm:$0xff]
    %v2940 = vld [vmem:[#allocation4 + $0x254] sm:$0xf]
    %v2941 = vld [vmem:[#allocation4 + $0x258] sm:$0xff]
    %v2942 = vld [vmem:[#allocation4 + $0x260] sm:$0xf]
    %v2943 = vld [vmem:[#allocation4 + $0x264] sm:$0xff]
    %v2944 = vld [vmem:[#allocation4 + $0x26c] sm:$0xf]
    %v2945 = vld [vmem:[#allocation4 + $0x270] sm:$0xff]
    %v2946 = vld [vmem:[#allocation4 + $0x278] sm:$0xf]
    %v2947 = vld [vmem:[#allocation4 + $0x27c] sm:$0xff]
    %v2948 = vld [vmem:[#allocation4 + $0x284] sm:$0xf]
    %v2949 = vld [vmem:[#allocation4 + $0x288] sm:$0xff]
    %v2950 = vld [vmem:[#allocation4 + $0x290] sm:$0xf]
    %v2951 = vld [vmem:[#allocation4 + $0x294] sm:$0xff]
    %v2952 = vld [vmem:[#allocation4 + $0x29c] sm:$0xf]
    %v2953 = vld [vmem:[#allocation4 + $0x2a0] sm:$0xff]
    %v2954 = vld [vmem:[#allocation4 + $0x2a8] sm:$0xf]
    %v2955 = vld [vmem:[#allocation4 + $0x2ac] sm:$0xff]
    %v2956 = vld [vmem:[#allocation4 + $0x2b4] sm:$0xf]
    %v2957 = vld [vmem:[#allocation4 + $0x2b8] sm:$0xff]
    %v2958 = vld [vmem:[#allocation4 + $0x2c0] sm:$0xf]
    %v2959 = vld [vmem:[#allocation4 + $0x2c4] sm:$0xff]
    %v2960 = vld [vmem:[#allocation4 + $0x2cc] sm:$0xf]
    %v2961 = vld [vmem:[#allocation4 + $0x2d0] sm:$0xff]
    %v2962 = vld [vmem:[#allocation4 + $0x2d8] sm:$0xf]
    %v2963 = vld [vmem:[#allocation4 + $0x2dc] sm:$0xff]
    %v2964 = vld [vmem:[#allocation4 + $0x2e4] sm:$0xf]
    %v2965 = vld [vmem:[#allocation4 + $0x2e8] sm:$0xff]
    %v2966 = vld [vmem:[#allocation4 + $0x2f0] sm:$0xf]
    %v2967 = vld [vmem:[#allocation4 + $0x2f4] sm:$0xff]
    %v2968 = vld [vmem:[#allocation4 + $0x2fc] sm:$0xf]
    %s2969 = scalar_lea.vmem %s7, 2
    %v2970 = vld [vmem:[%s2969] ss:$8 sm:$0x7]
    %v2972 = vlaneseq
    %v2973 = vshrl.u32 %v2972, 7
    %v2974 = vsub.s32 0, %v2973
    %v2975 = vrot.slane %v2970, %v2974
    %v2976 = vlaneseq
    %v2977 = vshrl.u32 %v2976, 7
    %v2978 = vsub.s32 1, %v2977
    %v2979 = vrot.slane %v2970, %v2978
    %v2980 = vlaneseq
    %v2981 = vshrl.u32 %v2980, 7
    %v2982 = vsub.s32 2, %v2981
    %v2983 = vrot.slane %v2970, %v2982
    %v3115 = vunpack.c.l.b16 %v2841
    %v3116 = vunpack.c.h.b16 %v2841
    %v3117 = vunpack.c.l.b16 %v2842
    %v3118 = vunpack.c.l.b16 %v2843
    %v3119 = vunpack.c.h.b16 %v2843
    %v3120 = vunpack.c.l.b16 %v2844
    %v3121 = vunpack.c.l.b16 %v2845
    %v3122 = vunpack.c.h.b16 %v2845
    %v3123 = vunpack.c.l.b16 %v2846
    %v3124 = vunpack.c.l.b16 %v2847
    %v3125 = vunpack.c.h.b16 %v2847
    %v3126 = vunpack.c.l.b16 %v2848
    %v3127 = vunpack.c.l.b16 %v2849
    %v3128 = vunpack.c.h.b16 %v2849
    %v3129 = vunpack.c.l.b16 %v2850
    %v3130 = vunpack.c.l.b16 %v2851
    %v3131 = vunpack.c.h.b16 %v2851
    %v3132 = vunpack.c.l.b16 %v2852
    %v3133 = vunpack.c.l.b16 %v2853
    %v3134 = vunpack.c.h.b16 %v2853
    %v3135 = vunpack.c.l.b16 %v2854
    %v3136 = vunpack.c.l.b16 %v2855
    %v3137 = vunpack.c.h.b16 %v2855
    %v3138 = vunpack.c.l.b16 %v2856
    %v3139 = vunpack.c.l.b16 %v2857
    %v3140 = vunpack.c.h.b16 %v2857
    %v3141 = vunpack.c.l.b16 %v2858
    %v3142 = vunpack.c.l.b16 %v2859
    %v3143 = vunpack.c.h.b16 %v2859
    %v3144 = vunpack.c.l.b16 %v2860
    %v3145 = vunpack.c.l.b16 %v2861
    %v3146 = vunpack.c.h.b16 %v2861
    %v3147 = vunpack.c.l.b16 %v2862
    %v3148 = vunpack.c.l.b16 %v2863
    %v3149 = vunpack.c.h.b16 %v2863
    %v3150 = vunpack.c.l.b16 %v2864
    %v3151 = vunpack.c.l.b16 %v2865
    %v3152 = vunpack.c.h.b16 %v2865
    %v3153 = vunpack.c.l.b16 %v2866
    %v3154 = vunpack.c.l.b16 %v2867
    %v3155 = vunpack.c.h.b16 %v2867
    %v3156 = vunpack.c.l.b16 %v2868
    %v3157 = vunpack.c.l.b16 %v2869
    %v3158 = vunpack.c.h.b16 %v2869
    %v3159 = vunpack.c.l.b16 %v2870
    %v3160 = vunpack.c.l.b16 %v2871
    %v3161 = vunpack.c.h.b16 %v2871
    %v3162 = vunpack.c.l.b16 %v2872
    %v3163 = vunpack.c.l.b16 %v2873
    %v3164 = vunpack.c.h.b16 %v2873
    %v3165 = vunpack.c.l.b16 %v2874
    %v3166 = vunpack.c.l.b16 %v2875
    %v3167 = vunpack.c.h.b16 %v2875
    %v3168 = vunpack.c.l.b16 %v2876
    %v3169 = vunpack.c.l.b16 %v2877
    %v3170 = vunpack.c.h.b16 %v2877
    %v3171 = vunpack.c.l.b16 %v2878
    %v3172 = vunpack.c.l.b16 %v2879
    %v3173 = vunpack.c.h.b16 %v2879
    %v3174 = vunpack.c.l.b16 %v2880
    %v3175 = vunpack.c.l.b16 %v2881
    %v3176 = vunpack.c.h.b16 %v2881
    %v3177 = vunpack.c.l.b16 %v2882
    %v3178 = vunpack.c.l.b16 %v2883
    %v3179 = vunpack.c.h.b16 %v2883
    %v3180 = vunpack.c.l.b16 %v2884
    %v3181 = vunpack.c.l.b16 %v2885
    %v3182 = vunpack.c.h.b16 %v2885
    %v3183 = vunpack.c.l.b16 %v2886
    %v3184 = vunpack.c.l.b16 %v2887
    %v3185 = vunpack.c.h.b16 %v2887
    %v3186 = vunpack.c.l.b16 %v2888
    %v3187 = vunpack.c.l.b16 %v2889
    %v3188 = vunpack.c.h.b16 %v2889
    %v3189 = vunpack.c.l.b16 %v2890
    %v3190 = vunpack.c.l.b16 %v2891
    %v3191 = vunpack.c.h.b16 %v2891
    %v3192 = vunpack.c.l.b16 %v2892
    %v3193 = vunpack.c.l.b16 %v2893
    %v3194 = vunpack.c.h.b16 %v2893
    %v3195 = vunpack.c.l.b16 %v2894
    %v3196 = vunpack.c.l.b16 %v2895
    %v3197 = vunpack.c.h.b16 %v2895
    %v3198 = vunpack.c.l.b16 %v2896
    %v3199 = vunpack.c.l.b16 %v2897
    %v3200 = vunpack.c.h.b16 %v2897
    %v3201 = vunpack.c.l.b16 %v2898
    %v3202 = vunpack.c.l.b16 %v2899
    %v3203 = vunpack.c.h.b16 %v2899
    %v3204 = vunpack.c.l.b16 %v2900
    %v3205 = vunpack.c.l.b16 %v2901
    %v3206 = vunpack.c.h.b16 %v2901
    %v3207 = vunpack.c.l.b16 %v2902
    %v3208 = vunpack.c.l.b16 %v2903
    %v3209 = vunpack.c.h.b16 %v2903
    %v3210 = vunpack.c.l.b16 %v2904
    %v3211 = vunpack.c.l.b16 %v2905
    %v3212 = vunpack.c.h.b16 %v2905
    %v3213 = vunpack.c.l.b16 %v2906
    %v3214 = vunpack.c.l.b16 %v2907
    %v3215 = vunpack.c.h.b16 %v2907
    %v3216 = vunpack.c.l.b16 %v2908
    %v3217 = vunpack.c.l.b16 %v2909
    %v3218 = vunpack.c.h.b16 %v2909
    %v3219 = vunpack.c.l.b16 %v2910
    %v3220 = vunpack.c.l.b16 %v2911
    %v3221 = vunpack.c.h.b16 %v2911
    %v3222 = vunpack.c.l.b16 %v2912
    %v3223 = vunpack.c.l.b16 %v2913
    %v3224 = vunpack.c.h.b16 %v2913
    %v3225 = vunpack.c.l.b16 %v2914
    %v3226 = vunpack.c.l.b16 %v2915
    %v3227 = vunpack.c.h.b16 %v2915
    %v3228 = vunpack.c.l.b16 %v2916
    %v3229 = vunpack.c.l.b16 %v2917
    %v3230 = vunpack.c.h.b16 %v2917
    %v3231 = vunpack.c.l.b16 %v2918
    %v3232 = vunpack.c.l.b16 %v2919
    %v3233 = vunpack.c.h.b16 %v2919
    %v3234 = vunpack.c.l.b16 %v2920
    %v3235 = vunpack.c.l.b16 %v2921
    %v3236 = vunpack.c.h.b16 %v2921
    %v3237 = vunpack.c.l.b16 %v2922
    %v3238 = vunpack.c.l.b16 %v2923
    %v3239 = vunpack.c.h.b16 %v2923
    %v3240 = vunpack.c.l.b16 %v2924
    %v3241 = vunpack.c.l.b16 %v2925
    %v3242 = vunpack.c.h.b16 %v2925
    %v3243 = vunpack.c.l.b16 %v2926
    %v3244 = vunpack.c.l.b16 %v2927
    %v3245 = vunpack.c.h.b16 %v2927
    %v3246 = vunpack.c.l.b16 %v2928
    %v3247 = vunpack.c.l.b16 %v2929
    %v3248 = vunpack.c.h.b16 %v2929
    %v3249 = vunpack.c.l.b16 %v2930
    %v3250 = vunpack.c.l.b16 %v2931
    %v3251 = vunpack.c.h.b16 %v2931
    %v3252 = vunpack.c.l.b16 %v2932
    %v3253 = vunpack.c.l.b16 %v2933
    %v3254 = vunpack.c.h.b16 %v2933
    %v3255 = vunpack.c.l.b16 %v2934
    %v3256 = vunpack.c.l.b16 %v2935
    %v3257 = vunpack.c.h.b16 %v2935
    %v3258 = vunpack.c.l.b16 %v2936
    %v3259 = vunpack.c.l.b16 %v2937
    %v3260 = vunpack.c.h.b16 %v2937
    %v3261 = vunpack.c.l.b16 %v2938
    %v3262 = vunpack.c.l.b16 %v2939
    %v3263 = vunpack.c.h.b16 %v2939
    %v3264 = vunpack.c.l.b16 %v2940
    %v3265 = vunpack.c.l.b16 %v2941
    %v3266 = vunpack.c.h.b16 %v2941
    %v3267 = vunpack.c.l.b16 %v2942
    %v3268 = vunpack.c.l.b16 %v2943
    %v3269 = vunpack.c.h.b16 %v2943
    %v3270 = vunpack.c.l.b16 %v2944
    %v3271 = vunpack.c.l.b16 %v2945
    %v3272 = vunpack.c.h.b16 %v2945
    %v3273 = vunpack.c.l.b16 %v2946
    %v3274 = vunpack.c.l.b16 %v2947
    %v3275 = vunpack.c.h.b16 %v2947
    %v3276 = vunpack.c.l.b16 %v2948
    %v3277 = vunpack.c.l.b16 %v2949
    %v3278 = vunpack.c.h.b16 %v2949
    %v3279 = vunpack.c.l.b16 %v2950
    %v3280 = vunpack.c.l.b16 %v2951
    %v3281 = vunpack.c.h.b16 %v2951
    %v3282 = vunpack.c.l.b16 %v2952
    %v3283 = vunpack.c.l.b16 %v2953
    %v3284 = vunpack.c.h.b16 %v2953
    %v3285 = vunpack.c.l.b16 %v2954
    %v3286 = vunpack.c.l.b16 %v2955
    %v3287 = vunpack.c.h.b16 %v2955
    %v3288 = vunpack.c.l.b16 %v2956
    %v3289 = vunpack.c.l.b16 %v2957
    %v3290 = vunpack.c.h.b16 %v2957
    %v3291 = vunpack.c.l.b16 %v2958
    %v3292 = vunpack.c.l.b16 %v2959
    %v3293 = vunpack.c.h.b16 %v2959
    %v3294 = vunpack.c.l.b16 %v2960
    %v3295 = vunpack.c.l.b16 %v2961
    %v3296 = vunpack.c.h.b16 %v2961
    %v3297 = vunpack.c.l.b16 %v2962
    %v3298 = vunpack.c.l.b16 %v2963
    %v3299 = vunpack.c.h.b16 %v2963
    %v3300 = vunpack.c.l.b16 %v2964
    %v3301 = vunpack.c.l.b16 %v2965
    %v3302 = vunpack.c.h.b16 %v2965
    %v3303 = vunpack.c.l.b16 %v2966
    %v3304 = vunpack.c.l.b16 %v2967
    %v3305 = vunpack.c.h.b16 %v2967
    %v3306 = vunpack.c.l.b16 %v2968
    %v3307 = vpack.c.b16 %v3118, %v3115
    %v3308 = vpack.c.b16 %v3119, %v3116
    %v3309 = vpack.c.b16 %v3120, %v3117
    %v3310 = vpack.c.b16 %v3124, %v3121
    %v3311 = vpack.c.b16 %v3125, %v3122
    %v3312 = vpack.c.b16 %v3126, %v3123
    %v3313 = vpack.c.b16 %v3130, %v3127
    %v3314 = vpack.c.b16 %v3131, %v3128
    %v3315 = vpack.c.b16 %v3132, %v3129
    %v3316 = vpack.c.b16 %v3136, %v3133
    %v3317 = vpack.c.b16 %v3137, %v3134
    %v3318 = vpack.c.b16 %v3138, %v3135
    %v3319 = vpack.c.b16 %v3142, %v3139
    %v3320 = vpack.c.b16 %v3143, %v3140
    %v3321 = vpack.c.b16 %v3144, %v3141
    %v3322 = vpack.c.b16 %v3148, %v3145
    %v3323 = vpack.c.b16 %v3149, %v3146
    %v3324 = vpack.c.b16 %v3150, %v3147
    %v3325 = vpack.c.b16 %v3154, %v3151
    %v3326 = vpack.c.b16 %v3155, %v3152
    %v3327 = vpack.c.b16 %v3156, %v3153
    %v3328 = vpack.c.b16 %v3160, %v3157
    %v3329 = vpack.c.b16 %v3161, %v3158
    %v3330 = vpack.c.b16 %v3162, %v3159
    %v3331 = vpack.c.b16 %v3166, %v3163
    %v3332 = vpack.c.b16 %v3167, %v3164
    %v3333 = vpack.c.b16 %v3168, %v3165
    %v3334 = vpack.c.b16 %v3172, %v3169
    %v3335 = vpack.c.b16 %v3173, %v3170
    %v3336 = vpack.c.b16 %v3174, %v3171
    %v3337 = vpack.c.b16 %v3178, %v3175
    %v3338 = vpack.c.b16 %v3179, %v3176
    %v3339 = vpack.c.b16 %v3180, %v3177
    %v3340 = vpack.c.b16 %v3184, %v3181
    %v3341 = vpack.c.b16 %v3185, %v3182
    %v3342 = vpack.c.b16 %v3186, %v3183
    %v3343 = vpack.c.b16 %v3190, %v3187
    %v3344 = vpack.c.b16 %v3191, %v3188
    %v3345 = vpack.c.b16 %v3192, %v3189
    %v3346 = vpack.c.b16 %v3196, %v3193
    %v3347 = vpack.c.b16 %v3197, %v3194
    %v3348 = vpack.c.b16 %v3198, %v3195
    %v3349 = vpack.c.b16 %v3202, %v3199
    %v3350 = vpack.c.b16 %v3203, %v3200
    %v3351 = vpack.c.b16 %v3204, %v3201
    %v3352 = vpack.c.b16 %v3208, %v3205
    %v3353 = vpack.c.b16 %v3209, %v3206
    %v3354 = vpack.c.b16 %v3210, %v3207
    %v3355 = vpack.c.b16 %v3214, %v3211
    %v3356 = vpack.c.b16 %v3215, %v3212
    %v3357 = vpack.c.b16 %v3216, %v3213
    %v3358 = vpack.c.b16 %v3220, %v3217
    %v3359 = vpack.c.b16 %v3221, %v3218
    %v3360 = vpack.c.b16 %v3222, %v3219
    %v3361 = vpack.c.b16 %v3226, %v3223
    %v3362 = vpack.c.b16 %v3227, %v3224
    %v3363 = vpack.c.b16 %v3228, %v3225
    %v3364 = vpack.c.b16 %v3232, %v3229
    %v3365 = vpack.c.b16 %v3233, %v3230
    %v3366 = vpack.c.b16 %v3234, %v3231
    %v3367 = vpack.c.b16 %v3238, %v3235
    %v3368 = vpack.c.b16 %v3239, %v3236
    %v3369 = vpack.c.b16 %v3240, %v3237
    %v3370 = vpack.c.b16 %v3244, %v3241
    %v3371 = vpack.c.b16 %v3245, %v3242
    %v3372 = vpack.c.b16 %v3246, %v3243
    %v3373 = vpack.c.b16 %v3250, %v3247
    %v3374 = vpack.c.b16 %v3251, %v3248
    %v3375 = vpack.c.b16 %v3252, %v3249
    %v3376 = vpack.c.b16 %v3256, %v3253
    %v3377 = vpack.c.b16 %v3257, %v3254
    %v3378 = vpack.c.b16 %v3258, %v3255
    %v3379 = vpack.c.b16 %v3262, %v3259
    %v3380 = vpack.c.b16 %v3263, %v3260
    %v3381 = vpack.c.b16 %v3264, %v3261
    %v3382 = vpack.c.b16 %v3268, %v3265
    %v3383 = vpack.c.b16 %v3269, %v3266
    %v3384 = vpack.c.b16 %v3270, %v3267
    %v3385 = vpack.c.b16 %v3274, %v3271
    %v3386 = vpack.c.b16 %v3275, %v3272
    %v3387 = vpack.c.b16 %v3276, %v3273
    %v3388 = vpack.c.b16 %v3280, %v3277
    %v3389 = vpack.c.b16 %v3281, %v3278
    %v3390 = vpack.c.b16 %v3282, %v3279
    %v3391 = vpack.c.b16 %v3286, %v3283
    %v3392 = vpack.c.b16 %v3287, %v3284
    %v3393 = vpack.c.b16 %v3288, %v3285
    %v3394 = vpack.c.b16 %v3292, %v3289
    %v3395 = vpack.c.b16 %v3293, %v3290
    %v3396 = vpack.c.b16 %v3294, %v3291
    %v3397 = vpack.c.b16 %v3298, %v3295
    %v3398 = vpack.c.b16 %v3299, %v3296
    %v3399 = vpack.c.b16 %v3300, %v3297
    %v3400 = vpack.c.b16 %v3304, %v3301
    %v3401 = vpack.c.b16 %v3305, %v3302
    %v3402 = vpack.c.b16 %v3306, %v3303
    %3499 = vmatprep.subr.bf16.mxu0 %v3308
    %3500 = vmatpush1.bf16.msra.mxu0 %v3307
    %3501 = vmatprep.subr.bf16.mxu0 %v3311
    %3502 = vmatpush1.bf16.msra.mxu0 %v3310
    %3503 = vmatprep.subr.bf16.mxu0 %v3314
    %3504 = vmatpush1.bf16.msra.mxu0 %v3313
    %3505 = vmatprep.subr.bf16.mxu0 %v3317
    %3506 = vmatpush1.bf16.msra.mxu0 %v3316
    %3507 = vmatprep.subr.bf16.mxu0 %v3320
    %3508 = vmatpush1.bf16.msra.mxu0 %v3319
    %3509 = vmatprep.subr.bf16.mxu0 %v3323
    %3510 = vmatpush1.bf16.msra.mxu0 %v3322
    %3511 = vmatprep.subr.bf16.mxu0 %v3326
    %3512 = vmatpush1.bf16.msra.mxu0 %v3325
    %3513 = vmatprep.subr.bf16.mxu0 %v3329
    %3514 = vmatpush1.bf16.msra.mxu0 %v3328
    %3515 = vmatprep.subr.bf16.mxu0 %v3332
    %3516 = vmatpush1.bf16.msra.mxu0 %v3331
    %3517 = vmatprep.subr.bf16.mxu0 %v3335
    %3518 = vmatpush1.bf16.msra.mxu0 %v3334
    %3519 = vmatprep.subr.bf16.mxu0 %v3338
    %3520 = vmatpush1.bf16.msra.mxu0 %v3337
    %3521 = vmatprep.subr.bf16.mxu0 %v3341
    %3522 = vmatpush1.bf16.msra.mxu0 %v3340
    %3523 = vmatprep.subr.bf16.mxu0 %v3344
    %3524 = vmatpush1.bf16.msra.mxu0 %v3343
    %3525 = vmatprep.subr.bf16.mxu0 %v3347
    %3526 = vmatpush1.bf16.msra.mxu0 %v3346
    %3527 = vmatprep.subr.bf16.mxu0 %v3350
    %3528 = vmatpush1.bf16.msra.mxu0 %v3349
    %3529 = vmatprep.subr.bf16.mxu0 %v3353
    %3530 = vmatpush1.bf16.msra.mxu0 %v3352
    %3531 = vmatprep.mubr.bf16.mxu0 %v2838
    %3532 = vmatmul.mubr.bf16.gmra.mrb[0].mxu0 %v2837
    %v3533 = vpop.f32.mrb[0].mxu0
    %v3534 = vadd.f32 %v2975, %v3533
    %v3535 = vpop.f32.mrb[0].mxu0
    %v3536 = vadd.f32 %v2979, %v3535
    %v3537 = vpop.f32.mrb[0].mxu0
    %v3538 = vadd.f32 %v2975, %v3537
    %v3539 = vpop.f32.mrb[0].mxu0
    %v3540 = vadd.f32 %v2979, %v3539
    %3541 = vdwg.mxu0
    %3542 = vmatprep.subr.bf16.mxu0 %v3356
    %3543 = vmatpush1.bf16.msra.mxu0 %v3355
    %3544 = vmatprep.subr.bf16.mxu0 %v3359
    %3545 = vmatpush1.bf16.msra.mxu0 %v3358
    %3546 = vmatprep.subr.bf16.mxu0 %v3362
    %3547 = vmatpush1.bf16.msra.mxu0 %v3361
    %3548 = vmatprep.subr.bf16.mxu0 %v3365
    %3549 = vmatpush1.bf16.msra.mxu0 %v3364
    %3550 = vmatprep.subr.bf16.mxu0 %v3368
    %3551 = vmatpush1.bf16.msra.mxu0 %v3367
    %3552 = vmatprep.subr.bf16.mxu0 %v3371
    %3553 = vmatpush1.bf16.msra.mxu0 %v3370
    %3554 = vmatprep.subr.bf16.mxu0 %v3374
    %3555 = vmatpush1.bf16.msra.mxu0 %v3373
    %3556 = vmatprep.subr.bf16.mxu0 %v3377
    %3557 = vmatpush1.bf16.msra.mxu0 %v3376
    %3558 = vmatprep.subr.bf16.mxu0 %v3380
    %3559 = vmatpush1.bf16.msra.mxu0 %v3379
    %3560 = vmatprep.subr.bf16.mxu0 %v3383
    %3561 = vmatpush1.bf16.msra.mxu0 %v3382
    %3562 = vmatprep.subr.bf16.mxu0 %v3386
    %3563 = vmatpush1.bf16.msra.mxu0 %v3385
    %3564 = vmatprep.subr.bf16.mxu0 %v3389
    %3565 = vmatpush1.bf16.msra.mxu0 %v3388
    %3566 = vmatprep.subr.bf16.mxu0 %v3392
    %3567 = vmatpush1.bf16.msra.mxu0 %v3391
    %3568 = vmatprep.subr.bf16.mxu0 %v3395
    %3569 = vmatpush1.bf16.msra.mxu0 %v3394
    %3570 = vmatprep.subr.bf16.mxu0 %v3398
    %3571 = vmatpush1.bf16.msra.mxu0 %v3397
    %3572 = vmatprep.subr.bf16.mxu0 %v3401
    %3573 = vmatpush1.bf16.msra.mxu0 %v3400
    %3574 = vmatprep.mubr.bf16.mxu0 %v2840
    %3575 = vmatmul.mubr.bf16.gmra.mrb[0].mxu0 %v2839
    %v3576 = vpop.f32.mrb[0].mxu0
    %v3577 = vadd.f32 %v3534, %v3576
    %v3578 = vpop.f32.mrb[0].mxu0
    %v3579 = vadd.f32 %v3536, %v3578
    %v3580 = vpop.f32.mrb[0].mxu0
    %v3581 = vadd.f32 %v3538, %v3580
    %v3582 = vpop.f32.mrb[0].mxu0
    %v3583 = vadd.f32 %v3540, %v3582
    %3584 = vdwg.mxu0
    %3585 = vmatprep.subr.bf16.mxu0 0
    %3586 = vmatpush1.bf16.msra.mxu0 %v3309
    %3587 = vmatprep.subr.bf16.mxu0 0
    %3588 = vmatpush1.bf16.msra.mxu0 %v3312
    %3589 = vmatprep.subr.bf16.mxu0 0
    %3590 = vmatpush1.bf16.msra.mxu0 %v3315
    %3591 = vmatprep.subr.bf16.mxu0 0
    %3592 = vmatpush1.bf16.msra.mxu0 %v3318
    %3593 = vmatprep.subr.bf16.mxu0 0
    %3594 = vmatpush1.bf16.msra.mxu0 %v3321
    %3595 = vmatprep.subr.bf16.mxu0 0
    %3596 = vmatpush1.bf16.msra.mxu0 %v3324
    %3597 = vmatprep.subr.bf16.mxu0 0
    %3598 = vmatpush1.bf16.msra.mxu0 %v3327
    %3599 = vmatprep.subr.bf16.mxu0 0
    %3600 = vmatpush1.bf16.msra.mxu0 %v3330
    %3601 = vmatprep.subr.bf16.mxu0 0
    %3602 = vmatpush1.bf16.msra.mxu0 %v3333
    %3603 = vmatprep.subr.bf16.mxu0 0
    %3604 = vmatpush1.bf16.msra.mxu0 %v3336
    %3605 = vmatprep.subr.bf16.mxu0 0
    %3606 = vmatpush1.bf16.msra.mxu0 %v3339
    %3607 = vmatprep.subr.bf16.mxu0 0
    %3608 = vmatpush1.bf16.msra.mxu0 %v3342
    %3609 = vmatprep.subr.bf16.mxu0 0
    %3610 = vmatpush1.bf16.msra.mxu0 %v3345
    %3611 = vmatprep.subr.bf16.mxu0 0
    %3612 = vmatpush1.bf16.msra.mxu0 %v3348
    %3613 = vmatprep.subr.bf16.mxu0 0
    %3614 = vmatpush1.bf16.msra.mxu0 %v3351
    %3615 = vmatprep.subr.bf16.mxu0 0
    %3616 = vmatpush1.bf16.msra.mxu0 %v3354
    %3617 = vmatprep.mubr.bf16.mxu0 %v2838
    %3618 = vmatmul.mubr.bf16.gmra.mrb[0].mxu0 %v2837
    %v3619 = vpop.f32.mrb[0].mxu0
    %v3620 = vadd.f32 %v2983, %v3619
    %v3621 = vpop.f32.mrb[0].mxu0
    %v3622 = vpop.f32.mrb[0].mxu0
    %v3623 = vadd.f32 %v2983, %v3622
    %v3624 = vpop.f32.mrb[0].mxu0
    %3625 = vdwg.mxu0
    %3626 = vmatprep.subr.bf16.mxu0 0
    %3627 = vmatpush1.bf16.msra.mxu0 %v3357
    %3628 = vmatprep.subr.bf16.mxu0 0
    %3629 = vmatpush1.bf16.msra.mxu0 %v3360
    %3630 = vmatprep.subr.bf16.mxu0 0
    %3631 = vmatpush1.bf16.msra.mxu0 %v3363
    %3632 = vmatprep.subr.bf16.mxu0 0
    %3633 = vmatpush1.bf16.msra.mxu0 %v3366
    %3634 = vmatprep.subr.bf16.mxu0 0
    %3635 = vmatpush1.bf16.msra.mxu0 %v3369
    %3636 = vmatprep.subr.bf16.mxu0 0
    %3637 = vmatpush1.bf16.msra.mxu0 %v3372
    %3638 = vmatprep.subr.bf16.mxu0 0
    %3639 = vmatpush1.bf16.msra.mxu0 %v3375
    %3640 = vmatprep.subr.bf16.mxu0 0
    %3641 = vmatpush1.bf16.msra.mxu0 %v3378
    %3642 = vmatprep.subr.bf16.mxu0 0
    %3643 = vmatpush1.bf16.msra.mxu0 %v3381
    %3644 = vmatprep.subr.bf16.mxu0 0
    %3645 = vmatpush1.bf16.msra.mxu0 %v3384
    %3646 = vmatprep.subr.bf16.mxu0 0
    %3647 = vmatpush1.bf16.msra.mxu0 %v3387
    %3648 = vmatprep.subr.bf16.mxu0 0
    %3649 = vmatpush1.bf16.msra.mxu0 %v3390
    %3650 = vmatprep.subr.bf16.mxu0 0
    %3651 = vmatpush1.bf16.msra.mxu0 %v3393
    %3652 = vmatprep.subr.bf16.mxu0 0
    %3653 = vmatpush1.bf16.msra.mxu0 %v3396
    %3654 = vmatprep.subr.bf16.mxu0 0
    %3655 = vmatpush1.bf16.msra.mxu0 %v3399
    %3656 = vmatprep.subr.bf16.mxu0 0
    %3657 = vmatpush1.bf16.msra.mxu0 %v3402
    %3658 = vmatprep.mubr.bf16.mxu0 %v2840
    %3659 = vmatmul.mubr.bf16.gmra.mrb[0].mxu0 %v2839
    %v3660 = vpop.f32.mrb[0].mxu0
    %v3661 = vadd.f32 %v3620, %v3660
    %v3662 = vpop.f32.mrb[0].mxu0
    %v3663 = vpop.f32.mrb[0].mxu0
    %v3664 = vadd.f32 %v3623, %v3663
    %v3665 = vpop.f32.mrb[0].mxu0
    %3666 = vdwg.mxu0
    %v3667 = vmax.f32 %v3577, 0.0
    %v3668 = vmax.f32 %v3579, 0.0
    %v3669 = vmax.f32 %v3661, 0.0
    %v3670 = vmax.f32 %v3581, 0.0
    %v3671 = vmax.f32 %v3583, 0.0
    %v3672 = vmax.f32 %v3664, 0.0
    %v3673 = vpack.c.bf16 %v3670, %v3667
    %v3674 = vpack.c.bf16 %v3671, %v3668
    %v3675 = vpack.c.bf16 %v3672, %v3669
    %v3676 = vld [vmem:[#allocation6] sm:$0xff]
    %v3677 = vld [vmem:[#allocation6 + $0x8] sm:$0xff]
    %v3678 = vld [vmem:[#allocation6 + $0x10] sm:$0xff]
    %v3679 = vld [vmem:[#allocation6 + $0x18] sm:$0xff]
    %v3680 = vld [vmem:[#allocation6 + $0x20] sm:$0xff]
    %v3681 = vld [vmem:[#allocation6 + $0x28] sm:$0xff]
    %v3682 = vld [vmem:[#allocation6 + $0x30] sm:$0xff]
    %v3683 = vld [vmem:[#allocation6 + $0x38] sm:$0xff]
    %v3684 = vld [vmem:[#allocation6 + $0x40] sm:$0xff]
    %v3685 = vld [vmem:[#allocation6 + $0x48] sm:$0xff]
    %v3686 = vld [vmem:[#allocation6 + $0x50] sm:$0xff]
    %v3687 = vld [vmem:[#allocation6 + $0x58] sm:$0xff]
    %v3688 = vld [vmem:[#allocation6 + $0x60] sm:$0xff]
    %v3689 = vld [vmem:[#allocation6 + $0x68] sm:$0xff]
    %v3690 = vld [vmem:[#allocation6 + $0x70] sm:$0xff]
    %v3691 = vld [vmem:[#allocation6 + $0x78] sm:$0xff]
    %v3692 = vld [vmem:[#allocation6 + $0x80] sm:$0xff]
    %v3693 = vld [vmem:[#allocation6 + $0x88] sm:$0xff]
    %v3694 = vld [vmem:[#allocation6 + $0x90] sm:$0xff]
    %v3695 = vld [vmem:[#allocation6 + $0x98] sm:$0xff]
    %v3696 = vld [vmem:[#allocation6 + $0xa0] sm:$0xff]
    %v3697 = vld [vmem:[#allocation6 + $0xa8] sm:$0xff]
    %v3698 = vld [vmem:[#allocation6 + $0xb0] sm:$0xff]
    %v3699 = vld [vmem:[#allocation6 + $0xb8] sm:$0xff]
    %v3700 = vld [vmem:[#allocation6 + $0xc0] sm:$0xff]
    %v3701 = vld [vmem:[#allocation6 + $0xc8] sm:$0xff]
    %v3702 = vld [vmem:[#allocation6 + $0xd0] sm:$0xff]
    %v3703 = vld [vmem:[#allocation6 + $0xd8] sm:$0xff]
    %v3704 = vld [vmem:[#allocation6 + $0xe0] sm:$0xff]
    %v3705 = vld [vmem:[#allocation6 + $0xe8] sm:$0xff]
    %v3706 = vld [vmem:[#allocation6 + $0xf0] sm:$0xff]
    %v3707 = vld [vmem:[#allocation6 + $0xf8] sm:$0xff]
    %v3708 = vld [vmem:[#allocation6 + $0x100] sm:$0xff]
    %v3709 = vld [vmem:[#allocation6 + $0x108] sm:$0xff]
    %v3710 = vld [vmem:[#allocation6 + $0x110] sm:$0xff]
    %v3711 = vld [vmem:[#allocation6 + $0x118] sm:$0xff]
    %v3712 = vld [vmem:[#allocation6 + $0x120] sm:$0xff]
    %v3713 = vld [vmem:[#allocation6 + $0x128] sm:$0xff]
    %v3714 = vld [vmem:[#allocation6 + $0x130] sm:$0xff]
    %v3715 = vld [vmem:[#allocation6 + $0x138] sm:$0xff]
    %v3716 = vld [vmem:[#allocation6 + $0x140] sm:$0xff]
    %v3717 = vld [vmem:[#allocation6 + $0x148] sm:$0xff]
    %v3718 = vld [vmem:[#allocation6 + $0x150] sm:$0xff]
    %v3719 = vld [vmem:[#allocation6 + $0x158] sm:$0xff]
    %v3720 = vld [vmem:[#allocation6 + $0x160] sm:$0xff]
    %v3721 = vld [vmem:[#allocation6 + $0x168] sm:$0xff]
    %v3722 = vld [vmem:[#allocation6 + $0x170] sm:$0xff]
    %v3723 = vld [vmem:[#allocation6 + $0x178] sm:$0xff]
    %v3724 = vld [vmem:[#allocation6 + $0x180] sm:$0xff]
    %v3725 = vld [vmem:[#allocation6 + $0x188] sm:$0xff]
    %v3726 = vld [vmem:[#allocation6 + $0x190] sm:$0xff]
    %v3727 = vld [vmem:[#allocation6 + $0x198] sm:$0xff]
    %v3728 = vld [vmem:[#allocation6 + $0x1a0] sm:$0xff]
    %v3729 = vld [vmem:[#allocation6 + $0x1a8] sm:$0xff]
    %v3730 = vld [vmem:[#allocation6 + $0x1b0] sm:$0xff]
    %v3731 = vld [vmem:[#allocation6 + $0x1b8] sm:$0xff]
    %v3732 = vld [vmem:[#allocation6 + $0x1c0] sm:$0xff]
    %v3733 = vld [vmem:[#allocation6 + $0x1c8] sm:$0xff]
    %v3734 = vld [vmem:[#allocation6 + $0x1d0] sm:$0xff]
    %v3735 = vld [vmem:[#allocation6 + $0x1d8] sm:$0xff]
    %v3736 = vld [vmem:[#allocation6 + $0x1e0] sm:$0xff]
    %v3737 = vld [vmem:[#allocation6 + $0x1e8] sm:$0xff]
    %v3738 = vld [vmem:[#allocation6 + $0x1f0] sm:$0xff]
    %v3739 = vld [vmem:[#allocation6 + $0x1f8] sm:$0xff]
    %v3740 = vld [vmem:[#allocation6 + $0x200] sm:$0xff]
    %v3741 = vld [vmem:[#allocation6 + $0x208] sm:$0xff]
    %v3742 = vld [vmem:[#allocation6 + $0x210] sm:$0xff]
    %v3743 = vld [vmem:[#allocation6 + $0x218] sm:$0xff]
    %v3744 = vld [vmem:[#allocation6 + $0x220] sm:$0xff]
    %v3745 = vld [vmem:[#allocation6 + $0x228] sm:$0xff]
    %v3746 = vld [vmem:[#allocation6 + $0x230] sm:$0xff]
    %v3747 = vld [vmem:[#allocation6 + $0x238] sm:$0xff]
    %v3748 = vld [vmem:[#allocation6 + $0x240] sm:$0xff]
    %v3749 = vld [vmem:[#allocation6 + $0x248] sm:$0xff]
    %v3750 = vld [vmem:[#allocation6 + $0x250] sm:$0xff]
    %v3751 = vld [vmem:[#allocation6 + $0x258] sm:$0xff]
    %v3752 = vld [vmem:[#allocation6 + $0x260] sm:$0xff]
    %v3753 = vld [vmem:[#allocation6 + $0x268] sm:$0xff]
    %v3754 = vld [vmem:[#allocation6 + $0x270] sm:$0xff]
    %v3755 = vld [vmem:[#allocation6 + $0x278] sm:$0xff]
    %v3756 = vld [vmem:[#allocation6 + $0x280] sm:$0xff]
    %v3757 = vld [vmem:[#allocation6 + $0x288] sm:$0xff]
    %v3758 = vld [vmem:[#allocation6 + $0x290] sm:$0xff]
    %v3759 = vld [vmem:[#allocation6 + $0x298] sm:$0xff]
    %v3760 = vld [vmem:[#allocation6 + $0x2a0] sm:$0xff]
    %v3761 = vld [vmem:[#allocation6 + $0x2a8] sm:$0xff]
    %v3762 = vld [vmem:[#allocation6 + $0x2b0] sm:$0xff]
    %v3763 = vld [vmem:[#allocation6 + $0x2b8] sm:$0xff]
    %v3764 = vld [vmem:[#allocation6 + $0x2c0] sm:$0xff]
    %v3765 = vld [vmem:[#allocation6 + $0x2c8] sm:$0xff]
    %v3766 = vld [vmem:[#allocation6 + $0x2d0] sm:$0xff]
    %v3767 = vld [vmem:[#allocation6 + $0x2d8] sm:$0xff]
    %v3768 = vld [vmem:[#allocation6 + $0x2e0] sm:$0xff]
    %v3769 = vld [vmem:[#allocation6 + $0x2e8] sm:$0xff]
    %v3770 = vld [vmem:[#allocation6 + $0x2f0] sm:$0xff]
    %v3771 = vld [vmem:[#allocation6 + $0x2f8] sm:$0xff]
    %v3772 = vld [vmem:[#allocation6 + $0x300] sm:$0xff]
    %v3773 = vld [vmem:[#allocation6 + $0x308] sm:$0xff]
    %v3774 = vld [vmem:[#allocation6 + $0x310] sm:$0xff]
    %v3775 = vld [vmem:[#allocation6 + $0x318] sm:$0xff]
    %v3776 = vld [vmem:[#allocation6 + $0x320] sm:$0xff]
    %v3777 = vld [vmem:[#allocation6 + $0x328] sm:$0xff]
    %v3778 = vld [vmem:[#allocation6 + $0x330] sm:$0xff]
    %v3779 = vld [vmem:[#allocation6 + $0x338] sm:$0xff]
    %v3780 = vld [vmem:[#allocation6 + $0x340] sm:$0xff]
    %v3781 = vld [vmem:[#allocation6 + $0x348] sm:$0xff]
    %v3782 = vld [vmem:[#allocation6 + $0x350] sm:$0xff]
    %v3783 = vld [vmem:[#allocation6 + $0x358] sm:$0xff]
    %v3784 = vld [vmem:[#allocation6 + $0x360] sm:$0xff]
    %v3785 = vld [vmem:[#allocation6 + $0x368] sm:$0xff]
    %v3786 = vld [vmem:[#allocation6 + $0x370] sm:$0xff]
    %v3787 = vld [vmem:[#allocation6 + $0x378] sm:$0xff]
    %v3788 = vld [vmem:[#allocation6 + $0x380] sm:$0xff]
    %v3789 = vld [vmem:[#allocation6 + $0x388] sm:$0xff]
    %v3790 = vld [vmem:[#allocation6 + $0x390] sm:$0xff]
    %v3791 = vld [vmem:[#allocation6 + $0x398] sm:$0xff]
    %v3792 = vld [vmem:[#allocation6 + $0x3a0] sm:$0xff]
    %v3793 = vld [vmem:[#allocation6 + $0x3a8] sm:$0xff]
    %v3794 = vld [vmem:[#allocation6 + $0x3b0] sm:$0xff]
    %v3795 = vld [vmem:[#allocation6 + $0x3b8] sm:$0xff]
    %v3796 = vld [vmem:[#allocation6 + $0x3c0] sm:$0xff]
    %v3797 = vld [vmem:[#allocation6 + $0x3c8] sm:$0xff]
    %v3798 = vld [vmem:[#allocation6 + $0x3d0] sm:$0xff]
    %v3799 = vld [vmem:[#allocation6 + $0x3d8] sm:$0xff]
    %v3800 = vld [vmem:[#allocation6 + $0x3e0] sm:$0xff]
    %v3801 = vld [vmem:[#allocation6 + $0x3e8] sm:$0xff]
    %v3802 = vld [vmem:[#allocation6 + $0x3f0] sm:$0xff]
    %v3803 = vld [vmem:[#allocation6 + $0x3f8] sm:$0xff]
    %v3804 = vld [vmem:[#allocation6 + $0x400] sm:$0xff]
    %v3805 = vld [vmem:[#allocation6 + $0x408] sm:$0xff]
    %v3806 = vld [vmem:[#allocation6 + $0x410] sm:$0xff]
    %v3807 = vld [vmem:[#allocation6 + $0x418] sm:$0xff]
    %v3808 = vld [vmem:[#allocation6 + $0x420] sm:$0xff]
    %v3809 = vld [vmem:[#allocation6 + $0x428] sm:$0xff]
    %v3810 = vld [vmem:[#allocation6 + $0x430] sm:$0xff]
    %v3811 = vld [vmem:[#allocation6 + $0x438] sm:$0xff]
    %v3812 = vld [vmem:[#allocation6 + $0x440] sm:$0xff]
    %v3813 = vld [vmem:[#allocation6 + $0x448] sm:$0xff]
    %v3814 = vld [vmem:[#allocation6 + $0x450] sm:$0xff]
    %v3815 = vld [vmem:[#allocation6 + $0x458] sm:$0xff]
    %v3816 = vld [vmem:[#allocation6 + $0x460] sm:$0xff]
    %v3817 = vld [vmem:[#allocation6 + $0x468] sm:$0xff]
    %v3818 = vld [vmem:[#allocation6 + $0x470] sm:$0xff]
    %v3819 = vld [vmem:[#allocation6 + $0x478] sm:$0xff]
    %s3820 = scalar_lea.vmem %s7, 3
    %v3821 = vld [vmem:[%s3820] ss:$8 sm:$0xf]
    %v3822 = vld [vmem:[%s3820] ss:$8 sm:$0x30]
    %v3823 = vor.u32 %v3821, %v3822
    %v3825 = vlaneseq
    %v3826 = vshrl.u32 %v3825, 7
    %v3827 = vsub.s32 0, %v3826
    %v3828 = vrot.slane %v3823, %v3827
    %v3829 = vlaneseq
    %v3830 = vshrl.u32 %v3829, 7
    %v3831 = vsub.s32 1, %v3830
    %v3832 = vrot.slane %v3823, %v3831
    %v3833 = vlaneseq
    %v3834 = vshrl.u32 %v3833, 7
    %v3835 = vsub.s32 2, %v3834
    %v3836 = vrot.slane %v3823, %v3835
    %v3837 = vlaneseq
    %v3838 = vshrl.u32 %v3837, 7
    %v3839 = vsub.s32 3, %v3838
    %v3840 = vrot.slane %v3823, %v3839
    %v3841 = vlaneseq
    %v3842 = vshrl.u32 %v3841, 7
    %v3843 = vsub.s32 4, %v3842
    %v3844 = vrot.slane %v3823, %v3843
    %v3845 = vlaneseq
    %v3846 = vshrl.u32 %v3845, 7
    %v3847 = vsub.s32 5, %v3846
    %v3848 = vrot.slane %v3823, %v3847
    %v3999 = vunpack.c.l.b16 %v3676
    %v4000 = vunpack.c.h.b16 %v3676
    %v4001 = vunpack.c.l.b16 %v3677
    %v4002 = vunpack.c.h.b16 %v3677
    %v4003 = vunpack.c.l.b16 %v3678
    %v4004 = vunpack.c.h.b16 %v3678
    %v4005 = vunpack.c.l.b16 %v3679
    %v4006 = vunpack.c.h.b16 %v3679
    %v4007 = vunpack.c.l.b16 %v3680
    %v4008 = vunpack.c.h.b16 %v3680
    %v4009 = vunpack.c.l.b16 %v3681
    %v4010 = vunpack.c.h.b16 %v3681
    %v4011 = vunpack.c.l.b16 %v3682
    %v4012 = vunpack.c.h.b16 %v3682
    %v4013 = vunpack.c.l.b16 %v3683
    %v4014 = vunpack.c.h.b16 %v3683
    %v4015 = vunpack.c.l.b16 %v3684
    %v4016 = vunpack.c.h.b16 %v3684
    %v4017 = vunpack.c.l.b16 %v3685
    %v4018 = vunpack.c.h.b16 %v3685
    %v4019 = vunpack.c.l.b16 %v3686
    %v4020 = vunpack.c.h.b16 %v3686
    %v4021 = vunpack.c.l.b16 %v3687
    %v4022 = vunpack.c.h.b16 %v3687
    %v4023 = vunpack.c.l.b16 %v3688
    %v4024 = vunpack.c.h.b16 %v3688
    %v4025 = vunpack.c.l.b16 %v3689
    %v4026 = vunpack.c.h.b16 %v3689
    %v4027 = vunpack.c.l.b16 %v3690
    %v4028 = vunpack.c.h.b16 %v3690
    %v4029 = vunpack.c.l.b16 %v3691
    %v4030 = vunpack.c.h.b16 %v3691
    %v4031 = vunpack.c.l.b16 %v3692
    %v4032 = vunpack.c.h.b16 %v3692
    %v4033 = vunpack.c.l.b16 %v3693
    %v4034 = vunpack.c.h.b16 %v3693
    %v4035 = vunpack.c.l.b16 %v3694
    %v4036 = vunpack.c.h.b16 %v3694
    %v4037 = vunpack.c.l.b16 %v3695
    %v4038 = vunpack.c.h.b16 %v3695
    %v4039 = vunpack.c.l.b16 %v3696
    %v4040 = vunpack.c.h.b16 %v3696
    %v4041 = vunpack.c.l.b16 %v3697
    %v4042 = vunpack.c.h.b16 %v3697
    %v4043 = vunpack.c.l.b16 %v3698
    %v4044 = vunpack.c.h.b16 %v3698
    %v4045 = vunpack.c.l.b16 %v3699
    %v4046 = vunpack.c.h.b16 %v3699
    %v4047 = vunpack.c.l.b16 %v3700
    %v4048 = vunpack.c.h.b16 %v3700
    %v4049 = vunpack.c.l.b16 %v3701
    %v4050 = vunpack.c.h.b16 %v3701
    %v4051 = vunpack.c.l.b16 %v3702
    %v4052 = vunpack.c.h.b16 %v3702
    %v4053 = vunpack.c.l.b16 %v3703
    %v4054 = vunpack.c.h.b16 %v3703
    %v4055 = vunpack.c.l.b16 %v3704
    %v4056 = vunpack.c.h.b16 %v3704
    %v4057 = vunpack.c.l.b16 %v3705
    %v4058 = vunpack.c.h.b16 %v3705
    %v4059 = vunpack.c.l.b16 %v3706
    %v4060 = vunpack.c.h.b16 %v3706
    %v4061 = vunpack.c.l.b16 %v3707
    %v4062 = vunpack.c.h.b16 %v3707
    %v4063 = vunpack.c.l.b16 %v3708
    %v4064 = vunpack.c.h.b16 %v3708
    %v4065 = vunpack.c.l.b16 %v3709
    %v4066 = vunpack.c.h.b16 %v3709
    %v4067 = vunpack.c.l.b16 %v3710
    %v4068 = vunpack.c.h.b16 %v3710
    %v4069 = vunpack.c.l.b16 %v3711
    %v4070 = vunpack.c.h.b16 %v3711
    %v4071 = vunpack.c.l.b16 %v3712
    %v4072 = vunpack.c.h.b16 %v3712
    %v4073 = vunpack.c.l.b16 %v3713
    %v4074 = vunpack.c.h.b16 %v3713
    %v4075 = vunpack.c.l.b16 %v3714
    %v4076 = vunpack.c.h.b16 %v3714
    %v4077 = vunpack.c.l.b16 %v3715
    %v4078 = vunpack.c.h.b16 %v3715
    %v4079 = vunpack.c.l.b16 %v3716
    %v4080 = vunpack.c.h.b16 %v3716
    %v4081 = vunpack.c.l.b16 %v3717
    %v4082 = vunpack.c.h.b16 %v3717
    %v4083 = vunpack.c.l.b16 %v3718
    %v4084 = vunpack.c.h.b16 %v3718
    %v4085 = vunpack.c.l.b16 %v3719
    %v4086 = vunpack.c.h.b16 %v3719
    %v4087 = vunpack.c.l.b16 %v3720
    %v4088 = vunpack.c.h.b16 %v3720
    %v4089 = vunpack.c.l.b16 %v3721
    %v4090 = vunpack.c.h.b16 %v3721
    %v4091 = vunpack.c.l.b16 %v3722
    %v4092 = vunpack.c.h.b16 %v3722
    %v4093 = vunpack.c.l.b16 %v3723
    %v4094 = vunpack.c.h.b16 %v3723
    %v4095 = vunpack.c.l.b16 %v3724
    %v4096 = vunpack.c.h.b16 %v3724
    %v4097 = vunpack.c.l.b16 %v3725
    %v4098 = vunpack.c.h.b16 %v3725
    %v4099 = vunpack.c.l.b16 %v3726
    %v4100 = vunpack.c.h.b16 %v3726
    %v4101 = vunpack.c.l.b16 %v3727
    %v4102 = vunpack.c.h.b16 %v3727
    %v4103 = vunpack.c.l.b16 %v3728
    %v4104 = vunpack.c.h.b16 %v3728
    %v4105 = vunpack.c.l.b16 %v3729
    %v4106 = vunpack.c.h.b16 %v3729
    %v4107 = vunpack.c.l.b16 %v3730
    %v4108 = vunpack.c.h.b16 %v3730
    %v4109 = vunpack.c.l.b16 %v3731
    %v4110 = vunpack.c.h.b16 %v3731
    %v4111 = vunpack.c.l.b16 %v3732
    %v4112 = vunpack.c.h.b16 %v3732
    %v4113 = vunpack.c.l.b16 %v3733
    %v4114 = vunpack.c.h.b16 %v3733
    %v4115 = vunpack.c.l.b16 %v3734
    %v4116 = vunpack.c.h.b16 %v3734
    %v4117 = vunpack.c.l.b16 %v3735
    %v4118 = vunpack.c.h.b16 %v3735
    %v4119 = vunpack.c.l.b16 %v3736
    %v4120 = vunpack.c.h.b16 %v3736
    %v4121 = vunpack.c.l.b16 %v3737
    %v4122 = vunpack.c.h.b16 %v3737
    %v4123 = vunpack.c.l.b16 %v3738
    %v4124 = vunpack.c.h.b16 %v3738
    %v4125 = vunpack.c.l.b16 %v3739
    %v4126 = vunpack.c.h.b16 %v3739
    %v4127 = vunpack.c.l.b16 %v3740
    %v4128 = vunpack.c.h.b16 %v3740
    %v4129 = vunpack.c.l.b16 %v3741
    %v4130 = vunpack.c.h.b16 %v3741
    %v4131 = vunpack.c.l.b16 %v3742
    %v4132 = vunpack.c.h.b16 %v3742
    %v4133 = vunpack.c.l.b16 %v3743
    %v4134 = vunpack.c.h.b16 %v3743
    %v4135 = vunpack.c.l.b16 %v3744
    %v4136 = vunpack.c.h.b16 %v3744
    %v4137 = vunpack.c.l.b16 %v3745
    %v4138 = vunpack.c.h.b16 %v3745
    %v4139 = vunpack.c.l.b16 %v3746
    %v4140 = vunpack.c.h.b16 %v3746
    %v4141 = vunpack.c.l.b16 %v3747
    %v4142 = vunpack.c.h.b16 %v3747
    %v4143 = vunpack.c.l.b16 %v3748
    %v4144 = vunpack.c.h.b16 %v3748
    %v4145 = vunpack.c.l.b16 %v3749
    %v4146 = vunpack.c.h.b16 %v3749
    %v4147 = vunpack.c.l.b16 %v3750
    %v4148 = vunpack.c.h.b16 %v3750
    %v4149 = vunpack.c.l.b16 %v3751
    %v4150 = vunpack.c.h.b16 %v3751
    %v4151 = vunpack.c.l.b16 %v3752
    %v4152 = vunpack.c.h.b16 %v3752
    %v4153 = vunpack.c.l.b16 %v3753
    %v4154 = vunpack.c.h.b16 %v3753
    %v4155 = vunpack.c.l.b16 %v3754
    %v4156 = vunpack.c.h.b16 %v3754
    %v4157 = vunpack.c.l.b16 %v3755
    %v4158 = vunpack.c.h.b16 %v3755
    %v4159 = vunpack.c.l.b16 %v3756
    %v4160 = vunpack.c.h.b16 %v3756
    %v4161 = vunpack.c.l.b16 %v3757
    %v4162 = vunpack.c.h.b16 %v3757
    %v4163 = vunpack.c.l.b16 %v3758
    %v4164 = vunpack.c.h.b16 %v3758
    %v4165 = vunpack.c.l.b16 %v3759
    %v4166 = vunpack.c.h.b16 %v3759
    %v4167 = vunpack.c.l.b16 %v3760
    %v4168 = vunpack.c.h.b16 %v3760
    %v4169 = vunpack.c.l.b16 %v3761
    %v4170 = vunpack.c.h.b16 %v3761
    %v4171 = vunpack.c.l.b16 %v3762
    %v4172 = vunpack.c.h.b16 %v3762
    %v4173 = vunpack.c.l.b16 %v3763
    %v4174 = vunpack.c.h.b16 %v3763
    %v4175 = vunpack.c.l.b16 %v3764
    %v4176 = vunpack.c.h.b16 %v3764
    %v4177 = vunpack.c.l.b16 %v3765
    %v4178 = vunpack.c.h.b16 %v3765
    %v4179 = vunpack.c.l.b16 %v3766
    %v4180 = vunpack.c.h.b16 %v3766
    %v4181 = vunpack.c.l.b16 %v3767
    %v4182 = vunpack.c.h.b16 %v3767
    %v4183 = vunpack.c.l.b16 %v3768
    %v4184 = vunpack.c.h.b16 %v3768
    %v4185 = vunpack.c.l.b16 %v3769
    %v4186 = vunpack.c.h.b16 %v3769
    %v4187 = vunpack.c.l.b16 %v3770
    %v4188 = vunpack.c.h.b16 %v3770
    %v4189 = vunpack.c.l.b16 %v3771
    %v4190 = vunpack.c.h.b16 %v3771
    %v4191 = vunpack.c.l.b16 %v3772
    %v4192 = vunpack.c.h.b16 %v3772
    %v4193 = vunpack.c.l.b16 %v3773
    %v4194 = vunpack.c.h.b16 %v3773
    %v4195 = vunpack.c.l.b16 %v3774
    %v4196 = vunpack.c.h.b16 %v3774
    %v4197 = vunpack.c.l.b16 %v3775
    %v4198 = vunpack.c.h.b16 %v3775
    %v4199 = vunpack.c.l.b16 %v3776
    %v4200 = vunpack.c.h.b16 %v3776
    %v4201 = vunpack.c.l.b16 %v3777
    %v4202 = vunpack.c.h.b16 %v3777
    %v4203 = vunpack.c.l.b16 %v3778
    %v4204 = vunpack.c.h.b16 %v3778
    %v4205 = vunpack.c.l.b16 %v3779
    %v4206 = vunpack.c.h.b16 %v3779
    %v4207 = vunpack.c.l.b16 %v3780
    %v4208 = vunpack.c.h.b16 %v3780
    %v4209 = vunpack.c.l.b16 %v3781
    %v4210 = vunpack.c.h.b16 %v3781
    %v4211 = vunpack.c.l.b16 %v3782
    %v4212 = vunpack.c.h.b16 %v3782
    %v4213 = vunpack.c.l.b16 %v3783
    %v4214 = vunpack.c.h.b16 %v3783
    %v4215 = vunpack.c.l.b16 %v3784
    %v4216 = vunpack.c.h.b16 %v3784
    %v4217 = vunpack.c.l.b16 %v3785
    %v4218 = vunpack.c.h.b16 %v3785
    %v4219 = vunpack.c.l.b16 %v3786
    %v4220 = vunpack.c.h.b16 %v3786
    %v4221 = vunpack.c.l.b16 %v3787
    %v4222 = vunpack.c.h.b16 %v3787
    %v4223 = vunpack.c.l.b16 %v3788
    %v4224 = vunpack.c.h.b16 %v3788
    %v4225 = vunpack.c.l.b16 %v3789
    %v4226 = vunpack.c.h.b16 %v3789
    %v4227 = vunpack.c.l.b16 %v3790
    %v4228 = vunpack.c.h.b16 %v3790
    %v4229 = vunpack.c.l.b16 %v3791
    %v4230 = vunpack.c.h.b16 %v3791
    %v4231 = vunpack.c.l.b16 %v3792
    %v4232 = vunpack.c.h.b16 %v3792
    %v4233 = vunpack.c.l.b16 %v3793
    %v4234 = vunpack.c.h.b16 %v3793
    %v4235 = vunpack.c.l.b16 %v3794
    %v4236 = vunpack.c.h.b16 %v3794
    %v4237 = vunpack.c.l.b16 %v3795
    %v4238 = vunpack.c.h.b16 %v3795
    %v4239 = vunpack.c.l.b16 %v3796
    %v4240 = vunpack.c.h.b16 %v3796
    %v4241 = vunpack.c.l.b16 %v3797
    %v4242 = vunpack.c.h.b16 %v3797
    %v4243 = vunpack.c.l.b16 %v3798
    %v4244 = vunpack.c.h.b16 %v3798
    %v4245 = vunpack.c.l.b16 %v3799
    %v4246 = vunpack.c.h.b16 %v3799
    %v4247 = vunpack.c.l.b16 %v3800
    %v4248 = vunpack.c.h.b16 %v3800
    %v4249 = vunpack.c.l.b16 %v3801
    %v4250 = vunpack.c.h.b16 %v3801
    %v4251 = vunpack.c.l.b16 %v3802
    %v4252 = vunpack.c.h.b16 %v3802
    %v4253 = vunpack.c.l.b16 %v3803
    %v4254 = vunpack.c.h.b16 %v3803
    %v4255 = vunpack.c.l.b16 %v3804
    %v4256 = vunpack.c.h.b16 %v3804
    %v4257 = vunpack.c.l.b16 %v3805
    %v4258 = vunpack.c.h.b16 %v3805
    %v4259 = vunpack.c.l.b16 %v3806
    %v4260 = vunpack.c.h.b16 %v3806
    %v4261 = vunpack.c.l.b16 %v3807
    %v4262 = vunpack.c.h.b16 %v3807
    %v4263 = vunpack.c.l.b16 %v3808
    %v4264 = vunpack.c.h.b16 %v3808
    %v4265 = vunpack.c.l.b16 %v3809
    %v4266 = vunpack.c.h.b16 %v3809
    %v4267 = vunpack.c.l.b16 %v3810
    %v4268 = vunpack.c.h.b16 %v3810
    %v4269 = vunpack.c.l.b16 %v3811
    %v4270 = vunpack.c.h.b16 %v3811
    %v4271 = vunpack.c.l.b16 %v3812
    %v4272 = vunpack.c.h.b16 %v3812
    %v4273 = vunpack.c.l.b16 %v3813
    %v4274 = vunpack.c.h.b16 %v3813
    %v4275 = vunpack.c.l.b16 %v3814
    %v4276 = vunpack.c.h.b16 %v3814
    %v4277 = vunpack.c.l.b16 %v3815
    %v4278 = vunpack.c.h.b16 %v3815
    %v4279 = vunpack.c.l.b16 %v3816
    %v4280 = vunpack.c.h.b16 %v3816
    %v4281 = vunpack.c.l.b16 %v3817
    %v4282 = vunpack.c.h.b16 %v3817
    %v4283 = vunpack.c.l.b16 %v3818
    %v4284 = vunpack.c.h.b16 %v3818
    %v4285 = vunpack.c.l.b16 %v3819
    %v4286 = vunpack.c.h.b16 %v3819
    %v4287 = vpack.c.b16 %v4005, %v3999
    %v4288 = vpack.c.b16 %v4006, %v4000
    %v4289 = vpack.c.b16 %v4007, %v4001
    %v4290 = vpack.c.b16 %v4008, %v4002
    %v4291 = vpack.c.b16 %v4009, %v4003
    %v4292 = vpack.c.b16 %v4010, %v4004
    %v4293 = vpack.c.b16 %v4017, %v4011
    %v4294 = vpack.c.b16 %v4018, %v4012
    %v4295 = vpack.c.b16 %v4019, %v4013
    %v4296 = vpack.c.b16 %v4020, %v4014
    %v4297 = vpack.c.b16 %v4021, %v4015
    %v4298 = vpack.c.b16 %v4022, %v4016
    %v4299 = vpack.c.b16 %v4029, %v4023
    %v4300 = vpack.c.b16 %v4030, %v4024
    %v4301 = vpack.c.b16 %v4031, %v4025
    %v4302 = vpack.c.b16 %v4032, %v4026
    %v4303 = vpack.c.b16 %v4033, %v4027
    %v4304 = vpack.c.b16 %v4034, %v4028
    %v4305 = vpack.c.b16 %v4041, %v4035
    %v4306 = vpack.c.b16 %v4042, %v4036
    %v4307 = vpack.c.b16 %v4043, %v4037
    %v4308 = vpack.c.b16 %v4044, %v4038
    %v4309 = vpack.c.b16 %v4045, %v4039
    %v4310 = vpack.c.b16 %v4046, %v4040
    %v4311 = vpack.c.b16 %v4053, %v4047
    %v4312 = vpack.c.b16 %v4054, %v4048
    %v4313 = vpack.c.b16 %v4055, %v4049
    %v4314 = vpack.c.b16 %v4056, %v4050
    %v4315 = vpack.c.b16 %v4057, %v4051
    %v4316 = vpack.c.b16 %v4058, %v4052
    %v4317 = vpack.c.b16 %v4065, %v4059
    %v4318 = vpack.c.b16 %v4066, %v4060
    %v4319 = vpack.c.b16 %v4067, %v4061
    %v4320 = vpack.c.b16 %v4068, %v4062
    %v4321 = vpack.c.b16 %v4069, %v4063
    %v4322 = vpack.c.b16 %v4070, %v4064
    %v4323 = vpack.c.b16 %v4077, %v4071
    %v4324 = vpack.c.b16 %v4078, %v4072
    %v4325 = vpack.c.b16 %v4079, %v4073
    %v4326 = vpack.c.b16 %v4080, %v4074
    %v4327 = vpack.c.b16 %v4081, %v4075
    %v4328 = vpack.c.b16 %v4082, %v4076
    %v4329 = vpack.c.b16 %v4089, %v4083
    %v4330 = vpack.c.b16 %v4090, %v4084
    %v4331 = vpack.c.b16 %v4091, %v4085
    %v4332 = vpack.c.b16 %v4092, %v4086
    %v4333 = vpack.c.b16 %v4093, %v4087
    %v4334 = vpack.c.b16 %v4094, %v4088
    %v4335 = vpack.c.b16 %v4101, %v4095
    %v4336 = vpack.c.b16 %v4102, %v4096
    %v4337 = vpack.c.b16 %v4103, %v4097
    %v4338 = vpack.c.b16 %v4104, %v4098
    %v4339 = vpack.c.b16 %v4105, %v4099
    %v4340 = vpack.c.b16 %v4106, %v4100
    %v4341 = vpack.c.b16 %v4113, %v4107
    %v4342 = vpack.c.b16 %v4114, %v4108
    %v4343 = vpack.c.b16 %v4115, %v4109
    %v4344 = vpack.c.b16 %v4116, %v4110
    %v4345 = vpack.c.b16 %v4117, %v4111
    %v4346 = vpack.c.b16 %v4118, %v4112
    %v4347 = vpack.c.b16 %v4125, %v4119
    %v4348 = vpack.c.b16 %v4126, %v4120
    %v4349 = vpack.c.b16 %v4127, %v4121
    %v4350 = vpack.c.b16 %v4128, %v4122
    %v4351 = vpack.c.b16 %v4129, %v4123
    %v4352 = vpack.c.b16 %v4130, %v4124
    %v4353 = vpack.c.b16 %v4137, %v4131
    %v4354 = vpack.c.b16 %v4138, %v4132
    %v4355 = vpack.c.b16 %v4139, %v4133
    %v4356 = vpack.c.b16 %v4140, %v4134
    %v4357 = vpack.c.b16 %v4141, %v4135
    %v4358 = vpack.c.b16 %v4142, %v4136
    %v4359 = vpack.c.b16 %v4149, %v4143
    %v4360 = vpack.c.b16 %v4150, %v4144
    %v4361 = vpack.c.b16 %v4151, %v4145
    %v4362 = vpack.c.b16 %v4152, %v4146
    %v4363 = vpack.c.b16 %v4153, %v4147
    %v4364 = vpack.c.b16 %v4154, %v4148
    %v4365 = vpack.c.b16 %v4161, %v4155
    %v4366 = vpack.c.b16 %v4162, %v4156
    %v4367 = vpack.c.b16 %v4163, %v4157
    %v4368 = vpack.c.b16 %v4164, %v4158
    %v4369 = vpack.c.b16 %v4165, %v4159
    %v4370 = vpack.c.b16 %v4166, %v4160
    %v4371 = vpack.c.b16 %v4173, %v4167
    %v4372 = vpack.c.b16 %v4174, %v4168
    %v4373 = vpack.c.b16 %v4175, %v4169
    %v4374 = vpack.c.b16 %v4176, %v4170
    %v4375 = vpack.c.b16 %v4177, %v4171
    %v4376 = vpack.c.b16 %v4178, %v4172
    %v4377 = vpack.c.b16 %v4185, %v4179
    %v4378 = vpack.c.b16 %v4186, %v4180
    %v4379 = vpack.c.b16 %v4187, %v4181
    %v4380 = vpack.c.b16 %v4188, %v4182
    %v4381 = vpack.c.b16 %v4189, %v4183
    %v4382 = vpack.c.b16 %v4190, %v4184
    %v4383 = vpack.c.b16 %v4197, %v4191
    %v4384 = vpack.c.b16 %v4198, %v4192
    %v4385 = vpack.c.b16 %v4199, %v4193
    %v4386 = vpack.c.b16 %v4200, %v4194
    %v4387 = vpack.c.b16 %v4201, %v4195
    %v4388 = vpack.c.b16 %v4202, %v4196
    %v4389 = vpack.c.b16 %v4209, %v4203
    %v4390 = vpack.c.b16 %v4210, %v4204
    %v4391 = vpack.c.b16 %v4211, %v4205
    %v4392 = vpack.c.b16 %v4212, %v4206
    %v4393 = vpack.c.b16 %v4213, %v4207
    %v4394 = vpack.c.b16 %v4214, %v4208
    %v4395 = vpack.c.b16 %v4221, %v4215
    %v4396 = vpack.c.b16 %v4222, %v4216
    %v4397 = vpack.c.b16 %v4223, %v4217
    %v4398 = vpack.c.b16 %v4224, %v4218
    %v4399 = vpack.c.b16 %v4225, %v4219
    %v4400 = vpack.c.b16 %v4226, %v4220
    %v4401 = vpack.c.b16 %v4233, %v4227
    %v4402 = vpack.c.b16 %v4234, %v4228
    %v4403 = vpack.c.b16 %v4235, %v4229
    %v4404 = vpack.c.b16 %v4236, %v4230
    %v4405 = vpack.c.b16 %v4237, %v4231
    %v4406 = vpack.c.b16 %v4238, %v4232
    %v4407 = vpack.c.b16 %v4245, %v4239
    %v4408 = vpack.c.b16 %v4246, %v4240
    %v4409 = vpack.c.b16 %v4247, %v4241
    %v4410 = vpack.c.b16 %v4248, %v4242
    %v4411 = vpack.c.b16 %v4249, %v4243
    %v4412 = vpack.c.b16 %v4250, %v4244
    %v4413 = vpack.c.b16 %v4257, %v4251
    %v4414 = vpack.c.b16 %v4258, %v4252
    %v4415 = vpack.c.b16 %v4259, %v4253
    %v4416 = vpack.c.b16 %v4260, %v4254
    %v4417 = vpack.c.b16 %v4261, %v4255
    %v4418 = vpack.c.b16 %v4262, %v4256
    %v4419 = vpack.c.b16 %v4269, %v4263
    %v4420 = vpack.c.b16 %v4270, %v4264
    %v4421 = vpack.c.b16 %v4271, %v4265
    %v4422 = vpack.c.b16 %v4272, %v4266
    %v4423 = vpack.c.b16 %v4273, %v4267
    %v4424 = vpack.c.b16 %v4274, %v4268
    %v4425 = vpack.c.b16 %v4281, %v4275
    %v4426 = vpack.c.b16 %v4282, %v4276
    %v4427 = vpack.c.b16 %v4283, %v4277
    %v4428 = vpack.c.b16 %v4284, %v4278
    %v4429 = vpack.c.b16 %v4285, %v4279
    %v4430 = vpack.c.b16 %v4286, %v4280
    %4575 = vmatprep.subr.bf16.mxu0 %v4288
    %4576 = vmatpush1.bf16.msra.mxu0 %v4287
    %4577 = vmatprep.subr.bf16.mxu0 %v4294
    %4578 = vmatpush1.bf16.msra.mxu0 %v4293
    %4579 = vmatprep.subr.bf16.mxu0 %v4300
    %4580 = vmatpush1.bf16.msra.mxu0 %v4299
    %4581 = vmatprep.subr.bf16.mxu0 %v4306
    %4582 = vmatpush1.bf16.msra.mxu0 %v4305
    %4583 = vmatprep.subr.bf16.mxu0 %v4312
    %4584 = vmatpush1.bf16.msra.mxu0 %v4311
    %4585 = vmatprep.subr.bf16.mxu0 %v4318
    %4586 = vmatpush1.bf16.msra.mxu0 %v4317
    %4587 = vmatprep.subr.bf16.mxu0 %v4324
    %4588 = vmatpush1.bf16.msra.mxu0 %v4323
    %4589 = vmatprep.subr.bf16.mxu0 %v4330
    %4590 = vmatpush1.bf16.msra.mxu0 %v4329
    %4591 = vmatprep.subr.bf16.mxu0 %v4336
    %4592 = vmatpush1.bf16.msra.mxu0 %v4335
    %4593 = vmatprep.subr.bf16.mxu0 %v4342
    %4594 = vmatpush1.bf16.msra.mxu0 %v4341
    %4595 = vmatprep.subr.bf16.mxu0 %v4348
    %4596 = vmatpush1.bf16.msra.mxu0 %v4347
    %4597 = vmatprep.subr.bf16.mxu0 %v4354
    %4598 = vmatpush1.bf16.msra.mxu0 %v4353
    %4599 = vmatprep.subr.bf16.mxu0 %v4360
    %4600 = vmatpush1.bf16.msra.mxu0 %v4359
    %4601 = vmatprep.subr.bf16.mxu0 %v4366
    %4602 = vmatpush1.bf16.msra.mxu0 %v4365
    %4603 = vmatprep.subr.bf16.mxu0 %v4372
    %4604 = vmatpush1.bf16.msra.mxu0 %v4371
    %4605 = vmatprep.subr.bf16.mxu0 %v4378
    %4606 = vmatpush1.bf16.msra.mxu0 %v4377
    %4607 = vmatprep.mubr.bf16.mxu0 %v3674
    %4608 = vmatmul.mubr.bf16.gmra.mrb[0].mxu0 %v3673
    %v4609 = vpop.f32.mrb[0].mxu0
    %v4610 = vadd.f32 %v3828, %v4609
    %v4611 = vpop.f32.mrb[0].mxu0
    %v4612 = vadd.f32 %v3832, %v4611
    %v4613 = vpop.f32.mrb[0].mxu0
    %v4614 = vadd.f32 %v3828, %v4613
    %v4615 = vpop.f32.mrb[0].mxu0
    %v4616 = vadd.f32 %v3832, %v4615
    %4617 = vdwg.mxu0
    %4618 = vmatprep.subr.bf16.mxu0 %v4384
    %4619 = vmatpush1.bf16.msra.mxu0 %v4383
    %4620 = vmatprep.subr.bf16.mxu0 %v4390
    %4621 = vmatpush1.bf16.msra.mxu0 %v4389
    %4622 = vmatprep.subr.bf16.mxu0 %v4396
    %4623 = vmatpush1.bf16.msra.mxu0 %v4395
    %4624 = vmatprep.subr.bf16.mxu0 %v4402
    %4625 = vmatpush1.bf16.msra.mxu0 %v4401
    %4626 = vmatprep.subr.bf16.mxu0 %v4408
    %4627 = vmatpush1.bf16.msra.mxu0 %v4407
    %4628 = vmatprep.subr.bf16.mxu0 %v4414
    %4629 = vmatpush1.bf16.msra.mxu0 %v4413
    %4630 = vmatprep.subr.bf16.mxu0 %v4420
    %4631 = vmatpush1.bf16.msra.mxu0 %v4419
    %4632 = vmatprep.subr.bf16.mxu0 %v4426
    %4633 = vmatpush1.bf16.msra.mxu0 %v4425
    %4634 = vmatprep.subr.bf16.mxu0 0
    %4635 = vmatpush1.bf16.msra.mxu0 0
    %4636 = vmatprep.subr.bf16.mxu0 0
    %4637 = vmatpush1.bf16.msra.mxu0 0
    %4638 = vmatprep.subr.bf16.mxu0 0
    %4639 = vmatpush1.bf16.msra.mxu0 0
    %4640 = vmatprep.subr.bf16.mxu0 0
    %4641 = vmatpush1.bf16.msra.mxu0 0
    %4642 = vmatprep.subr.bf16.mxu0 0
    %4643 = vmatpush1.bf16.msra.mxu0 0
    %4644 = vmatprep.subr.bf16.mxu0 0
    %4645 = vmatpush1.bf16.msra.mxu0 0
    %4646 = vmatprep.subr.bf16.mxu0 0
    %4647 = vmatpush1.bf16.msra.mxu0 0
    %4648 = vmatprep.subr.bf16.mxu0 0
    %4649 = vmatpush1.bf16.msra.mxu0 0
    %4650 = vmatprep.mubr.bf16.mxu0 0
    %4651 = vmatmul.mubr.bf16.gmra.mrb[0].mxu0 %v3675
    %v4652 = vpop.f32.mrb[0].mxu0
    %v4653 = vadd.f32 %v4610, %v4652
    %v4654 = vpop.f32.mrb[0].mxu0
    %v4655 = vadd.f32 %v4612, %v4654
    %v4656 = vpop.f32.mrb[0].mxu0
    %v4657 = vadd.f32 %v4614, %v4656
    %v4658 = vpop.f32.mrb[0].mxu0
    %v4659 = vadd.f32 %v4616, %v4658
    %4660 = vdwg.mxu0
    %4661 = vmatprep.subr.bf16.mxu0 %v4290
    %4662 = vmatpush1.bf16.msra.mxu0 %v4289
    %4663 = vmatprep.subr.bf16.mxu0 %v4296
    %4664 = vmatpush1.bf16.msra.mxu0 %v4295
    %4665 = vmatprep.subr.bf16.mxu0 %v4302
    %4666 = vmatpush1.bf16.msra.mxu0 %v4301
    %4667 = vmatprep.subr.bf16.mxu0 %v4308
    %4668 = vmatpush1.bf16.msra.mxu0 %v4307
    %4669 = vmatprep.subr.bf16.mxu0 %v4314
    %4670 = vmatpush1.bf16.msra.mxu0 %v4313
    %4671 = vmatprep.subr.bf16.mxu0 %v4320
    %4672 = vmatpush1.bf16.msra.mxu0 %v4319
    %4673 = vmatprep.subr.bf16.mxu0 %v4326
    %4674 = vmatpush1.bf16.msra.mxu0 %v4325
    %4675 = vmatprep.subr.bf16.mxu0 %v4332
    %4676 = vmatpush1.bf16.msra.mxu0 %v4331
    %4677 = vmatprep.subr.bf16.mxu0 %v4338
    %4678 = vmatpush1.bf16.msra.mxu0 %v4337
    %4679 = vmatprep.subr.bf16.mxu0 %v4344
    %4680 = vmatpush1.bf16.msra.mxu0 %v4343
    %4681 = vmatprep.subr.bf16.mxu0 %v4350
    %4682 = vmatpush1.bf16.msra.mxu0 %v4349
    %4683 = vmatprep.subr.bf16.mxu0 %v4356
    %4684 = vmatpush1.bf16.msra.mxu0 %v4355
    %4685 = vmatprep.subr.bf16.mxu0 %v4362
    %4686 = vmatpush1.bf16.msra.mxu0 %v4361
    %4687 = vmatprep.subr.bf16.mxu0 %v4368
    %4688 = vmatpush1.bf16.msra.mxu0 %v4367
    %4689 = vmatprep.subr.bf16.mxu0 %v4374
    %4690 = vmatpush1.bf16.msra.mxu0 %v4373
    %4691 = vmatprep.subr.bf16.mxu0 %v4380
    %4692 = vmatpush1.bf16.msra.mxu0 %v4379
    %4693 = vmatprep.mubr.bf16.mxu0 %v3674
    %4694 = vmatmul.mubr.bf16.gmra.mrb[0].mxu0 %v3673
    %v4695 = vpop.f32.mrb[0].mxu0
    %v4696 = vadd.f32 %v3836, %v4695
    %v4697 = vpop.f32.mrb[0].mxu0
    %v4698 = vadd.f32 %v3840, %v4697
    %v4699 = vpop.f32.mrb[0].mxu0
    %v4700 = vadd.f32 %v3836, %v4699
    %v4701 = vpop.f32.mrb[0].mxu0
    %v4702 = vadd.f32 %v3840, %v4701
    %4703 = vdwg.mxu0
    %4704 = vmatprep.subr.bf16.mxu0 %v4386
    %4705 = vmatpush1.bf16.msra.mxu0 %v4385
    %4706 = vmatprep.subr.bf16.mxu0 %v4392
    %4707 = vmatpush1.bf16.msra.mxu0 %v4391
    %4708 = vmatprep.subr.bf16.mxu0 %v4398
    %4709 = vmatpush1.bf16.msra.mxu0 %v4397
    %4710 = vmatprep.subr.bf16.mxu0 %v4404
    %4711 = vmatpush1.bf16.msra.mxu0 %v4403
    %4712 = vmatprep.subr.bf16.mxu0 %v4410
    %4713 = vmatpush1.bf16.msra.mxu0 %v4409
    %4714 = vmatprep.subr.bf16.mxu0 %v4416
    %4715 = vmatpush1.bf16.msra.mxu0 %v4415
    %4716 = vmatprep.subr.bf16.mxu0 %v4422
    %4717 = vmatpush1.bf16.msra.mxu0 %v4421
    %4718 = vmatprep.subr.bf16.mxu0 %v4428
    %4719 = vmatpush1.bf16.msra.mxu0 %v4427
    %4720 = vmatprep.subr.bf16.mxu0 0
    %4721 = vmatpush1.bf16.msra.mxu0 0
    %4722 = vmatprep.subr.bf16.mxu0 0
    %4723 = vmatpush1.bf16.msra.mxu0 0
    %4724 = vmatprep.subr.bf16.mxu0 0
    %4725 = vmatpush1.bf16.msra.mxu0 0
    %4726 = vmatprep.subr.bf16.mxu0 0
    %4727 = vmatpush1.bf16.msra.mxu0 0
    %4728 = vmatprep.subr.bf16.mxu0 0
    %4729 = vmatpush1.bf16.msra.mxu0 0
    %4730 = vmatprep.subr.bf16.mxu0 0
    %4731 = vmatpush1.bf16.msra.mxu0 0
    %4732 = vmatprep.subr.bf16.mxu0 0
    %4733 = vmatpush1.bf16.msra.mxu0 0
    %4734 = vmatprep.subr.bf16.mxu0 0
    %4735 = vmatpush1.bf16.msra.mxu0 0
    %4736 = vmatprep.mubr.bf16.mxu0 0
    %4737 = vmatmul.mubr.bf16.gmra.mrb[0].mxu0 %v3675
    %v4738 = vpop.f32.mrb[0].mxu0
    %v4739 = vadd.f32 %v4696, %v4738
    %v4740 = vpop.f32.mrb[0].mxu0
    %v4741 = vadd.f32 %v4698, %v4740
    %v4742 = vpop.f32.mrb[0].mxu0
    %v4743 = vadd.f32 %v4700, %v4742
    %v4744 = vpop.f32.mrb[0].mxu0
    %v4745 = vadd.f32 %v4702, %v4744
    %4746 = vdwg.mxu0
    %4747 = vmatprep.subr.bf16.mxu0 %v4292
    %4748 = vmatpush1.bf16.msra.mxu0 %v4291
    %4749 = vmatprep.subr.bf16.mxu0 %v4298
    %4750 = vmatpush1.bf16.msra.mxu0 %v4297
    %4751 = vmatprep.subr.bf16.mxu0 %v4304
    %4752 = vmatpush1.bf16.msra.mxu0 %v4303
    %4753 = vmatprep.subr.bf16.mxu0 %v4310
    %4754 = vmatpush1.bf16.msra.mxu0 %v4309
    %4755 = vmatprep.subr.bf16.mxu0 %v4316
    %4756 = vmatpush1.bf16.msra.mxu0 %v4315
    %4757 = vmatprep.subr.bf16.mxu0 %v4322
    %4758 = vmatpush1.bf16.msra.mxu0 %v4321
    %4759 = vmatprep.subr.bf16.mxu0 %v4328
    %4760 = vmatpush1.bf16.msra.mxu0 %v4327
    %4761 = vmatprep.subr.bf16.mxu0 %v4334
    %4762 = vmatpush1.bf16.msra.mxu0 %v4333
    %4763 = vmatprep.subr.bf16.mxu0 %v4340
    %4764 = vmatpush1.bf16.msra.mxu0 %v4339
    %4765 = vmatprep.subr.bf16.mxu0 %v4346
    %4766 = vmatpush1.bf16.msra.mxu0 %v4345
    %4767 = vmatprep.subr.bf16.mxu0 %v4352
    %4768 = vmatpush1.bf16.msra.mxu0 %v4351
    %4769 = vmatprep.subr.bf16.mxu0 %v4358
    %4770 = vmatpush1.bf16.msra.mxu0 %v4357
    %4771 = vmatprep.subr.bf16.mxu0 %v4364
    %4772 = vmatpush1.bf16.msra.mxu0 %v4363
    %4773 = vmatprep.subr.bf16.mxu0 %v4370
    %4774 = vmatpush1.bf16.msra.mxu0 %v4369
    %4775 = vmatprep.subr.bf16.mxu0 %v4376
    %4776 = vmatpush1.bf16.msra.mxu0 %v4375
    %4777 = vmatprep.subr.bf16.mxu0 %v4382
    %4778 = vmatpush1.bf16.msra.mxu0 %v4381
    %4779 = vmatprep.mubr.bf16.mxu0 %v3674
    %4780 = vmatmul.mubr.bf16.gmra.mrb[0].mxu0 %v3673
    %v4781 = vpop.f32.mrb[0].mxu0
    %v4782 = vadd.f32 %v3844, %v4781
    %v4783 = vpop.f32.mrb[0].mxu0
    %v4784 = vadd.f32 %v3848, %v4783
    %v4785 = vpop.f32.mrb[0].mxu0
    %v4786 = vadd.f32 %v3844, %v4785
    %v4787 = vpop.f32.mrb[0].mxu0
    %v4788 = vadd.f32 %v3848, %v4787
    %4789 = vdwg.mxu0
    %4790 = vmatprep.subr.bf16.mxu0 %v4388
    %4791 = vmatpush1.bf16.msra.mxu0 %v4387
    %4792 = vmatprep.subr.bf16.mxu0 %v4394
    %4793 = vmatpush1.bf16.msra.mxu0 %v4393
    %4794 = vmatprep.subr.bf16.mxu0 %v4400
    %4795 = vmatpush1.bf16.msra.mxu0 %v4399
    %4796 = vmatprep.subr.bf16.mxu0 %v4406
    %4797 = vmatpush1.bf16.msra.mxu0 %v4405
    %4798 = vmatprep.subr.bf16.mxu0 %v4412
    %4799 = vmatpush1.bf16.msra.mxu0 %v4411
    %4800 = vmatprep.subr.bf16.mxu0 %v4418
    %4801 = vmatpush1.bf16.msra.mxu0 %v4417
    %4802 = vmatprep.subr.bf16.mxu0 %v4424
    %4803 = vmatpush1.bf16.msra.mxu0 %v4423
    %4804 = vmatprep.subr.bf16.mxu0 %v4430
    %4805 = vmatpush1.bf16.msra.mxu0 %v4429
    %4806 = vmatprep.subr.bf16.mxu0 0
    %4807 = vmatpush1.bf16.msra.mxu0 0
    %4808 = vmatprep.subr.bf16.mxu0 0
    %4809 = vmatpush1.bf16.msra.mxu0 0
    %4810 = vmatprep.subr.bf16.mxu0 0
    %4811 = vmatpush1.bf16.msra.mxu0 0
    %4812 = vmatprep.subr.bf16.mxu0 0
    %4813 = vmatpush1.bf16.msra.mxu0 0
    %4814 = vmatprep.subr.bf16.mxu0 0
    %4815 = vmatpush1.bf16.msra.mxu0 0
    %4816 = vmatprep.subr.bf16.mxu0 0
    %4817 = vmatpush1.bf16.msra.mxu0 0
    %4818 = vmatprep.subr.bf16.mxu0 0
    %4819 = vmatpush1.bf16.msra.mxu0 0
    %4820 = vmatprep.subr.bf16.mxu0 0
    %4821 = vmatpush1.bf16.msra.mxu0 0
    %4822 = vmatprep.mubr.bf16.mxu0 0
    %4823 = vmatmul.mubr.bf16.gmra.mrb[0].mxu0 %v3675
    %v4824 = vpop.f32.mrb[0].mxu0
    %v4825 = vadd.f32 %v4782, %v4824
    %v4826 = vpop.f32.mrb[0].mxu0
    %v4827 = vadd.f32 %v4784, %v4826
    %v4828 = vpop.f32.mrb[0].mxu0
    %v4829 = vadd.f32 %v4786, %v4828
    %v4830 = vpop.f32.mrb[0].mxu0
    %v4831 = vadd.f32 %v4788, %v4830
    %4832 = vdwg.mxu0
    %v4833 = vmax.f32 %v4653, 0.0
    %v4834 = vmax.f32 %v4655, 0.0
    %v4835 = vmax.f32 %v4739, 0.0
    %v4836 = vmax.f32 %v4741, 0.0
    %v4837 = vmax.f32 %v4825, 0.0
    %v4838 = vmax.f32 %v4827, 0.0
    %v4839 = vmax.f32 %v4657, 0.0
    %v4840 = vmax.f32 %v4659, 0.0
    %v4841 = vmax.f32 %v4743, 0.0
    %v4842 = vmax.f32 %v4745, 0.0
    %v4843 = vmax.f32 %v4829, 0.0
    %v4844 = vmax.f32 %v4831, 0.0
    %v4845 = vpack.c.bf16 %v4839, %v4833
    %v4846 = vpack.c.bf16 %v4840, %v4834
    %v4847 = vpack.c.bf16 %v4841, %v4835
    %v4848 = vpack.c.bf16 %v4842, %v4836
    %v4849 = vpack.c.bf16 %v4843, %v4837
    %v4850 = vpack.c.bf16 %v4844, %v4838
    %v4851 = vld [vmem:[#allocation7] sm:$0xf]
    %v4852 = vld [vmem:[#allocation7 + $0x4] sm:$0xf]
    %v4853 = vld [vmem:[#allocation7 + $0x8] sm:$0xf]
    %v4854 = vld [vmem:[#allocation7 + $0xc] sm:$0xf]
    %v4855 = vld [vmem:[#allocation7 + $0x10] sm:$0xf]
    %v4856 = vld [vmem:[#allocation7 + $0x14] sm:$0xf]
    %v4857 = vld [vmem:[#allocation7 + $0x18] sm:$0xf]
    %v4858 = vld [vmem:[#allocation7 + $0x1c] sm:$0xf]
    %v4859 = vld [vmem:[#allocation7 + $0x20] sm:$0xf]
    %v4860 = vld [vmem:[#allocation7 + $0x24] sm:$0xf]
    %v4861 = vld [vmem:[#allocation7 + $0x28] sm:$0xf]
    %v4862 = vld [vmem:[#allocation7 + $0x2c] sm:$0xf]
    %v4863 = vld [vmem:[#allocation7 + $0x30] sm:$0xf]
    %v4864 = vld [vmem:[#allocation7 + $0x34] sm:$0xf]
    %v4865 = vld [vmem:[#allocation7 + $0x38] sm:$0xf]
    %v4866 = vld [vmem:[#allocation7 + $0x3c] sm:$0xf]
    %v4867 = vld [vmem:[#allocation7 + $0x40] sm:$0xf]
    %v4868 = vld [vmem:[#allocation7 + $0x44] sm:$0xf]
    %v4869 = vld [vmem:[#allocation7 + $0x48] sm:$0xf]
    %v4870 = vld [vmem:[#allocation7 + $0x4c] sm:$0xf]
    %v4871 = vld [vmem:[#allocation7 + $0x50] sm:$0xf]
    %v4872 = vld [vmem:[#allocation7 + $0x54] sm:$0xf]
    %v4873 = vld [vmem:[#allocation7 + $0x58] sm:$0xf]
    %v4874 = vld [vmem:[#allocation7 + $0x5c] sm:$0xf]
    %v4875 = vld [vmem:[#allocation7 + $0x60] sm:$0xf]
    %v4876 = vld [vmem:[#allocation7 + $0x64] sm:$0xf]
    %v4877 = vld [vmem:[#allocation7 + $0x68] sm:$0xf]
    %v4878 = vld [vmem:[#allocation7 + $0x6c] sm:$0xf]
    %v4879 = vld [vmem:[#allocation7 + $0x70] sm:$0xf]
    %v4880 = vld [vmem:[#allocation7 + $0x74] sm:$0xf]
    %v4881 = vld [vmem:[#allocation7 + $0x78] sm:$0xf]
    %v4882 = vld [vmem:[#allocation7 + $0x7c] sm:$0xf]
    %v4883 = vld [vmem:[#allocation7 + $0x80] sm:$0xf]
    %v4884 = vld [vmem:[#allocation7 + $0x84] sm:$0xf]
    %v4885 = vld [vmem:[#allocation7 + $0x88] sm:$0xf]
    %v4886 = vld [vmem:[#allocation7 + $0x8c] sm:$0xf]
    %v4887 = vld [vmem:[#allocation7 + $0x90] sm:$0xf]
    %v4888 = vld [vmem:[#allocation7 + $0x94] sm:$0xf]
    %v4889 = vld [vmem:[#allocation7 + $0x98] sm:$0xf]
    %v4890 = vld [vmem:[#allocation7 + $0x9c] sm:$0xf]
    %v4891 = vld [vmem:[#allocation7 + $0xa0] sm:$0xf]
    %v4892 = vld [vmem:[#allocation7 + $0xa4] sm:$0xf]
    %v4893 = vld [vmem:[#allocation7 + $0xa8] sm:$0xf]
    %v4894 = vld [vmem:[#allocation7 + $0xac] sm:$0xf]
    %v4895 = vld [vmem:[#allocation7 + $0xb0] sm:$0xf]
    %v4896 = vld [vmem:[#allocation7 + $0xb4] sm:$0xf]
    %v4897 = vld [vmem:[#allocation7 + $0xb8] sm:$0xf]
    %v4898 = vld [vmem:[#allocation7 + $0xbc] sm:$0xf]
    %v4899 = vld [vmem:[%s7 + $0x4] ss:$0 sm:$0xff]
    %v4948 = vunpack.c.l.b16 %v4851
    %v4949 = vunpack.c.l.b16 %v4852
    %v4950 = vunpack.c.l.b16 %v4853
    %v4951 = vunpack.c.l.b16 %v4854
    %v4952 = vunpack.c.l.b16 %v4855
    %v4953 = vunpack.c.l.b16 %v4856
    %v4954 = vunpack.c.l.b16 %v4857
    %v4955 = vunpack.c.l.b16 %v4858
    %v4956 = vunpack.c.l.b16 %v4859
    %v4957 = vunpack.c.l.b16 %v4860
    %v4958 = vunpack.c.l.b16 %v4861
    %v4959 = vunpack.c.l.b16 %v4862
    %v4960 = vunpack.c.l.b16 %v4863
    %v4961 = vunpack.c.l.b16 %v4864
    %v4962 = vunpack.c.l.b16 %v4865
    %v4963 = vunpack.c.l.b16 %v4866
    %v4964 = vunpack.c.l.b16 %v4867
    %v4965 = vunpack.c.l.b16 %v4868
    %v4966 = vunpack.c.l.b16 %v4869
    %v4967 = vunpack.c.l.b16 %v4870
    %v4968 = vunpack.c.l.b16 %v4871
    %v4969 = vunpack.c.l.b16 %v4872
    %v4970 = vunpack.c.l.b16 %v4873
    %v4971 = vunpack.c.l.b16 %v4874
    %v4972 = vunpack.c.l.b16 %v4875
    %v4973 = vunpack.c.l.b16 %v4876
    %v4974 = vunpack.c.l.b16 %v4877
    %v4975 = vunpack.c.l.b16 %v4878
    %v4976 = vunpack.c.l.b16 %v4879
    %v4977 = vunpack.c.l.b16 %v4880
    %v4978 = vunpack.c.l.b16 %v4881
    %v4979 = vunpack.c.l.b16 %v4882
    %v4980 = vunpack.c.l.b16 %v4883
    %v4981 = vunpack.c.l.b16 %v4884
    %v4982 = vunpack.c.l.b16 %v4885
    %v4983 = vunpack.c.l.b16 %v4886
    %v4984 = vunpack.c.l.b16 %v4887
    %v4985 = vunpack.c.l.b16 %v4888
    %v4986 = vunpack.c.l.b16 %v4889
    %v4987 = vunpack.c.l.b16 %v4890
    %v4988 = vunpack.c.l.b16 %v4891
    %v4989 = vunpack.c.l.b16 %v4892
    %v4990 = vunpack.c.l.b16 %v4893
    %v4991 = vunpack.c.l.b16 %v4894
    %v4992 = vunpack.c.l.b16 %v4895
    %v4993 = vunpack.c.l.b16 %v4896
    %v4994 = vunpack.c.l.b16 %v4897
    %v4995 = vunpack.c.l.b16 %v4898
    %v4996 = vpack.c.b16 %v4949, %v4948
    %v4997 = vpack.c.b16 %v4951, %v4950
    %v4998 = vpack.c.b16 %v4953, %v4952
    %v4999 = vpack.c.b16 %v4955, %v4954
    %v5000 = vpack.c.b16 %v4957, %v4956
    %v5001 = vpack.c.b16 %v4959, %v4958
    %v5002 = vpack.c.b16 %v4961, %v4960
    %v5003 = vpack.c.b16 %v4963, %v4962
    %v5004 = vpack.c.b16 %v4965, %v4964
    %v5005 = vpack.c.b16 %v4967, %v4966
    %v5006 = vpack.c.b16 %v4969, %v4968
    %v5007 = vpack.c.b16 %v4971, %v4970
    %v5008 = vpack.c.b16 %v4973, %v4972
    %v5009 = vpack.c.b16 %v4975, %v4974
    %v5010 = vpack.c.b16 %v4977, %v4976
    %v5011 = vpack.c.b16 %v4979, %v4978
    %v5012 = vpack.c.b16 %v4981, %v4980
    %v5013 = vpack.c.b16 %v4983, %v4982
    %v5014 = vpack.c.b16 %v4985, %v4984
    %v5015 = vpack.c.b16 %v4987, %v4986
    %v5016 = vpack.c.b16 %v4989, %v4988
    %v5017 = vpack.c.b16 %v4991, %v4990
    %v5018 = vpack.c.b16 %v4993, %v4992
    %v5019 = vpack.c.b16 %v4995, %v4994
    %5044 = vmatprep.subr.bf16.mxu0 0
    %5045 = vmatpush1.bf16.msra.mxu0 %v4996
    %5046 = vmatprep.subr.bf16.mxu0 0
    %5047 = vmatpush1.bf16.msra.mxu0 %v4997
    %5048 = vmatprep.subr.bf16.mxu0 0
    %5049 = vmatpush1.bf16.msra.mxu0 %v4998
    %5050 = vmatprep.subr.bf16.mxu0 0
    %5051 = vmatpush1.bf16.msra.mxu0 %v4999
    %5052 = vmatprep.subr.bf16.mxu0 0
    %5053 = vmatpush1.bf16.msra.mxu0 %v5000
    %5054 = vmatprep.subr.bf16.mxu0 0
    %5055 = vmatpush1.bf16.msra.mxu0 %v5001
    %5056 = vmatprep.subr.bf16.mxu0 0
    %5057 = vmatpush1.bf16.msra.mxu0 %v5002
    %5058 = vmatprep.subr.bf16.mxu0 0
    %5059 = vmatpush1.bf16.msra.mxu0 %v5003
    %5060 = vmatprep.subr.bf16.mxu0 0
    %5061 = vmatpush1.bf16.msra.mxu0 %v5004
    %5062 = vmatprep.subr.bf16.mxu0 0
    %5063 = vmatpush1.bf16.msra.mxu0 %v5005
    %5064 = vmatprep.subr.bf16.mxu0 0
    %5065 = vmatpush1.bf16.msra.mxu0 %v5006
    %5066 = vmatprep.subr.bf16.mxu0 0
    %5067 = vmatpush1.bf16.msra.mxu0 %v5007
    %5068 = vmatprep.subr.bf16.mxu0 0
    %5069 = vmatpush1.bf16.msra.mxu0 %v5008
    %5070 = vmatprep.subr.bf16.mxu0 0
    %5071 = vmatpush1.bf16.msra.mxu0 %v5009
    %5072 = vmatprep.subr.bf16.mxu0 0
    %5073 = vmatpush1.bf16.msra.mxu0 %v5010
    %5074 = vmatprep.subr.bf16.mxu0 0
    %5075 = vmatpush1.bf16.msra.mxu0 %v5011
    %5076 = vmatprep.mubr.bf16.mxu0 %v4846
    %5077 = vmatmul.mubr.bf16.gmra.mrb[0].mxu0 %v4845
    %v5078 = vpop.f32.mrb[0].mxu0
    %v5079 = vadd.f32 %v4899, %v5078
    %v5080 = vpop.f32.mrb[0].mxu0
    %v5081 = vpop.f32.mrb[0].mxu0
    %v5082 = vadd.f32 %v4899, %v5081
    %v5083 = vpop.f32.mrb[0].mxu0
    %5084 = vdwg.mxu0
    %5085 = vmatprep.subr.bf16.mxu0 0
    %5086 = vmatpush1.bf16.msra.mxu0 %v5012
    %5087 = vmatprep.subr.bf16.mxu0 0
    %5088 = vmatpush1.bf16.msra.mxu0 %v5013
    %5089 = vmatprep.subr.bf16.mxu0 0
    %5090 = vmatpush1.bf16.msra.mxu0 %v5014
    %5091 = vmatprep.subr.bf16.mxu0 0
    %5092 = vmatpush1.bf16.msra.mxu0 %v5015
    %5093 = vmatprep.subr.bf16.mxu0 0
    %5094 = vmatpush1.bf16.msra.mxu0 %v5016
    %5095 = vmatprep.subr.bf16.mxu0 0
    %5096 = vmatpush1.bf16.msra.mxu0 %v5017
    %5097 = vmatprep.subr.bf16.mxu0 0
    %5098 = vmatpush1.bf16.msra.mxu0 %v5018
    %5099 = vmatprep.subr.bf16.mxu0 0
    %5100 = vmatpush1.bf16.msra.mxu0 %v5019
    %5101 = vmatprep.subr.bf16.mxu0 0
    %5102 = vmatpush1.bf16.msra.mxu0 0
    %5103 = vmatprep.subr.bf16.mxu0 0
    %5104 = vmatpush1.bf16.msra.mxu0 0
    %5105 = vmatprep.subr.bf16.mxu0 0
    %5106 = vmatpush1.bf16.msra.mxu0 0
    %5107 = vmatprep.subr.bf16.mxu0 0
    %5108 = vmatpush1.bf16.msra.mxu0 0
    %5109 = vmatprep.subr.bf16.mxu0 0
    %5110 = vmatpush1.bf16.msra.mxu0 0
    %5111 = vmatprep.subr.bf16.mxu0 0
    %5112 = vmatpush1.bf16.msra.mxu0 0
    %5113 = vmatprep.subr.bf16.mxu0 0
    %5114 = vmatpush1.bf16.msra.mxu0 0
    %5115 = vmatprep.subr.bf16.mxu0 0
    %5116 = vmatpush1.bf16.msra.mxu0 0
    %5117 = vmatprep.mubr.bf16.mxu0 0
    %5118 = vmatmul.mubr.bf16.gmra.mrb[0].mxu0 %v4847
    %v5119 = vpop.f32.mrb[0].mxu0
    %v5120 = vadd.f32 %v5079, %v5119
    %v5121 = vpop.f32.mrb[0].mxu0
    %v5122 = vpop.f32.mrb[0].mxu0
    %v5123 = vadd.f32 %v5082, %v5122
    %v5124 = vpop.f32.mrb[0].mxu0
    %5125 = vdwg.mxu0
    %v5126 = vmul.f32 %v5120, %v5120
    %v5127 = vmul.f32 %v5123, %v5123
    %5128 = vadd.xlane.f32.xlu0 %v5126
    %v5129 = vpop.xlane.xlu0 %5128
    %5130 = vadd.xlane.f32.xlu0 %v5127
    %v5131 = vpop.xlane.xlu0 %5130
    %v5132 = vrsqrt.pop %v5129
    %v5133 = vmul.f32 %v5129, %v5132
    %vm5134 = vcmp.eq.f32.partialorder %v5129, inf
    %v5135 = vsel %vm5134, %v5129, %v5133
    %vm5136 = vcmp.eq.f32.partialorder %v5129, 0.0
    %v5137 = vand.u32 %v5129, 2147483648
    %v5138 = vsel %vm5136, %v5137, %v5135
    %v5139 = vrsqrt.pop %v5131
    %v5140 = vmul.f32 %v5131, %v5139
    %vm5141 = vcmp.eq.f32.partialorder %v5131, inf
    %v5142 = vsel %vm5141, %v5131, %v5140
    %vm5143 = vcmp.eq.f32.partialorder %v5131, 0.0
    %v5144 = vand.u32 %v5131, 2147483648
    %v5145 = vsel %vm5143, %v5144, %v5142
    %v5146 = vmax.f32 %v5138, 1e-12
    %v5147 = vmax.f32 %v5145, 1e-12
    %v5148 = vrcp.pop %v5146
    %v5149 = vmul.f32 %v5120, %v5148
    %v5150 = vrcp.pop %v5147
    %v5151 = vmul.f32 %v5123, %v5150
    %5152 = vst [vmem:[%s8] sm:$0xff] %v5149
    %5153 = vst [vmem:[%s8 + $0x8] sm:$0xff] %v5151
    %v5154 = vld [vmem:[#allocation9] sm:$0xf]
    %v5155 = vld [vmem:[#allocation9 + $0x4] sm:$0xf]
    %v5156 = vld [vmem:[#allocation9 + $0x8] sm:$0xf]
    %v5157 = vld [vmem:[#allocation9 + $0xc] sm:$0xf]
    %v5158 = vld [vmem:[#allocation9 + $0x10] sm:$0xf]
    %v5159 = vld [vmem:[#allocation9 + $0x14] sm:$0xf]
    %v5160 = vld [vmem:[#allocation9 + $0x18] sm:$0xf]
    %v5161 = vld [vmem:[#allocation9 + $0x1c] sm:$0xf]
    %v5162 = vld [vmem:[#allocation9 + $0x20] sm:$0xf]
    %v5163 = vld [vmem:[#allocation9 + $0x24] sm:$0xf]
    %v5164 = vld [vmem:[#allocation9 + $0x28] sm:$0xf]
    %v5165 = vld [vmem:[#allocation9 + $0x2c] sm:$0xf]
    %v5166 = vld [vmem:[#allocation9 + $0x30] sm:$0xf]
    %v5167 = vld [vmem:[#allocation9 + $0x34] sm:$0xf]
    %v5168 = vld [vmem:[#allocation9 + $0x38] sm:$0xf]
    %v5169 = vld [vmem:[#allocation9 + $0x3c] sm:$0xf]
    %v5170 = vld [vmem:[#allocation9 + $0x40] sm:$0xf]
    %v5171 = vld [vmem:[#allocation9 + $0x44] sm:$0xf]
    %v5172 = vld [vmem:[#allocation9 + $0x48] sm:$0xf]
    %v5173 = vld [vmem:[#allocation9 + $0x4c] sm:$0xf]
    %v5174 = vld [vmem:[#allocation9 + $0x50] sm:$0xf]
    %v5175 = vld [vmem:[#allocation9 + $0x54] sm:$0xf]
    %v5176 = vld [vmem:[#allocation9 + $0x58] sm:$0xf]
    %v5177 = vld [vmem:[#allocation9 + $0x5c] sm:$0xf]
    %v5178 = vld [vmem:[#allocation9 + $0x60] sm:$0xf]
    %v5179 = vld [vmem:[#allocation9 + $0x64] sm:$0xf]
    %v5180 = vld [vmem:[#allocation9 + $0x68] sm:$0xf]
    %v5181 = vld [vmem:[#allocation9 + $0x6c] sm:$0xf]
    %v5182 = vld [vmem:[#allocation9 + $0x70] sm:$0xf]
    %v5183 = vld [vmem:[#allocation9 + $0x74] sm:$0xf]
    %v5184 = vld [vmem:[#allocation9 + $0x78] sm:$0xf]
    %v5185 = vld [vmem:[#allocation9 + $0x7c] sm:$0xf]
    %v5186 = vld [vmem:[#allocation9 + $0x80] sm:$0xf]
    %v5187 = vld [vmem:[#allocation9 + $0x84] sm:$0xf]
    %v5188 = vld [vmem:[#allocation9 + $0x88] sm:$0xf]
    %v5189 = vld [vmem:[#allocation9 + $0x8c] sm:$0xf]
    %v5190 = vld [vmem:[#allocation9 + $0x90] sm:$0xf]
    %v5191 = vld [vmem:[#allocation9 + $0x94] sm:$0xf]
    %v5192 = vld [vmem:[#allocation9 + $0x98] sm:$0xf]
    %v5193 = vld [vmem:[#allocation9 + $0x9c] sm:$0xf]
    %v5194 = vld [vmem:[#allocation9 + $0xa0] sm:$0xf]
    %v5195 = vld [vmem:[#allocation9 + $0xa4] sm:$0xf]
    %v5196 = vld [vmem:[#allocation9 + $0xa8] sm:$0xf]
    %v5197 = vld [vmem:[#allocation9 + $0xac] sm:$0xf]
    %v5198 = vld [vmem:[#allocation9 + $0xb0] sm:$0xf]
    %v5199 = vld [vmem:[#allocation9 + $0xb4] sm:$0xf]
    %v5200 = vld [vmem:[#allocation9 + $0xb8] sm:$0xf]
    %v5201 = vld [vmem:[#allocation9 + $0xbc] sm:$0xf]
    %v5202 = vld [vmem:[%s7 + $0x5] ss:$0 sm:$0xff]
    %v5251 = vunpack.c.l.b16 %v5154
    %v5252 = vunpack.c.l.b16 %v5155
    %v5253 = vunpack.c.l.b16 %v5156
    %v5254 = vunpack.c.l.b16 %v5157
    %v5255 = vunpack.c.l.b16 %v5158
    %v5256 = vunpack.c.l.b16 %v5159
    %v5257 = vunpack.c.l.b16 %v5160
    %v5258 = vunpack.c.l.b16 %v5161
    %v5259 = vunpack.c.l.b16 %v5162
    %v5260 = vunpack.c.l.b16 %v5163
    %v5261 = vunpack.c.l.b16 %v5164
    %v5262 = vunpack.c.l.b16 %v5165
    %v5263 = vunpack.c.l.b16 %v5166
    %v5264 = vunpack.c.l.b16 %v5167
    %v5265 = vunpack.c.l.b16 %v5168
    %v5266 = vunpack.c.l.b16 %v5169
    %v5267 = vunpack.c.l.b16 %v5170
    %v5268 = vunpack.c.l.b16 %v5171
    %v5269 = vunpack.c.l.b16 %v5172
    %v5270 = vunpack.c.l.b16 %v5173
    %v5271 = vunpack.c.l.b16 %v5174
    %v5272 = vunpack.c.l.b16 %v5175
    %v5273 = vunpack.c.l.b16 %v5176
    %v5274 = vunpack.c.l.b16 %v5177
    %v5275 = vunpack.c.l.b16 %v5178
    %v5276 = vunpack.c.l.b16 %v5179
    %v5277 = vunpack.c.l.b16 %v5180
    %v5278 = vunpack.c.l.b16 %v5181
    %v5279 = vunpack.c.l.b16 %v5182
    %v5280 = vunpack.c.l.b16 %v5183
    %v5281 = vunpack.c.l.b16 %v5184
    %v5282 = vunpack.c.l.b16 %v5185
    %v5283 = vunpack.c.l.b16 %v5186
    %v5284 = vunpack.c.l.b16 %v5187
    %v5285 = vunpack.c.l.b16 %v5188
    %v5286 = vunpack.c.l.b16 %v5189
    %v5287 = vunpack.c.l.b16 %v5190
    %v5288 = vunpack.c.l.b16 %v5191
    %v5289 = vunpack.c.l.b16 %v5192
    %v5290 = vunpack.c.l.b16 %v5193
    %v5291 = vunpack.c.l.b16 %v5194
    %v5292 = vunpack.c.l.b16 %v5195
    %v5293 = vunpack.c.l.b16 %v5196
    %v5294 = vunpack.c.l.b16 %v5197
    %v5295 = vunpack.c.l.b16 %v5198
    %v5296 = vunpack.c.l.b16 %v5199
    %v5297 = vunpack.c.l.b16 %v5200
    %v5298 = vunpack.c.l.b16 %v5201
    %v5299 = vpack.c.b16 %v5252, %v5251
    %v5300 = vpack.c.b16 %v5254, %v5253
    %v5301 = vpack.c.b16 %v5256, %v5255
    %v5302 = vpack.c.b16 %v5258, %v5257
    %v5303 = vpack.c.b16 %v5260, %v5259
    %v5304 = vpack.c.b16 %v5262, %v5261
    %v5305 = vpack.c.b16 %v5264, %v5263
    %v5306 = vpack.c.b16 %v5266, %v5265
    %v5307 = vpack.c.b16 %v5268, %v5267
    %v5308 = vpack.c.b16 %v5270, %v5269
    %v5309 = vpack.c.b16 %v5272, %v5271
    %v5310 = vpack.c.b16 %v5274, %v5273
    %v5311 = vpack.c.b16 %v5276, %v5275
    %v5312 = vpack.c.b16 %v5278, %v5277
    %v5313 = vpack.c.b16 %v5280, %v5279
    %v5314 = vpack.c.b16 %v5282, %v5281
    %v5315 = vpack.c.b16 %v5284, %v5283
    %v5316 = vpack.c.b16 %v5286, %v5285
    %v5317 = vpack.c.b16 %v5288, %v5287
    %v5318 = vpack.c.b16 %v5290, %v5289
    %v5319 = vpack.c.b16 %v5292, %v5291
    %v5320 = vpack.c.b16 %v5294, %v5293
    %v5321 = vpack.c.b16 %v5296, %v5295
    %v5322 = vpack.c.b16 %v5298, %v5297
    %5347 = vmatprep.subr.bf16.mxu0 0
    %5348 = vmatpush1.bf16.msra.mxu0 %v5299
    %5349 = vmatprep.subr.bf16.mxu0 0
    %5350 = vmatpush1.bf16.msra.mxu0 %v5300
    %5351 = vmatprep.subr.bf16.mxu0 0
    %5352 = vmatpush1.bf16.msra.mxu0 %v5301
    %5353 = vmatprep.subr.bf16.mxu0 0
    %5354 = vmatpush1.bf16.msra.mxu0 %v5302
    %5355 = vmatprep.subr.bf16.mxu0 0
    %5356 = vmatpush1.bf16.msra.mxu0 %v5303
    %5357 = vmatprep.subr.bf16.mxu0 0
    %5358 = vmatpush1.bf16.msra.mxu0 %v5304
    %5359 = vmatprep.subr.bf16.mxu0 0
    %5360 = vmatpush1.bf16.msra.mxu0 %v5305
    %5361 = vmatprep.subr.bf16.mxu0 0
    %5362 = vmatpush1.bf16.msra.mxu0 %v5306
    %5363 = vmatprep.subr.bf16.mxu0 0
    %5364 = vmatpush1.bf16.msra.mxu0 %v5307
    %5365 = vmatprep.subr.bf16.mxu0 0
    %5366 = vmatpush1.bf16.msra.mxu0 %v5308
    %5367 = vmatprep.subr.bf16.mxu0 0
    %5368 = vmatpush1.bf16.msra.mxu0 %v5309
    %5369 = vmatprep.subr.bf16.mxu0 0
    %5370 = vmatpush1.bf16.msra.mxu0 %v5310
    %5371 = vmatprep.subr.bf16.mxu0 0
    %5372 = vmatpush1.bf16.msra.mxu0 %v5311
    %5373 = vmatprep.subr.bf16.mxu0 0
    %5374 = vmatpush1.bf16.msra.mxu0 %v5312
    %5375 = vmatprep.subr.bf16.mxu0 0
    %5376 = vmatpush1.bf16.msra.mxu0 %v5313
    %5377 = vmatprep.subr.bf16.mxu0 0
    %5378 = vmatpush1.bf16.msra.mxu0 %v5314
    %5379 = vmatprep.mubr.bf16.mxu0 %v4849
    %5380 = vmatmul.mubr.bf16.gmra.mrb[0].mxu0 %v4848
    %v5381 = vpop.f32.mrb[0].mxu0
    %v5382 = vadd.f32 %v5202, %v5381
    %v5383 = vpop.f32.mrb[0].mxu0
    %v5384 = vpop.f32.mrb[0].mxu0
    %v5385 = vadd.f32 %v5202, %v5384
    %v5386 = vpop.f32.mrb[0].mxu0
    %5387 = vdwg.mxu0
    %5388 = vmatprep.subr.bf16.mxu0 0
    %5389 = vmatpush1.bf16.msra.mxu0 %v5315
    %5390 = vmatprep.subr.bf16.mxu0 0
    %5391 = vmatpush1.bf16.msra.mxu0 %v5316
    %5392 = vmatprep.subr.bf16.mxu0 0
    %5393 = vmatpush1.bf16.msra.mxu0 %v5317
    %5394 = vmatprep.subr.bf16.mxu0 0
    %5395 = vmatpush1.bf16.msra.mxu0 %v5318
    %5396 = vmatprep.subr.bf16.mxu0 0
    %5397 = vmatpush1.bf16.msra.mxu0 %v5319
    %5398 = vmatprep.subr.bf16.mxu0 0
    %5399 = vmatpush1.bf16.msra.mxu0 %v5320
    %5400 = vmatprep.subr.bf16.mxu0 0
    %5401 = vmatpush1.bf16.msra.mxu0 %v5321
    %5402 = vmatprep.subr.bf16.mxu0 0
    %5403 = vmatpush1.bf16.msra.mxu0 %v5322
    %5404 = vmatprep.subr.bf16.mxu0 0
    %5405 = vmatpush1.bf16.msra.mxu0 0
    %5406 = vmatprep.subr.bf16.mxu0 0
    %5407 = vmatpush1.bf16.msra.mxu0 0
    %5408 = vmatprep.subr.bf16.mxu0 0
    %5409 = vmatpush1.bf16.msra.mxu0 0
    %5410 = vmatprep.subr.bf16.mxu0 0
    %5411 = vmatpush1.bf16.msra.mxu0 0
    %5412 = vmatprep.subr.bf16.mxu0 0
    %5413 = vmatpush1.bf16.msra.mxu0 0
    %5414 = vmatprep.subr.bf16.mxu0 0
    %5415 = vmatpush1.bf16.msra.mxu0 0
    %5416 = vmatprep.subr.bf16.mxu0 0
    %5417 = vmatpush1.bf16.msra.mxu0 0
    %5418 = vmatprep.subr.bf16.mxu0 0
    %5419 = vmatpush1.bf16.msra.mxu0 0
    %5420 = vmatprep.mubr.bf16.mxu0 0
    %5421 = vmatmul.mubr.bf16.gmra.mrb[0].mxu0 %v4850
    %v5422 = vpop.f32.mrb[0].mxu0
    %v5423 = vadd.f32 %v5382, %v5422
    %v5424 = vpop.f32.mrb[0].mxu0
    %v5425 = vpop.f32.mrb[0].mxu0
    %v5426 = vadd.f32 %v5385, %v5425
    %v5427 = vpop.f32.mrb[0].mxu0
    %5428 = vdwg.mxu0
    %v5429 = vlaneseq
    %v5430 = vand.u32 %v5429, 127
    %vm5431 = vcmp.lt.s32.totalorder %v5430, 10
    %v5432 = vsel %vm5431, %v5423, -1e+30
    %v5433 = vsel %vm5431, %v5426, -1e+30
    %5434 = vmax.xlane.f32.xlu0 %v5432
    %v5435 = vpop.xlane.xlu0 %5434
    %5436 = vmax.xlane.f32.xlu0 %v5433
    %v5437 = vpop.xlane.xlu0 %5436
    %v5438 = vsub.f32 %v5432, %v5435
    %v5439 = vsub.f32 %v5433, %v5437
    %v5440 = vmul.f32 %v5438, 1.442695
    %v5441 = vpow.pop %v5440
    %v5442 = vmul.f32 %v5439, 1.442695
    %v5443 = vpow.pop %v5442
    %5444 = vadd.xlane.f32.xlu0 %v5441
    %v5445 = vpop.xlane.xlu0 %5444
    %5446 = vadd.xlane.f32.xlu0 %v5443
    %v5447 = vpop.xlane.xlu0 %5446
    %v5448 = vrcp.pop %v5445
    %v5449 = vmul.f32 %v5441, %v5448
    %v5450 = vrcp.pop %v5447
    %v5451 = vmul.f32 %v5443, %v5450
    %5452 = vst [vmem:[%s9] sm:$0xff] %v5449
    %5453 = vst [vmem:[%s9 + $0x8] sm:$0xff] %v5451
    // Predicated region
    $region54: #{mlp_forward.1} parent=1 // pred_check
      _
    $region55: #{mlp_forward.1} parent=1 // pred_check_branch
      %5455 = sbr.rel (0) target = $region57
    $region56: #{mlp_forward.1} parent=1 // pred_region
      _
    $region57: #{mlp_forward.1} parent=1 // pred_fallthru
      _
    // Predicated region
    $region58: #{mlp_forward.1} parent=1 // pred_check
      _
    $region59: #{mlp_forward.1} parent=1 // pred_check_branch
      %5457 = sbr.rel (0) target = $region61
    $region60: #{mlp_forward.1} parent=1 // pred_region
      _
    $region61: #{mlp_forward.1} parent=1 // pred_fallthru
      _
    // Predicated region
    $region62: #{mlp_forward.1} parent=1 // pred_check
      _
    $region63: #{mlp_forward.1} parent=1 // pred_check_branch
      %5459 = sbr.rel (0) target = $region65
    $region64: #{mlp_forward.1} parent=1 // pred_region
      _
    $region65: #{mlp_forward.1} parent=1 // pred_fallthru
      _
    // Predicated region
    $region66: #{mlp_forward.1} parent=1 // pred_check
      _
    $region67: #{mlp_forward.1} parent=1 // pred_check_branch
      %5461 = sbr.rel (0) target = $region69
    $region68: #{mlp_forward.1} parent=1 // pred_region
      _
    $region69: #{mlp_forward.1} parent=1 // pred_fallthru
      _
    %5462 = vsyncpa [#allocation3], 1
    %5463 = vsyncpa [#allocation5], 1
    %5464 = vsyncpa [#allocation8], 1

</llo_original>
